<compile_context>
chip_gen: v7x
topology: tpu7x:2x2x1
jax: 0.10.0
libtpu: 0.0.40
codegen_flags: <defaults>
</compile_context>

<pallas_src>
import jax
import jax.numpy as jnp
from jax import lax
from jax.experimental import pallas as pl
from jax.experimental.pallas import tpu as pltpu

COORD = 3
HID = 32
DIM = 2 * COORD                 # state dimension
R = 1 + DIM + DIM * DIM         # packed triple rows: value + jac + hess = 43
H2 = 2 * HID                    # 64
WA = 2 * HID + COORD            # 67: width of the fused pre-activation LHS
NA = 3 * HID + COORD            # 99: output width of the fused "A" matmuls

# ---------------------------------------------------------------------------
# parameter bookkeeping (shapes copied from the PyTorch __init__)
# ---------------------------------------------------------------------------
W_SHAPES = {
    "w_h0": (COORD, HID), "w_y0": (COORD, HID), "w_yu0": (COORD, COORD), "w_u0": (COORD, HID),
    "w_h1": (HID, HID), "w_z1": (HID, HID), "w_zu1": (HID, HID), "w_y1": (COORD, HID),
    "w_yu1": (HID, COORD), "w_u1": (HID, HID),
    "w_h2": (HID, HID), "w_z2": (HID, HID), "w_zu2": (HID, HID), "w_y2": (COORD, HID),
    "w_yu2": (HID, COORD), "w_u2": (HID, HID),
    "w_z_out": (HID, 1), "w_zu_out": (HID, HID), "w_y_out": (COORD, 1),
    "w_yu_out": (HID, COORD), "w_u_out": (HID, 1),
}
B_SHAPES = {
    "b_y0": (COORD,), "b_h0": (HID,), "b_0": (HID,),
    "b_h1": (HID,), "b_y1": (COORD,), "b_z1": (HID,), "b_1": (HID,),
    "b_h2": (HID,), "b_z2": (HID,), "b_y2": (COORD,), "b_2": (HID,),
    "b_z_out": (HID,), "b_y_out": (COORD,), "b_out": (1,),
}


def init_params(key):
    """Deterministic synthetic init matching the distributions in __init__."""
    keys = iter(jax.random.split(key, len(W_SHAPES) + len(B_SHAPES) + 4))
    p = {}
    for name, shp in W_SHAPES.items():
        p[name] = jax.random.uniform(next(keys), shp, jnp.float32, -0.1, 0.1)
    for name, shp in B_SHAPES.items():
        p[name] = jax.random.uniform(next(keys), shp, jnp.float32, 0.0, 1.0)
    # fc layers (torch Linear weight is (out,in); stored transposed here)
    p["fc1_w"] = jax.random.normal(next(keys), (COORD, HID), jnp.float32) * (2.2 / 4.0)
    p["fc2_w"] = jax.random.normal(next(keys), (HID, HID), jnp.float32) * (0.58 / 4.0)
    p["fc3_w"] = jax.random.normal(next(keys), (HID, HID), jnp.float32) * (0.58 * 2.0 / 4.0)
    p["fc4_w"] = jax.random.normal(next(keys), (HID, 1), jnp.float32) * 4.0
    p["fc1_b"] = jnp.zeros((HID,), jnp.float32)
    p["fc2_b"] = jnp.zeros((HID,), jnp.float32)
    p["fc3_b"] = jnp.zeros((HID,), jnp.float32)
    p["fc4_b"] = jnp.zeros((1,), jnp.float32)
    return p


# ---------------------------------------------------------------------------
# weight / bias slab layout (row offsets 8-aligned, 128 lanes wide)
# ---------------------------------------------------------------------------
OFF_A0, OFF_P0 = 0, 8          # [w_h0|fc1_w|w_yu0] (3,67)  ; [w_y0;w_u0] (6,32)
OFF_A1, OFF_P1 = 16, 80        # blockdiag(w_h1|fc2|w_zu1|w_yu1) (64,99) ; [relu(w_z1);w_y1;w_u1] (67,32)
OFF_A2, OFF_P2 = 152, 216      # layer 2, same structure
OFF_AOUT, OFF_POUT = 288, 352  # blockdiag(w_zu_out|w_yu_out|fc4) (64,36); [relu(w_z_out);w_y_out;w_u_out] (67,1)
W_ROWS = 424

(BR_A0, BR_P0, BR_A1, BR_P1, BR_A2, BR_P2, BR_AOUT, BR_POUT) = range(8)
B_ROWS = 8


def pack_params(p):
    """Pack all parameters into one weight slab + one bias slab (done once)."""
    relu = lambda w: jnp.maximum(w, 0.0)   # parameter-only transform (== torch.relu(weight))
    z = lambda r, c: jnp.zeros((r, c), jnp.float32)

    W = jnp.zeros((W_ROWS, 128), jnp.float32)

    def put(W, off, blk):
        r, c = blk.shape
        return W.at[off:off + r, :c].set(blk.astype(jnp.float32))

    # layer 0: columns [h(32) | fc1(32) | yu(3)] so softplus lanes are contiguous
    W = put(W, OFF_A0, jnp.concatenate([p["w_h0"], p["fc1_w"], p["w_yu0"]], axis=1))
    W = put(W, OFF_P0, jnp.concatenate([p["w_y0"], p["w_u0"]], axis=0))

    # layer 1 fused with potential fc2 (block diagonal on the [u1 | v1] input)
    top1 = jnp.concatenate([p["w_h1"], z(HID, HID), p["w_zu1"], p["w_yu1"]], axis=1)
    bot1 = jnp.concatenate([z(HID, HID), p["fc2_w"], z(HID, HID), z(HID, COORD)], axis=1)
    W = put(W, OFF_A1, jnp.concatenate([top1, bot1], axis=0))
    W = put(W, OFF_P1, jnp.concatenate([relu(p["w_z1"]), p["w_y1"], p["w_u1"]], axis=0))

    # layer 2 fused with potential fc3
    top2 = jnp.concatenate([p["w_h2"], z(HID, HID), p["w_zu2"], p["w_yu2"]], axis=1)
    bot2 = jnp.concatenate([z(HID, HID), p["fc3_w"], z(HID, HID), z(HID, COORD)], axis=1)
    W = put(W, OFF_A2, jnp.concatenate([top2, bot2], axis=0))
    W = put(W, OFF_P2, jnp.concatenate([relu(p["w_z2"]), p["w_y2"], p["w_u2"]], axis=0))

    # output layer fused with potential fc4
    topo = jnp.concatenate([p["w_zu_out"], p["w_yu_out"], z(HID, 1)], axis=1)
    boto = jnp.concatenate([z(HID, HID), z(HID, COORD), p["fc4_w"]], axis=1)
    W = put(W, OFF_AOUT, jnp.concatenate([topo, boto], axis=0))
    W = put(W, OFF_POUT, jnp.concatenate([relu(p["w_z_out"]), p["w_y_out"], p["w_u_out"]], axis=0))

    B = jnp.zeros((B_ROWS, 128), jnp.float32)

    def putb(B, row, vec):
        return B.at[row, :vec.shape[0]].set(vec.astype(jnp.float32))

    B = putb(B, BR_A0, jnp.concatenate([p["b_h0"], p["fc1_b"], p["b_y0"]]))
    B = putb(B, BR_P0, p["b_0"])
    B = putb(B, BR_A1, jnp.concatenate([p["b_h1"], p["fc2_b"], p["b_z1"], p["b_y1"]]))
    B = putb(B, BR_P1, p["b_1"])
    B = putb(B, BR_A2, jnp.concatenate([p["b_h2"], p["fc3_b"], p["b_z2"], p["b_y2"]]))
    B = putb(B, BR_P2, p["b_2"])
    B = putb(B, BR_AOUT, jnp.concatenate([p["b_z_out"], p["b_y_out"], p["fc4_b"]]))
    B = putb(B, BR_POUT, p["b_out"])
    return W, B


# ---------------------------------------------------------------------------
# packed-triple algebra: T is (R, d) = [value(1,d); jac(6,d); hess(36,d)]
#   hess row (i*DIM + j) = d^2 / dx_i dx_j
# ---------------------------------------------------------------------------
def _split(t):
    return t[0:1, :], t[1:1 + DIM, :], t[1 + DIM:, :]


def _outer(ja, jb):
    # rows (i*DIM + j) = ja[i, :] * jb[j, :]
    return jnp.concatenate([ja[i:i + 1, :] * jb for i in range(DIM)], axis=0)


def _sym_outer(ja, jb):
    # rows (i*DIM + j) = ja[i]*jb[j] + jb[i]*ja[j]
    return jnp.concatenate([ja[i:i + 1, :] * jb + jb[i:i + 1, :] * ja
                            for i in range(DIM)], axis=0)


def t_mul(a, b):
    va, ja, ha = _split(a)
    vb, jb, hb = _split(b)
    return jnp.concatenate(
        [va * vb,
         va * jb + vb * ja,
         va * hb + vb * ha + _sym_outer(ja, jb)], axis=0)


def t_softplus(t):
    v, j, h = _split(t)
    e = jnp.exp(-jnp.abs(v))                       # single transcendental exp
    sp = jnp.maximum(v, 0.0) + jnp.log(1.0 + e)    # stable softplus
    r = 1.0 / (1.0 + e)
    sig = jnp.where(v >= 0.0, r, e * r)            # sigmoid(v) from same e
    d2 = sig * (1.0 - sig)                         # softplus''
    return jnp.concatenate([sp, sig * j, sig * h + d2 * _outer(j, j)], axis=0)


# ---------------------------------------------------------------------------
# the Pallas kernel: value / grad / Hessian of the Lagrangian in one pass
# ---------------------------------------------------------------------------
def lnn_hess_kernel(x_ref, w_ref, b_ref, out_ref):
    f32 = jnp.float32
    x = x_ref[...]                                  # (1, 6)
    q, dq = x[:, :COORD], x[:, COORD:]

    # seed triples for u0 = q and y = dq (Jacobian seeds built via iota,
    # Hessian seeds are identically zero).
    rid = lax.broadcasted_iota(jnp.int32, (R, COORD), 0)
    cid = lax.broadcasted_iota(jnp.int32, (R, COORD), 1)
    u0 = (jnp.where(rid == 0, jnp.broadcast_to(q, (R, COORD)), 0.0)
          + (rid == cid + 1).astype(f32))
    y = (jnp.where(rid == 0, jnp.broadcast_to(dq, (R, COORD)), 0.0)
         + (rid == cid + 1 + COORD).astype(f32))

    # bias only touches the value row of a packed triple
    mask0 = (lax.broadcasted_iota(jnp.int32, (R, 1), 0) == 0).astype(f32)

    def lin(t, w_off, w_rows, n_out, b_row):
        out = jnp.dot(t, w_ref[w_off:w_off + w_rows, :n_out],
                      preferred_element_type=f32)
        return out + mask0 * b_ref[b_row:b_row + 1, :n_out]

    # ---- layer 0: one matmul for [w_h0 | fc1 | w_yu0] ----
    a0 = lin(u0, OFF_A0, COORD, WA, BR_A0)                       # (43, 67)
    s0 = t_softplus(a0[:, 0:H2])                                 # [u1 | v1]
    u1 = s0[:, 0:HID]
    ya = a0[:, H2:WA]                                            # u0 @ w_yu0 + b_y0
    z1 = t_softplus(lin(jnp.concatenate([t_mul(y, ya), u0], axis=1),
                        OFF_P0, 2 * COORD, HID, BR_P0))

    # ---- layer 1 (w_h1 / fc2 / w_zu1 / w_yu1 fused into one matmul) ----
    a1 = lin(s0, OFF_A1, H2, NA, BR_A1)                          # (43, 99)
    s1 = t_softplus(a1[:, 0:H2])                                 # [u2 | v2]
    u2 = s1[:, 0:HID]
    zb, yb = a1[:, H2:H2 + HID], a1[:, H2 + HID:NA]
    z2 = t_softplus(lin(jnp.concatenate([t_mul(z1, zb), t_mul(y, yb), u1], axis=1),
                        OFF_P1, WA, HID, BR_P1))

    # ---- layer 2 (w_h2 / fc3 / w_zu2 / w_yu2 fused) ----
    a2 = lin(s1, OFF_A2, H2, NA, BR_A2)
    s2 = t_softplus(a2[:, 0:H2])                                 # [u3 | v3]
    u3 = s2[:, 0:HID]
    zc, yc = a2[:, H2:H2 + HID], a2[:, H2 + HID:NA]
    z3 = t_softplus(lin(jnp.concatenate([t_mul(z2, zc), t_mul(y, yc), u2], axis=1),
                        OFF_P2, WA, HID, BR_P2))

    # ---- output layer (w_zu_out / w_yu_out / fc4 fused) ----
    ao = lin(s2, OFF_AOUT, H2, HID + COORD + 1, BR_AOUT)         # (43, 36)
    zd = ao[:, 0:HID]
    yd = ao[:, HID:HID + COORD]
    v4 = ao[:, HID + COORD:HID + COORD + 1]                      # fc4(v3) — no softplus
    zout = t_softplus(lin(jnp.concatenate([t_mul(z3, zd), t_mul(y, yd), u3], axis=1),
                          OFF_POUT, WA, 1, BR_POUT))

    L = zout - v4                                                # packed (43, 1)
    # single lane-dense store; wrapper reads column 0
    out_ref[...] = jnp.broadcast_to(L, (R, 128))


# ---------------------------------------------------------------------------
# forward wrapper (mirrors LNN.forward)
# ---------------------------------------------------------------------------
def lnn_forward(x, w_slab, b_slab):
    vmem = pl.BlockSpec(memory_space=pltpu.MemorySpace.VMEM)
    out = pl.pallas_call(
        lnn_hess_kernel,
        out_shape=jax.ShapeDtypeStruct((R, 128), jnp.float32),
        in_specs=[vmem, vmem, vmem],
        out_specs=vmem,
    )(x.reshape(1, DIM).astype(jnp.float32), w_slab, b_slab)

    col = out[:, 0]
    jac = col[1:1 + DIM]                         # (6,)  dL/dx
    hess = col[1 + DIM:].reshape(DIM, DIM)       # (6,6) d2L/dx dx

    # TODO(synk): the 3x3 inverse + Euler step stay in plain JAX glue
    # (no clean Pallas primitive for linalg.inv; cost is negligible).
    M = hess[COORD:, COORD:]
    C = hess[COORD:, :COORD]
    g = jac[:COORD]
    dqv = x[COORD:]
    ddq = (g - dqv @ C.T) @ jnp.linalg.inv(M).T
    dx = jnp.concatenate([dqv, ddq])
    xd = x + 0.001 * dx
    return xd, jac, hess


# ---------------------------------------------------------------------------
# pure-JAX reference of the Lagrangian (for autodiff cross-check)
# ---------------------------------------------------------------------------
def lagrangian_ref(state, P):
    sp = jax.nn.softplus
    relu = jax.nn.relu
    u0 = state[:COORD]
    y = state[COORD:]
    u1 = sp(u0 @ P["w_h0"] + P["b_h0"])
    z1 = sp((y * (u0 @ P["w_yu0"] + P["b_y0"])) @ P["w_y0"] + u0 @ P["w_u0"] + P["b_0"])
    u2 = sp(u1 @ P["w_h1"] + P["b_h1"])
    z2 = sp((z1 * (u1 @ P["w_zu1"] + P["b_z1"])) @ relu(P["w_z1"])
            + (y * (u1 @ P["w_yu1"] + P["b_y1"])) @ P["w_y1"]
            + u1 @ P["w_u1"] + P["b_1"])
    u3 = sp(u2 @ P["w_h2"] + P["b_h2"])
    z3 = sp((z2 * (u2 @ P["w_zu2"] + P["b_z2"])) @ relu(P["w_z2"])
            + (y * (u2 @ P["w_yu2"] + P["b_y2"])) @ P["w_y2"]
            + u2 @ P["w_u2"] + P["b_2"])
    zout = sp((z3 * (u3 @ P["w_zu_out"] + P["b_z_out"])) @ relu(P["w_z_out"])
              + (y * (u3 @ P["w_yu_out"] + P["b_y_out"])) @ P["w_y_out"]
              + u3 @ P["w_u_out"] + P["b_out"])
    V = sp(u0 @ P["fc1_w"] + P["fc1_b"])
    V = sp(V @ P["fc2_w"] + P["fc2_b"])
    V = sp(V @ P["fc3_w"] + P["fc3_b"])
    V = V @ P["fc4_w"] + P["fc4_b"]
    return (zout - V)[0]


if __name__ == "__main__":
    key = jax.random.PRNGKey(0)
    pkey, xkey = jax.random.split(key)
    params = init_params(pkey)
    x = jax.random.normal(xkey, (DIM,), jnp.float32)   # state = [q(3), dq(3)]

    # pack parameters into the two slabs once (reused across calls)
    w_slab, b_slab = pack_params(params)

    fwd = jax.jit(lnn_forward)
    xd, jac, hess = fwd(x, w_slab, b_slab)
    jax.block_until_ready(xd)

    # cross-check the in-kernel forward-mode Jacobian/Hessian against JAX autodiff
    Lfun = lambda s: lagrangian_ref(s, params)
    with jax.default_matmul_precision("highest"):
        jac_ref = jax.jacrev(Lfun)(x)
        hess_ref = jax.hessian(Lfun)(x)

    jac_ok = bool(jnp.allclose(jac, jac_ref, rtol=2e-2, atol=2e-3))
    hess_ok = bool(jnp.allclose(hess, hess_ref, rtol=2e-2, atol=2e-3))
    if not (jac_ok and hess_ok):
        raise SystemExit(
            f"MISMATCH: jac_err={float(jnp.max(jnp.abs(jac - jac_ref)))} "
            f"hess_err={float(jnp.max(jnp.abs(hess - hess_ref)))}")

    print("KERNEL_OK")
</pallas_src>

<mosaic_0001>
module attributes {stable_mosaic.version = 11 : i64} {
  func.func @lnn_hess_kernel(%arg0: memref<1x6xf32, #tpu.memory_space<vmem>>, %arg1: memref<424x128xf32, #tpu.memory_space<vmem>>, %arg2: memref<8x128xf32, #tpu.memory_space<vmem>>, %arg3: memref<43x128xf32, #tpu.memory_space<vmem>>) attributes {dimension_semantics = [], scalar_prefetch = 0 : i64, scratch_operands = 0 : i64, tpu.core_type = #tpu.core_type<tc>} {
    %c0 = arith.constant 0 : index
    %c0_0 = arith.constant 0 : index
    %0 = vector.load %arg0[%c0, %c0_0] : memref<1x6xf32, #tpu.memory_space<vmem>>, vector<1x6xf32>
    %1 = vector.extract_strided_slice %0 {offsets = [0, 0], sizes = [1, 3], strides = [1, 1]} : vector<1x6xf32> to vector<1x3xf32>
    %2 = vector.extract_strided_slice %0 {offsets = [0, 3], sizes = [1, 3], strides = [1, 1]} : vector<1x6xf32> to vector<1x3xf32>
    %3 = tpu.iota {dimensions = array<i32: 0>} : vector<43x3xi32>
    %4 = tpu.iota {dimensions = array<i32: 1>} : vector<43x3xi32>
    %c0_i32 = arith.constant 0 : i32
    %5 = vector.broadcast %c0_i32 : i32 to vector<43x3xi32>
    %6 = arith.cmpi eq, %3, %5 : vector<43x3xi32>
    %7 = vector.shape_cast %1 : vector<1x3xf32> to vector<1x3xf32>
    %8 = vector.broadcast %7 : vector<1x3xf32> to vector<43x3xf32>
    %cst = arith.constant 0.000000e+00 : f32
    %9 = vector.broadcast %cst : f32 to vector<43x3xf32>
    %10 = arith.select %6, %8, %9 : vector<43x3xi1>, vector<43x3xf32>
    %c1_i32 = arith.constant 1 : i32
    %11 = vector.broadcast %c1_i32 : i32 to vector<43x3xi32>
    %12 = arith.addi %4, %11 : vector<43x3xi32>
    %13 = arith.cmpi eq, %3, %12 : vector<43x3xi32>
    %14 = arith.extui %13 : vector<43x3xi1> to vector<43x3xi32>
    %15 = arith.sitofp %14 : vector<43x3xi32> to vector<43x3xf32>
    %16 = arith.addf %10, %15 : vector<43x3xf32>
    %c0_i32_1 = arith.constant 0 : i32
    %17 = vector.broadcast %c0_i32_1 : i32 to vector<43x3xi32>
    %18 = arith.cmpi eq, %3, %17 : vector<43x3xi32>
    %19 = vector.shape_cast %2 : vector<1x3xf32> to vector<1x3xf32>
    %20 = vector.broadcast %19 : vector<1x3xf32> to vector<43x3xf32>
    %cst_2 = arith.constant 0.000000e+00 : f32
    %21 = vector.broadcast %cst_2 : f32 to vector<43x3xf32>
    %22 = arith.select %18, %20, %21 : vector<43x3xi1>, vector<43x3xf32>
    %c1_i32_3 = arith.constant 1 : i32
    %23 = vector.broadcast %c1_i32_3 : i32 to vector<43x3xi32>
    %24 = arith.addi %4, %23 : vector<43x3xi32>
    %c3_i32 = arith.constant 3 : i32
    %25 = vector.broadcast %c3_i32 : i32 to vector<43x3xi32>
    %26 = arith.addi %24, %25 : vector<43x3xi32>
    %27 = arith.cmpi eq, %3, %26 : vector<43x3xi32>
    %28 = arith.extui %27 : vector<43x3xi1> to vector<43x3xi32>
    %29 = arith.sitofp %28 : vector<43x3xi32> to vector<43x3xf32>
    %30 = arith.addf %22, %29 : vector<43x3xf32>
    %31 = tpu.iota {dimensions = array<i32: 0>} : vector<43x1xi32>
    %c0_i32_4 = arith.constant 0 : i32
    %32 = vector.broadcast %c0_i32_4 : i32 to vector<43x1xi32>
    %33 = arith.cmpi eq, %31, %32 : vector<43x1xi32>
    %34 = arith.extui %33 : vector<43x1xi1> to vector<43x1xi32>
    %35 = arith.sitofp %34 : vector<43x1xi32> to vector<43x1xf32>
    %c0_5 = arith.constant 0 : index
    %c0_6 = arith.constant 0 : index
    %36 = vector.load %arg1[%c0_5, %c0_6] : memref<424x128xf32, #tpu.memory_space<vmem>>, vector<3x67xf32>
    %cst_7 = arith.constant dense<0.000000e+00> : vector<43x67xf32>
    %37 = tpu.matmul %16, %36, %cst_7 {dimension_numbers = #tpu.dot_dimension_numbers<[1], [0], [0], [1], [0, 0, 1, 1], [], []>} : vector<43x3xf32>, vector<3x67xf32>, vector<43x67xf32> -> vector<43x67xf32>
    %c0_8 = arith.constant 0 : index
    %c0_9 = arith.constant 0 : index
    %38 = vector.load %arg2[%c0_8, %c0_9] : memref<8x128xf32, #tpu.memory_space<vmem>>, vector<1x67xf32>
    %39 = vector.broadcast %35 : vector<43x1xf32> to vector<43x67xf32>
    %40 = vector.broadcast %38 : vector<1x67xf32> to vector<43x67xf32>
    %41 = arith.mulf %39, %40 : vector<43x67xf32>
    %42 = arith.addf %37, %41 : vector<43x67xf32>
    %43 = vector.extract_strided_slice %42 {offsets = [0, 0], sizes = [43, 64], strides = [1, 1]} : vector<43x67xf32> to vector<43x64xf32>
    %44 = vector.extract_strided_slice %43 {offsets = [0, 0], sizes = [1, 64], strides = [1, 1]} : vector<43x64xf32> to vector<1x64xf32>
    %45 = vector.extract_strided_slice %43 {offsets = [1, 0], sizes = [6, 64], strides = [1, 1]} : vector<43x64xf32> to vector<6x64xf32>
    %46 = vector.extract_strided_slice %43 {offsets = [7, 0], sizes = [36, 64], strides = [1, 1]} : vector<43x64xf32> to vector<36x64xf32>
    %47 = math.absf %44 : vector<1x64xf32>
    %cst_10 = arith.constant 0.000000e+00 : f32
    %48 = vector.broadcast %cst_10 : f32 to vector<1x64xf32>
    %49 = arith.subf %48, %47 : vector<1x64xf32>
    %50 = math.exp %49 : vector<1x64xf32>
    %cst_11 = arith.constant 0.000000e+00 : f32
    %51 = vector.broadcast %cst_11 : f32 to vector<1x64xf32>
    %52 = arith.maximumf %44, %51 : vector<1x64xf32>
    %cst_12 = arith.constant 1.000000e+00 : f32
    %53 = vector.broadcast %cst_12 : f32 to vector<1x64xf32>
    %54 = arith.addf %53, %50 : vector<1x64xf32>
    %55 = math.log %54 : vector<1x64xf32>
    %56 = arith.addf %52, %55 : vector<1x64xf32>
    %cst_13 = arith.constant 1.000000e+00 : f32
    %57 = vector.broadcast %cst_13 : f32 to vector<1x64xf32>
    %58 = arith.addf %57, %50 : vector<1x64xf32>
    %cst_14 = arith.constant 1.000000e+00 : f32
    %59 = vector.broadcast %cst_14 : f32 to vector<1x64xf32>
    %60 = arith.divf %59, %58 : vector<1x64xf32>
    %cst_15 = arith.constant 0.000000e+00 : f32
    %61 = vector.broadcast %cst_15 : f32 to vector<1x64xf32>
    %62 = arith.cmpf oge, %44, %61 : vector<1x64xf32>
    %63 = arith.mulf %50, %60 : vector<1x64xf32>
    %64 = arith.select %62, %60, %63 : vector<1x64xi1>, vector<1x64xf32>
    %cst_16 = arith.constant 1.000000e+00 : f32
    %65 = vector.broadcast %cst_16 : f32 to vector<1x64xf32>
    %66 = arith.subf %65, %64 : vector<1x64xf32>
    %67 = arith.mulf %64, %66 : vector<1x64xf32>
    %68 = vector.broadcast %64 : vector<1x64xf32> to vector<6x64xf32>
    %69 = arith.mulf %68, %45 : vector<6x64xf32>
    %70 = vector.broadcast %64 : vector<1x64xf32> to vector<36x64xf32>
    %71 = arith.mulf %70, %46 : vector<36x64xf32>
    %72 = vector.extract_strided_slice %45 {offsets = [0, 0], sizes = [1, 64], strides = [1, 1]} : vector<6x64xf32> to vector<1x64xf32>
    %73 = vector.broadcast %72 : vector<1x64xf32> to vector<6x64xf32>
    %74 = arith.mulf %73, %45 : vector<6x64xf32>
    %75 = vector.extract_strided_slice %45 {offsets = [1, 0], sizes = [1, 64], strides = [1, 1]} : vector<6x64xf32> to vector<1x64xf32>
    %76 = vector.broadcast %75 : vector<1x64xf32> to vector<6x64xf32>
    %77 = arith.mulf %76, %45 : vector<6x64xf32>
    %78 = vector.extract_strided_slice %45 {offsets = [2, 0], sizes = [1, 64], strides = [1, 1]} : vector<6x64xf32> to vector<1x64xf32>
    %79 = vector.broadcast %78 : vector<1x64xf32> to vector<6x64xf32>
    %80 = arith.mulf %79, %45 : vector<6x64xf32>
    %81 = vector.extract_strided_slice %45 {offsets = [3, 0], sizes = [1, 64], strides = [1, 1]} : vector<6x64xf32> to vector<1x64xf32>
    %82 = vector.broadcast %81 : vector<1x64xf32> to vector<6x64xf32>
    %83 = arith.mulf %82, %45 : vector<6x64xf32>
    %84 = vector.extract_strided_slice %45 {offsets = [4, 0], sizes = [1, 64], strides = [1, 1]} : vector<6x64xf32> to vector<1x64xf32>
    %85 = vector.broadcast %84 : vector<1x64xf32> to vector<6x64xf32>
    %86 = arith.mulf %85, %45 : vector<6x64xf32>
    %87 = vector.extract_strided_slice %45 {offsets = [5, 0], sizes = [1, 64], strides = [1, 1]} : vector<6x64xf32> to vector<1x64xf32>
    %88 = vector.broadcast %87 : vector<1x64xf32> to vector<6x64xf32>
    %89 = arith.mulf %88, %45 : vector<6x64xf32>
    %90 = tpu.concatenate %74, %77, %80, %83, %86, %89 in 0 : vector<6x64xf32>, vector<6x64xf32>, vector<6x64xf32>, vector<6x64xf32>, vector<6x64xf32>, vector<6x64xf32> -> vector<36x64xf32>
    %91 = vector.broadcast %67 : vector<1x64xf32> to vector<36x64xf32>
    %92 = arith.mulf %91, %90 : vector<36x64xf32>
    %93 = arith.addf %71, %92 : vector<36x64xf32>
    %94 = tpu.concatenate %56, %69, %93 in 0 : vector<1x64xf32>, vector<6x64xf32>, vector<36x64xf32> -> vector<43x64xf32>
    %95 = vector.extract_strided_slice %94 {offsets = [0, 0], sizes = [43, 32], strides = [1, 1]} : vector<43x64xf32> to vector<43x32xf32>
    %96 = vector.extract_strided_slice %42 {offsets = [0, 64], sizes = [43, 3], strides = [1, 1]} : vector<43x67xf32> to vector<43x3xf32>
    %97 = vector.extract_strided_slice %30 {offsets = [0, 0], sizes = [1, 3], strides = [1, 1]} : vector<43x3xf32> to vector<1x3xf32>
    %98 = vector.extract_strided_slice %30 {offsets = [1, 0], sizes = [6, 3], strides = [1, 1]} : vector<43x3xf32> to vector<6x3xf32>
    %99 = vector.extract_strided_slice %30 {offsets = [7, 0], sizes = [36, 3], strides = [1, 1]} : vector<43x3xf32> to vector<36x3xf32>
    %100 = vector.extract_strided_slice %96 {offsets = [0, 0], sizes = [1, 3], strides = [1, 1]} : vector<43x3xf32> to vector<1x3xf32>
    %101 = vector.extract_strided_slice %96 {offsets = [1, 0], sizes = [6, 3], strides = [1, 1]} : vector<43x3xf32> to vector<6x3xf32>
    %102 = vector.extract_strided_slice %96 {offsets = [7, 0], sizes = [36, 3], strides = [1, 1]} : vector<43x3xf32> to vector<36x3xf32>
    %103 = arith.mulf %97, %100 : vector<1x3xf32>
    %104 = vector.broadcast %97 : vector<1x3xf32> to vector<6x3xf32>
    %105 = arith.mulf %104, %101 : vector<6x3xf32>
    %106 = vector.broadcast %100 : vector<1x3xf32> to vector<6x3xf32>
    %107 = arith.mulf %106, %98 : vector<6x3xf32>
    %108 = arith.addf %105, %107 : vector<6x3xf32>
    %109 = vector.broadcast %97 : vector<1x3xf32> to vector<36x3xf32>
    %110 = arith.mulf %109, %102 : vector<36x3xf32>
    %111 = vector.broadcast %100 : vector<1x3xf32> to vector<36x3xf32>
    %112 = arith.mulf %111, %99 : vector<36x3xf32>
    %113 = arith.addf %110, %112 : vector<36x3xf32>
    %114 = vector.extract_strided_slice %98 {offsets = [0, 0], sizes = [1, 3], strides = [1, 1]} : vector<6x3xf32> to vector<1x3xf32>
    %115 = vector.broadcast %114 : vector<1x3xf32> to vector<6x3xf32>
    %116 = arith.mulf %115, %101 : vector<6x3xf32>
    %117 = vector.extract_strided_slice %101 {offsets = [0, 0], sizes = [1, 3], strides = [1, 1]} : vector<6x3xf32> to vector<1x3xf32>
    %118 = vector.broadcast %117 : vector<1x3xf32> to vector<6x3xf32>
    %119 = arith.mulf %118, %98 : vector<6x3xf32>
    %120 = arith.addf %116, %119 : vector<6x3xf32>
    %121 = vector.extract_strided_slice %98 {offsets = [1, 0], sizes = [1, 3], strides = [1, 1]} : vector<6x3xf32> to vector<1x3xf32>
    %122 = vector.broadcast %121 : vector<1x3xf32> to vector<6x3xf32>
    %123 = arith.mulf %122, %101 : vector<6x3xf32>
    %124 = vector.extract_strided_slice %101 {offsets = [1, 0], sizes = [1, 3], strides = [1, 1]} : vector<6x3xf32> to vector<1x3xf32>
    %125 = vector.broadcast %124 : vector<1x3xf32> to vector<6x3xf32>
    %126 = arith.mulf %125, %98 : vector<6x3xf32>
    %127 = arith.addf %123, %126 : vector<6x3xf32>
    %128 = vector.extract_strided_slice %98 {offsets = [2, 0], sizes = [1, 3], strides = [1, 1]} : vector<6x3xf32> to vector<1x3xf32>
    %129 = vector.broadcast %128 : vector<1x3xf32> to vector<6x3xf32>
    %130 = arith.mulf %129, %101 : vector<6x3xf32>
    %131 = vector.extract_strided_slice %101 {offsets = [2, 0], sizes = [1, 3], strides = [1, 1]} : vector<6x3xf32> to vector<1x3xf32>
    %132 = vector.broadcast %131 : vector<1x3xf32> to vector<6x3xf32>
    %133 = arith.mulf %132, %98 : vector<6x3xf32>
    %134 = arith.addf %130, %133 : vector<6x3xf32>
    %135 = vector.extract_strided_slice %98 {offsets = [3, 0], sizes = [1, 3], strides = [1, 1]} : vector<6x3xf32> to vector<1x3xf32>
    %136 = vector.broadcast %135 : vector<1x3xf32> to vector<6x3xf32>
    %137 = arith.mulf %136, %101 : vector<6x3xf32>
    %138 = vector.extract_strided_slice %101 {offsets = [3, 0], sizes = [1, 3], strides = [1, 1]} : vector<6x3xf32> to vector<1x3xf32>
    %139 = vector.broadcast %138 : vector<1x3xf32> to vector<6x3xf32>
    %140 = arith.mulf %139, %98 : vector<6x3xf32>
    %141 = arith.addf %137, %140 : vector<6x3xf32>
    %142 = vector.extract_strided_slice %98 {offsets = [4, 0], sizes = [1, 3], strides = [1, 1]} : vector<6x3xf32> to vector<1x3xf32>
    %143 = vector.broadcast %142 : vector<1x3xf32> to vector<6x3xf32>
    %144 = arith.mulf %143, %101 : vector<6x3xf32>
    %145 = vector.extract_strided_slice %101 {offsets = [4, 0], sizes = [1, 3], strides = [1, 1]} : vector<6x3xf32> to vector<1x3xf32>
    %146 = vector.broadcast %145 : vector<1x3xf32> to vector<6x3xf32>
    %147 = arith.mulf %146, %98 : vector<6x3xf32>
    %148 = arith.addf %144, %147 : vector<6x3xf32>
    %149 = vector.extract_strided_slice %98 {offsets = [5, 0], sizes = [1, 3], strides = [1, 1]} : vector<6x3xf32> to vector<1x3xf32>
    %150 = vector.broadcast %149 : vector<1x3xf32> to vector<6x3xf32>
    %151 = arith.mulf %150, %101 : vector<6x3xf32>
    %152 = vector.extract_strided_slice %101 {offsets = [5, 0], sizes = [1, 3], strides = [1, 1]} : vector<6x3xf32> to vector<1x3xf32>
    %153 = vector.broadcast %152 : vector<1x3xf32> to vector<6x3xf32>
    %154 = arith.mulf %153, %98 : vector<6x3xf32>
    %155 = arith.addf %151, %154 : vector<6x3xf32>
    %156 = tpu.concatenate %120, %127, %134, %141, %148, %155 in 0 : vector<6x3xf32>, vector<6x3xf32>, vector<6x3xf32>, vector<6x3xf32>, vector<6x3xf32>, vector<6x3xf32> -> vector<36x3xf32>
    %157 = arith.addf %113, %156 : vector<36x3xf32>
    %158 = tpu.concatenate %103, %108, %157 in 0 : vector<1x3xf32>, vector<6x3xf32>, vector<36x3xf32> -> vector<43x3xf32>
    %159 = tpu.concatenate %158, %16 in 1 : vector<43x3xf32>, vector<43x3xf32> -> vector<43x6xf32>
    %c8 = arith.constant 8 : index
    %c0_17 = arith.constant 0 : index
    %160 = vector.load %arg1[%c8, %c0_17] : memref<424x128xf32, #tpu.memory_space<vmem>>, vector<6x32xf32>
    %cst_18 = arith.constant dense<0.000000e+00> : vector<43x32xf32>
    %161 = tpu.matmul %159, %160, %cst_18 {dimension_numbers = #tpu.dot_dimension_numbers<[1], [0], [0], [1], [0, 0, 1, 1], [], []>} : vector<43x6xf32>, vector<6x32xf32>, vector<43x32xf32> -> vector<43x32xf32>
    %c1 = arith.constant 1 : index
    %c0_19 = arith.constant 0 : index
    %162 = vector.load %arg2[%c1, %c0_19] : memref<8x128xf32, #tpu.memory_space<vmem>>, vector<1x32xf32>
    %163 = vector.broadcast %35 : vector<43x1xf32> to vector<43x32xf32>
    %164 = vector.broadcast %162 : vector<1x32xf32> to vector<43x32xf32>
    %165 = arith.mulf %163, %164 : vector<43x32xf32>
    %166 = arith.addf %161, %165 : vector<43x32xf32>
    %167 = vector.extract_strided_slice %166 {offsets = [0, 0], sizes = [1, 32], strides = [1, 1]} : vector<43x32xf32> to vector<1x32xf32>
    %168 = vector.extract_strided_slice %166 {offsets = [1, 0], sizes = [6, 32], strides = [1, 1]} : vector<43x32xf32> to vector<6x32xf32>
    %169 = vector.extract_strided_slice %166 {offsets = [7, 0], sizes = [36, 32], strides = [1, 1]} : vector<43x32xf32> to vector<36x32xf32>
    %170 = math.absf %167 : vector<1x32xf32>
    %cst_20 = arith.constant 0.000000e+00 : f32
    %171 = vector.broadcast %cst_20 : f32 to vector<1x32xf32>
    %172 = arith.subf %171, %170 : vector<1x32xf32>
    %173 = math.exp %172 : vector<1x32xf32>
    %cst_21 = arith.constant 0.000000e+00 : f32
    %174 = vector.broadcast %cst_21 : f32 to vector<1x32xf32>
    %175 = arith.maximumf %167, %174 : vector<1x32xf32>
    %cst_22 = arith.constant 1.000000e+00 : f32
    %176 = vector.broadcast %cst_22 : f32 to vector<1x32xf32>
    %177 = arith.addf %176, %173 : vector<1x32xf32>
    %178 = math.log %177 : vector<1x32xf32>
    %179 = arith.addf %175, %178 : vector<1x32xf32>
    %cst_23 = arith.constant 1.000000e+00 : f32
    %180 = vector.broadcast %cst_23 : f32 to vector<1x32xf32>
    %181 = arith.addf %180, %173 : vector<1x32xf32>
    %cst_24 = arith.constant 1.000000e+00 : f32
    %182 = vector.broadcast %cst_24 : f32 to vector<1x32xf32>
    %183 = arith.divf %182, %181 : vector<1x32xf32>
    %cst_25 = arith.constant 0.000000e+00 : f32
    %184 = vector.broadcast %cst_25 : f32 to vector<1x32xf32>
    %185 = arith.cmpf oge, %167, %184 : vector<1x32xf32>
    %186 = arith.mulf %173, %183 : vector<1x32xf32>
    %187 = arith.select %185, %183, %186 : vector<1x32xi1>, vector<1x32xf32>
    %cst_26 = arith.constant 1.000000e+00 : f32
    %188 = vector.broadcast %cst_26 : f32 to vector<1x32xf32>
    %189 = arith.subf %188, %187 : vector<1x32xf32>
    %190 = arith.mulf %187, %189 : vector<1x32xf32>
    %191 = vector.broadcast %187 : vector<1x32xf32> to vector<6x32xf32>
    %192 = arith.mulf %191, %168 : vector<6x32xf32>
    %193 = vector.broadcast %187 : vector<1x32xf32> to vector<36x32xf32>
    %194 = arith.mulf %193, %169 : vector<36x32xf32>
    %195 = vector.extract_strided_slice %168 {offsets = [0, 0], sizes = [1, 32], strides = [1, 1]} : vector<6x32xf32> to vector<1x32xf32>
    %196 = vector.broadcast %195 : vector<1x32xf32> to vector<6x32xf32>
    %197 = arith.mulf %196, %168 : vector<6x32xf32>
    %198 = vector.extract_strided_slice %168 {offsets = [1, 0], sizes = [1, 32], strides = [1, 1]} : vector<6x32xf32> to vector<1x32xf32>
    %199 = vector.broadcast %198 : vector<1x32xf32> to vector<6x32xf32>
    %200 = arith.mulf %199, %168 : vector<6x32xf32>
    %201 = vector.extract_strided_slice %168 {offsets = [2, 0], sizes = [1, 32], strides = [1, 1]} : vector<6x32xf32> to vector<1x32xf32>
    %202 = vector.broadcast %201 : vector<1x32xf32> to vector<6x32xf32>
    %203 = arith.mulf %202, %168 : vector<6x32xf32>
    %204 = vector.extract_strided_slice %168 {offsets = [3, 0], sizes = [1, 32], strides = [1, 1]} : vector<6x32xf32> to vector<1x32xf32>
    %205 = vector.broadcast %204 : vector<1x32xf32> to vector<6x32xf32>
    %206 = arith.mulf %205, %168 : vector<6x32xf32>
    %207 = vector.extract_strided_slice %168 {offsets = [4, 0], sizes = [1, 32], strides = [1, 1]} : vector<6x32xf32> to vector<1x32xf32>
    %208 = vector.broadcast %207 : vector<1x32xf32> to vector<6x32xf32>
    %209 = arith.mulf %208, %168 : vector<6x32xf32>
    %210 = vector.extract_strided_slice %168 {offsets = [5, 0], sizes = [1, 32], strides = [1, 1]} : vector<6x32xf32> to vector<1x32xf32>
    %211 = vector.broadcast %210 : vector<1x32xf32> to vector<6x32xf32>
    %212 = arith.mulf %211, %168 : vector<6x32xf32>
    %213 = tpu.concatenate %197, %200, %203, %206, %209, %212 in 0 : vector<6x32xf32>, vector<6x32xf32>, vector<6x32xf32>, vector<6x32xf32>, vector<6x32xf32>, vector<6x32xf32> -> vector<36x32xf32>
    %214 = vector.broadcast %190 : vector<1x32xf32> to vector<36x32xf32>
    %215 = arith.mulf %214, %213 : vector<36x32xf32>
    %216 = arith.addf %194, %215 : vector<36x32xf32>
    %217 = tpu.concatenate %179, %192, %216 in 0 : vector<1x32xf32>, vector<6x32xf32>, vector<36x32xf32> -> vector<43x32xf32>
    %c16 = arith.constant 16 : index
    %c0_27 = arith.constant 0 : index
    %218 = vector.load %arg1[%c16, %c0_27] : memref<424x128xf32, #tpu.memory_space<vmem>>, vector<64x99xf32>
    %cst_28 = arith.constant dense<0.000000e+00> : vector<43x99xf32>
    %219 = tpu.matmul %94, %218, %cst_28 {dimension_numbers = #tpu.dot_dimension_numbers<[1], [0], [0], [1], [0, 0, 1, 1], [], []>} : vector<43x64xf32>, vector<64x99xf32>, vector<43x99xf32> -> vector<43x99xf32>
    %c2 = arith.constant 2 : index
    %c0_29 = arith.constant 0 : index
    %220 = vector.load %arg2[%c2, %c0_29] : memref<8x128xf32, #tpu.memory_space<vmem>>, vector<1x99xf32>
    %221 = vector.broadcast %35 : vector<43x1xf32> to vector<43x99xf32>
    %222 = vector.broadcast %220 : vector<1x99xf32> to vector<43x99xf32>
    %223 = arith.mulf %221, %222 : vector<43x99xf32>
    %224 = arith.addf %219, %223 : vector<43x99xf32>
    %225 = vector.extract_strided_slice %224 {offsets = [0, 0], sizes = [43, 64], strides = [1, 1]} : vector<43x99xf32> to vector<43x64xf32>
    %226 = vector.extract_strided_slice %225 {offsets = [0, 0], sizes = [1, 64], strides = [1, 1]} : vector<43x64xf32> to vector<1x64xf32>
    %227 = vector.extract_strided_slice %225 {offsets = [1, 0], sizes = [6, 64], strides = [1, 1]} : vector<43x64xf32> to vector<6x64xf32>
    %228 = vector.extract_strided_slice %225 {offsets = [7, 0], sizes = [36, 64], strides = [1, 1]} : vector<43x64xf32> to vector<36x64xf32>
    %229 = math.absf %226 : vector<1x64xf32>
    %cst_30 = arith.constant 0.000000e+00 : f32
    %230 = vector.broadcast %cst_30 : f32 to vector<1x64xf32>
    %231 = arith.subf %230, %229 : vector<1x64xf32>
    %232 = math.exp %231 : vector<1x64xf32>
    %cst_31 = arith.constant 0.000000e+00 : f32
    %233 = vector.broadcast %cst_31 : f32 to vector<1x64xf32>
    %234 = arith.maximumf %226, %233 : vector<1x64xf32>
    %cst_32 = arith.constant 1.000000e+00 : f32
    %235 = vector.broadcast %cst_32 : f32 to vector<1x64xf32>
    %236 = arith.addf %235, %232 : vector<1x64xf32>
    %237 = math.log %236 : vector<1x64xf32>
    %238 = arith.addf %234, %237 : vector<1x64xf32>
    %cst_33 = arith.constant 1.000000e+00 : f32
    %239 = vector.broadcast %cst_33 : f32 to vector<1x64xf32>
    %240 = arith.addf %239, %232 : vector<1x64xf32>
    %cst_34 = arith.constant 1.000000e+00 : f32
    %241 = vector.broadcast %cst_34 : f32 to vector<1x64xf32>
    %242 = arith.divf %241, %240 : vector<1x64xf32>
    %cst_35 = arith.constant 0.000000e+00 : f32
    %243 = vector.broadcast %cst_35 : f32 to vector<1x64xf32>
    %244 = arith.cmpf oge, %226, %243 : vector<1x64xf32>
    %245 = arith.mulf %232, %242 : vector<1x64xf32>
    %246 = arith.select %244, %242, %245 : vector<1x64xi1>, vector<1x64xf32>
    %cst_36 = arith.constant 1.000000e+00 : f32
    %247 = vector.broadcast %cst_36 : f32 to vector<1x64xf32>
    %248 = arith.subf %247, %246 : vector<1x64xf32>
    %249 = arith.mulf %246, %248 : vector<1x64xf32>
    %250 = vector.broadcast %246 : vector<1x64xf32> to vector<6x64xf32>
    %251 = arith.mulf %250, %227 : vector<6x64xf32>
    %252 = vector.broadcast %246 : vector<1x64xf32> to vector<36x64xf32>
    %253 = arith.mulf %252, %228 : vector<36x64xf32>
    %254 = vector.extract_strided_slice %227 {offsets = [0, 0], sizes = [1, 64], strides = [1, 1]} : vector<6x64xf32> to vector<1x64xf32>
    %255 = vector.broadcast %254 : vector<1x64xf32> to vector<6x64xf32>
    %256 = arith.mulf %255, %227 : vector<6x64xf32>
    %257 = vector.extract_strided_slice %227 {offsets = [1, 0], sizes = [1, 64], strides = [1, 1]} : vector<6x64xf32> to vector<1x64xf32>
    %258 = vector.broadcast %257 : vector<1x64xf32> to vector<6x64xf32>
    %259 = arith.mulf %258, %227 : vector<6x64xf32>
    %260 = vector.extract_strided_slice %227 {offsets = [2, 0], sizes = [1, 64], strides = [1, 1]} : vector<6x64xf32> to vector<1x64xf32>
    %261 = vector.broadcast %260 : vector<1x64xf32> to vector<6x64xf32>
    %262 = arith.mulf %261, %227 : vector<6x64xf32>
    %263 = vector.extract_strided_slice %227 {offsets = [3, 0], sizes = [1, 64], strides = [1, 1]} : vector<6x64xf32> to vector<1x64xf32>
    %264 = vector.broadcast %263 : vector<1x64xf32> to vector<6x64xf32>
    %265 = arith.mulf %264, %227 : vector<6x64xf32>
    %266 = vector.extract_strided_slice %227 {offsets = [4, 0], sizes = [1, 64], strides = [1, 1]} : vector<6x64xf32> to vector<1x64xf32>
    %267 = vector.broadcast %266 : vector<1x64xf32> to vector<6x64xf32>
    %268 = arith.mulf %267, %227 : vector<6x64xf32>
    %269 = vector.extract_strided_slice %227 {offsets = [5, 0], sizes = [1, 64], strides = [1, 1]} : vector<6x64xf32> to vector<1x64xf32>
    %270 = vector.broadcast %269 : vector<1x64xf32> to vector<6x64xf32>
    %271 = arith.mulf %270, %227 : vector<6x64xf32>
    %272 = tpu.concatenate %256, %259, %262, %265, %268, %271 in 0 : vector<6x64xf32>, vector<6x64xf32>, vector<6x64xf32>, vector<6x64xf32>, vector<6x64xf32>, vector<6x64xf32> -> vector<36x64xf32>
    %273 = vector.broadcast %249 : vector<1x64xf32> to vector<36x64xf32>
    %274 = arith.mulf %273, %272 : vector<36x64xf32>
    %275 = arith.addf %253, %274 : vector<36x64xf32>
    %276 = tpu.concatenate %238, %251, %275 in 0 : vector<1x64xf32>, vector<6x64xf32>, vector<36x64xf32> -> vector<43x64xf32>
    %277 = vector.extract_strided_slice %276 {offsets = [0, 0], sizes = [43, 32], strides = [1, 1]} : vector<43x64xf32> to vector<43x32xf32>
    %278 = vector.extract_strided_slice %224 {offsets = [0, 64], sizes = [43, 32], strides = [1, 1]} : vector<43x99xf32> to vector<43x32xf32>
    %279 = vector.extract_strided_slice %224 {offsets = [0, 96], sizes = [43, 3], strides = [1, 1]} : vector<43x99xf32> to vector<43x3xf32>
    %280 = vector.extract_strided_slice %217 {offsets = [0, 0], sizes = [1, 32], strides = [1, 1]} : vector<43x32xf32> to vector<1x32xf32>
    %281 = vector.extract_strided_slice %217 {offsets = [1, 0], sizes = [6, 32], strides = [1, 1]} : vector<43x32xf32> to vector<6x32xf32>
    %282 = vector.extract_strided_slice %217 {offsets = [7, 0], sizes = [36, 32], strides = [1, 1]} : vector<43x32xf32> to vector<36x32xf32>
    %283 = vector.extract_strided_slice %278 {offsets = [0, 0], sizes = [1, 32], strides = [1, 1]} : vector<43x32xf32> to vector<1x32xf32>
    %284 = vector.extract_strided_slice %278 {offsets = [1, 0], sizes = [6, 32], strides = [1, 1]} : vector<43x32xf32> to vector<6x32xf32>
    %285 = vector.extract_strided_slice %278 {offsets = [7, 0], sizes = [36, 32], strides = [1, 1]} : vector<43x32xf32> to vector<36x32xf32>
    %286 = arith.mulf %280, %283 : vector<1x32xf32>
    %287 = vector.broadcast %280 : vector<1x32xf32> to vector<6x32xf32>
    %288 = arith.mulf %287, %284 : vector<6x32xf32>
    %289 = vector.broadcast %283 : vector<1x32xf32> to vector<6x32xf32>
    %290 = arith.mulf %289, %281 : vector<6x32xf32>
    %291 = arith.addf %288, %290 : vector<6x32xf32>
    %292 = vector.broadcast %280 : vector<1x32xf32> to vector<36x32xf32>
    %293 = arith.mulf %292, %285 : vector<36x32xf32>
    %294 = vector.broadcast %283 : vector<1x32xf32> to vector<36x32xf32>
    %295 = arith.mulf %294, %282 : vector<36x32xf32>
    %296 = arith.addf %293, %295 : vector<36x32xf32>
    %297 = vector.extract_strided_slice %281 {offsets = [0, 0], sizes = [1, 32], strides = [1, 1]} : vector<6x32xf32> to vector<1x32xf32>
    %298 = vector.broadcast %297 : vector<1x32xf32> to vector<6x32xf32>
    %299 = arith.mulf %298, %284 : vector<6x32xf32>
    %300 = vector.extract_strided_slice %284 {offsets = [0, 0], sizes = [1, 32], strides = [1, 1]} : vector<6x32xf32> to vector<1x32xf32>
    %301 = vector.broadcast %300 : vector<1x32xf32> to vector<6x32xf32>
    %302 = arith.mulf %301, %281 : vector<6x32xf32>
    %303 = arith.addf %299, %302 : vector<6x32xf32>
    %304 = vector.extract_strided_slice %281 {offsets = [1, 0], sizes = [1, 32], strides = [1, 1]} : vector<6x32xf32> to vector<1x32xf32>
    %305 = vector.broadcast %304 : vector<1x32xf32> to vector<6x32xf32>
    %306 = arith.mulf %305, %284 : vector<6x32xf32>
    %307 = vector.extract_strided_slice %284 {offsets = [1, 0], sizes = [1, 32], strides = [1, 1]} : vector<6x32xf32> to vector<1x32xf32>
    %308 = vector.broadcast %307 : vector<1x32xf32> to vector<6x32xf32>
    %309 = arith.mulf %308, %281 : vector<6x32xf32>
    %310 = arith.addf %306, %309 : vector<6x32xf32>
    %311 = vector.extract_strided_slice %281 {offsets = [2, 0], sizes = [1, 32], strides = [1, 1]} : vector<6x32xf32> to vector<1x32xf32>
    %312 = vector.broadcast %311 : vector<1x32xf32> to vector<6x32xf32>
    %313 = arith.mulf %312, %284 : vector<6x32xf32>
    %314 = vector.extract_strided_slice %284 {offsets = [2, 0], sizes = [1, 32], strides = [1, 1]} : vector<6x32xf32> to vector<1x32xf32>
    %315 = vector.broadcast %314 : vector<1x32xf32> to vector<6x32xf32>
    %316 = arith.mulf %315, %281 : vector<6x32xf32>
    %317 = arith.addf %313, %316 : vector<6x32xf32>
    %318 = vector.extract_strided_slice %281 {offsets = [3, 0], sizes = [1, 32], strides = [1, 1]} : vector<6x32xf32> to vector<1x32xf32>
    %319 = vector.broadcast %318 : vector<1x32xf32> to vector<6x32xf32>
    %320 = arith.mulf %319, %284 : vector<6x32xf32>
    %321 = vector.extract_strided_slice %284 {offsets = [3, 0], sizes = [1, 32], strides = [1, 1]} : vector<6x32xf32> to vector<1x32xf32>
    %322 = vector.broadcast %321 : vector<1x32xf32> to vector<6x32xf32>
    %323 = arith.mulf %322, %281 : vector<6x32xf32>
    %324 = arith.addf %320, %323 : vector<6x32xf32>
    %325 = vector.extract_strided_slice %281 {offsets = [4, 0], sizes = [1, 32], strides = [1, 1]} : vector<6x32xf32> to vector<1x32xf32>
    %326 = vector.broadcast %325 : vector<1x32xf32> to vector<6x32xf32>
    %327 = arith.mulf %326, %284 : vector<6x32xf32>
    %328 = vector.extract_strided_slice %284 {offsets = [4, 0], sizes = [1, 32], strides = [1, 1]} : vector<6x32xf32> to vector<1x32xf32>
    %329 = vector.broadcast %328 : vector<1x32xf32> to vector<6x32xf32>
    %330 = arith.mulf %329, %281 : vector<6x32xf32>
    %331 = arith.addf %327, %330 : vector<6x32xf32>
    %332 = vector.extract_strided_slice %281 {offsets = [5, 0], sizes = [1, 32], strides = [1, 1]} : vector<6x32xf32> to vector<1x32xf32>
    %333 = vector.broadcast %332 : vector<1x32xf32> to vector<6x32xf32>
    %334 = arith.mulf %333, %284 : vector<6x32xf32>
    %335 = vector.extract_strided_slice %284 {offsets = [5, 0], sizes = [1, 32], strides = [1, 1]} : vector<6x32xf32> to vector<1x32xf32>
    %336 = vector.broadcast %335 : vector<1x32xf32> to vector<6x32xf32>
    %337 = arith.mulf %336, %281 : vector<6x32xf32>
    %338 = arith.addf %334, %337 : vector<6x32xf32>
    %339 = tpu.concatenate %303, %310, %317, %324, %331, %338 in 0 : vector<6x32xf32>, vector<6x32xf32>, vector<6x32xf32>, vector<6x32xf32>, vector<6x32xf32>, vector<6x32xf32> -> vector<36x32xf32>
    %340 = arith.addf %296, %339 : vector<36x32xf32>
    %341 = tpu.concatenate %286, %291, %340 in 0 : vector<1x32xf32>, vector<6x32xf32>, vector<36x32xf32> -> vector<43x32xf32>
    %342 = vector.extract_strided_slice %30 {offsets = [0, 0], sizes = [1, 3], strides = [1, 1]} : vector<43x3xf32> to vector<1x3xf32>
    %343 = vector.extract_strided_slice %30 {offsets = [1, 0], sizes = [6, 3], strides = [1, 1]} : vector<43x3xf32> to vector<6x3xf32>
    %344 = vector.extract_strided_slice %30 {offsets = [7, 0], sizes = [36, 3], strides = [1, 1]} : vector<43x3xf32> to vector<36x3xf32>
    %345 = vector.extract_strided_slice %279 {offsets = [0, 0], sizes = [1, 3], strides = [1, 1]} : vector<43x3xf32> to vector<1x3xf32>
    %346 = vector.extract_strided_slice %279 {offsets = [1, 0], sizes = [6, 3], strides = [1, 1]} : vector<43x3xf32> to vector<6x3xf32>
    %347 = vector.extract_strided_slice %279 {offsets = [7, 0], sizes = [36, 3], strides = [1, 1]} : vector<43x3xf32> to vector<36x3xf32>
    %348 = arith.mulf %342, %345 : vector<1x3xf32>
    %349 = vector.broadcast %342 : vector<1x3xf32> to vector<6x3xf32>
    %350 = arith.mulf %349, %346 : vector<6x3xf32>
    %351 = vector.broadcast %345 : vector<1x3xf32> to vector<6x3xf32>
    %352 = arith.mulf %351, %343 : vector<6x3xf32>
    %353 = arith.addf %350, %352 : vector<6x3xf32>
    %354 = vector.broadcast %342 : vector<1x3xf32> to vector<36x3xf32>
    %355 = arith.mulf %354, %347 : vector<36x3xf32>
    %356 = vector.broadcast %345 : vector<1x3xf32> to vector<36x3xf32>
    %357 = arith.mulf %356, %344 : vector<36x3xf32>
    %358 = arith.addf %355, %357 : vector<36x3xf32>
    %359 = vector.extract_strided_slice %343 {offsets = [0, 0], sizes = [1, 3], strides = [1, 1]} : vector<6x3xf32> to vector<1x3xf32>
    %360 = vector.broadcast %359 : vector<1x3xf32> to vector<6x3xf32>
    %361 = arith.mulf %360, %346 : vector<6x3xf32>
    %362 = vector.extract_strided_slice %346 {offsets = [0, 0], sizes = [1, 3], strides = [1, 1]} : vector<6x3xf32> to vector<1x3xf32>
    %363 = vector.broadcast %362 : vector<1x3xf32> to vector<6x3xf32>
    %364 = arith.mulf %363, %343 : vector<6x3xf32>
    %365 = arith.addf %361, %364 : vector<6x3xf32>
    %366 = vector.extract_strided_slice %343 {offsets = [1, 0], sizes = [1, 3], strides = [1, 1]} : vector<6x3xf32> to vector<1x3xf32>
    %367 = vector.broadcast %366 : vector<1x3xf32> to vector<6x3xf32>
    %368 = arith.mulf %367, %346 : vector<6x3xf32>
    %369 = vector.extract_strided_slice %346 {offsets = [1, 0], sizes = [1, 3], strides = [1, 1]} : vector<6x3xf32> to vector<1x3xf32>
    %370 = vector.broadcast %369 : vector<1x3xf32> to vector<6x3xf32>
    %371 = arith.mulf %370, %343 : vector<6x3xf32>
    %372 = arith.addf %368, %371 : vector<6x3xf32>
    %373 = vector.extract_strided_slice %343 {offsets = [2, 0], sizes = [1, 3], strides = [1, 1]} : vector<6x3xf32> to vector<1x3xf32>
    %374 = vector.broadcast %373 : vector<1x3xf32> to vector<6x3xf32>
    %375 = arith.mulf %374, %346 : vector<6x3xf32>
    %376 = vector.extract_strided_slice %346 {offsets = [2, 0], sizes = [1, 3], strides = [1, 1]} : vector<6x3xf32> to vector<1x3xf32>
    %377 = vector.broadcast %376 : vector<1x3xf32> to vector<6x3xf32>
    %378 = arith.mulf %377, %343 : vector<6x3xf32>
    %379 = arith.addf %375, %378 : vector<6x3xf32>
    %380 = vector.extract_strided_slice %343 {offsets = [3, 0], sizes = [1, 3], strides = [1, 1]} : vector<6x3xf32> to vector<1x3xf32>
    %381 = vector.broadcast %380 : vector<1x3xf32> to vector<6x3xf32>
    %382 = arith.mulf %381, %346 : vector<6x3xf32>
    %383 = vector.extract_strided_slice %346 {offsets = [3, 0], sizes = [1, 3], strides = [1, 1]} : vector<6x3xf32> to vector<1x3xf32>
    %384 = vector.broadcast %383 : vector<1x3xf32> to vector<6x3xf32>
    %385 = arith.mulf %384, %343 : vector<6x3xf32>
    %386 = arith.addf %382, %385 : vector<6x3xf32>
    %387 = vector.extract_strided_slice %343 {offsets = [4, 0], sizes = [1, 3], strides = [1, 1]} : vector<6x3xf32> to vector<1x3xf32>
    %388 = vector.broadcast %387 : vector<1x3xf32> to vector<6x3xf32>
    %389 = arith.mulf %388, %346 : vector<6x3xf32>
    %390 = vector.extract_strided_slice %346 {offsets = [4, 0], sizes = [1, 3], strides = [1, 1]} : vector<6x3xf32> to vector<1x3xf32>
    %391 = vector.broadcast %390 : vector<1x3xf32> to vector<6x3xf32>
    %392 = arith.mulf %391, %343 : vector<6x3xf32>
    %393 = arith.addf %389, %392 : vector<6x3xf32>
    %394 = vector.extract_strided_slice %343 {offsets = [5, 0], sizes = [1, 3], strides = [1, 1]} : vector<6x3xf32> to vector<1x3xf32>
    %395 = vector.broadcast %394 : vector<1x3xf32> to vector<6x3xf32>
    %396 = arith.mulf %395, %346 : vector<6x3xf32>
    %397 = vector.extract_strided_slice %346 {offsets = [5, 0], sizes = [1, 3], strides = [1, 1]} : vector<6x3xf32> to vector<1x3xf32>
    %398 = vector.broadcast %397 : vector<1x3xf32> to vector<6x3xf32>
    %399 = arith.mulf %398, %343 : vector<6x3xf32>
    %400 = arith.addf %396, %399 : vector<6x3xf32>
    %401 = tpu.concatenate %365, %372, %379, %386, %393, %400 in 0 : vector<6x3xf32>, vector<6x3xf32>, vector<6x3xf32>, vector<6x3xf32>, vector<6x3xf32>, vector<6x3xf32> -> vector<36x3xf32>
    %402 = arith.addf %358, %401 : vector<36x3xf32>
    %403 = tpu.concatenate %348, %353, %402 in 0 : vector<1x3xf32>, vector<6x3xf32>, vector<36x3xf32> -> vector<43x3xf32>
    %404 = tpu.concatenate %341, %403, %95 in 1 : vector<43x32xf32>, vector<43x3xf32>, vector<43x32xf32> -> vector<43x67xf32>
    %c80 = arith.constant 80 : index
    %c0_37 = arith.constant 0 : index
    %405 = vector.load %arg1[%c80, %c0_37] : memref<424x128xf32, #tpu.memory_space<vmem>>, vector<67x32xf32>
    %cst_38 = arith.constant dense<0.000000e+00> : vector<43x32xf32>
    %406 = tpu.matmul %404, %405, %cst_38 {dimension_numbers = #tpu.dot_dimension_numbers<[1], [0], [0], [1], [0, 0, 1, 1], [], []>} : vector<43x67xf32>, vector<67x32xf32>, vector<43x32xf32> -> vector<43x32xf32>
    %c3 = arith.constant 3 : index
    %c0_39 = arith.constant 0 : index
    %407 = vector.load %arg2[%c3, %c0_39] : memref<8x128xf32, #tpu.memory_space<vmem>>, vector<1x32xf32>
    %408 = vector.broadcast %35 : vector<43x1xf32> to vector<43x32xf32>
    %409 = vector.broadcast %407 : vector<1x32xf32> to vector<43x32xf32>
    %410 = arith.mulf %408, %409 : vector<43x32xf32>
    %411 = arith.addf %406, %410 : vector<43x32xf32>
    %412 = vector.extract_strided_slice %411 {offsets = [0, 0], sizes = [1, 32], strides = [1, 1]} : vector<43x32xf32> to vector<1x32xf32>
    %413 = vector.extract_strided_slice %411 {offsets = [1, 0], sizes = [6, 32], strides = [1, 1]} : vector<43x32xf32> to vector<6x32xf32>
    %414 = vector.extract_strided_slice %411 {offsets = [7, 0], sizes = [36, 32], strides = [1, 1]} : vector<43x32xf32> to vector<36x32xf32>
    %415 = math.absf %412 : vector<1x32xf32>
    %cst_40 = arith.constant 0.000000e+00 : f32
    %416 = vector.broadcast %cst_40 : f32 to vector<1x32xf32>
    %417 = arith.subf %416, %415 : vector<1x32xf32>
    %418 = math.exp %417 : vector<1x32xf32>
    %cst_41 = arith.constant 0.000000e+00 : f32
    %419 = vector.broadcast %cst_41 : f32 to vector<1x32xf32>
    %420 = arith.maximumf %412, %419 : vector<1x32xf32>
    %cst_42 = arith.constant 1.000000e+00 : f32
    %421 = vector.broadcast %cst_42 : f32 to vector<1x32xf32>
    %422 = arith.addf %421, %418 : vector<1x32xf32>
    %423 = math.log %422 : vector<1x32xf32>
    %424 = arith.addf %420, %423 : vector<1x32xf32>
    %cst_43 = arith.constant 1.000000e+00 : f32
    %425 = vector.broadcast %cst_43 : f32 to vector<1x32xf32>
    %426 = arith.addf %425, %418 : vector<1x32xf32>
    %cst_44 = arith.constant 1.000000e+00 : f32
    %427 = vector.broadcast %cst_44 : f32 to vector<1x32xf32>
    %428 = arith.divf %427, %426 : vector<1x32xf32>
    %cst_45 = arith.constant 0.000000e+00 : f32
    %429 = vector.broadcast %cst_45 : f32 to vector<1x32xf32>
    %430 = arith.cmpf oge, %412, %429 : vector<1x32xf32>
    %431 = arith.mulf %418, %428 : vector<1x32xf32>
    %432 = arith.select %430, %428, %431 : vector<1x32xi1>, vector<1x32xf32>
    %cst_46 = arith.constant 1.000000e+00 : f32
    %433 = vector.broadcast %cst_46 : f32 to vector<1x32xf32>
    %434 = arith.subf %433, %432 : vector<1x32xf32>
    %435 = arith.mulf %432, %434 : vector<1x32xf32>
    %436 = vector.broadcast %432 : vector<1x32xf32> to vector<6x32xf32>
    %437 = arith.mulf %436, %413 : vector<6x32xf32>
    %438 = vector.broadcast %432 : vector<1x32xf32> to vector<36x32xf32>
    %439 = arith.mulf %438, %414 : vector<36x32xf32>
    %440 = vector.extract_strided_slice %413 {offsets = [0, 0], sizes = [1, 32], strides = [1, 1]} : vector<6x32xf32> to vector<1x32xf32>
    %441 = vector.broadcast %440 : vector<1x32xf32> to vector<6x32xf32>
    %442 = arith.mulf %441, %413 : vector<6x32xf32>
    %443 = vector.extract_strided_slice %413 {offsets = [1, 0], sizes = [1, 32], strides = [1, 1]} : vector<6x32xf32> to vector<1x32xf32>
    %444 = vector.broadcast %443 : vector<1x32xf32> to vector<6x32xf32>
    %445 = arith.mulf %444, %413 : vector<6x32xf32>
    %446 = vector.extract_strided_slice %413 {offsets = [2, 0], sizes = [1, 32], strides = [1, 1]} : vector<6x32xf32> to vector<1x32xf32>
    %447 = vector.broadcast %446 : vector<1x32xf32> to vector<6x32xf32>
    %448 = arith.mulf %447, %413 : vector<6x32xf32>
    %449 = vector.extract_strided_slice %413 {offsets = [3, 0], sizes = [1, 32], strides = [1, 1]} : vector<6x32xf32> to vector<1x32xf32>
    %450 = vector.broadcast %449 : vector<1x32xf32> to vector<6x32xf32>
    %451 = arith.mulf %450, %413 : vector<6x32xf32>
    %452 = vector.extract_strided_slice %413 {offsets = [4, 0], sizes = [1, 32], strides = [1, 1]} : vector<6x32xf32> to vector<1x32xf32>
    %453 = vector.broadcast %452 : vector<1x32xf32> to vector<6x32xf32>
    %454 = arith.mulf %453, %413 : vector<6x32xf32>
    %455 = vector.extract_strided_slice %413 {offsets = [5, 0], sizes = [1, 32], strides = [1, 1]} : vector<6x32xf32> to vector<1x32xf32>
    %456 = vector.broadcast %455 : vector<1x32xf32> to vector<6x32xf32>
    %457 = arith.mulf %456, %413 : vector<6x32xf32>
    %458 = tpu.concatenate %442, %445, %448, %451, %454, %457 in 0 : vector<6x32xf32>, vector<6x32xf32>, vector<6x32xf32>, vector<6x32xf32>, vector<6x32xf32>, vector<6x32xf32> -> vector<36x32xf32>
    %459 = vector.broadcast %435 : vector<1x32xf32> to vector<36x32xf32>
    %460 = arith.mulf %459, %458 : vector<36x32xf32>
    %461 = arith.addf %439, %460 : vector<36x32xf32>
    %462 = tpu.concatenate %424, %437, %461 in 0 : vector<1x32xf32>, vector<6x32xf32>, vector<36x32xf32> -> vector<43x32xf32>
    %c152 = arith.constant 152 : index
    %c0_47 = arith.constant 0 : index
    %463 = vector.load %arg1[%c152, %c0_47] : memref<424x128xf32, #tpu.memory_space<vmem>>, vector<64x99xf32>
    %cst_48 = arith.constant dense<0.000000e+00> : vector<43x99xf32>
    %464 = tpu.matmul %276, %463, %cst_48 {dimension_numbers = #tpu.dot_dimension_numbers<[1], [0], [0], [1], [0, 0, 1, 1], [], []>} : vector<43x64xf32>, vector<64x99xf32>, vector<43x99xf32> -> vector<43x99xf32>
    %c4 = arith.constant 4 : index
    %c0_49 = arith.constant 0 : index
    %465 = vector.load %arg2[%c4, %c0_49] : memref<8x128xf32, #tpu.memory_space<vmem>>, vector<1x99xf32>
    %466 = vector.broadcast %35 : vector<43x1xf32> to vector<43x99xf32>
    %467 = vector.broadcast %465 : vector<1x99xf32> to vector<43x99xf32>
    %468 = arith.mulf %466, %467 : vector<43x99xf32>
    %469 = arith.addf %464, %468 : vector<43x99xf32>
    %470 = vector.extract_strided_slice %469 {offsets = [0, 0], sizes = [43, 64], strides = [1, 1]} : vector<43x99xf32> to vector<43x64xf32>
    %471 = vector.extract_strided_slice %470 {offsets = [0, 0], sizes = [1, 64], strides = [1, 1]} : vector<43x64xf32> to vector<1x64xf32>
    %472 = vector.extract_strided_slice %470 {offsets = [1, 0], sizes = [6, 64], strides = [1, 1]} : vector<43x64xf32> to vector<6x64xf32>
    %473 = vector.extract_strided_slice %470 {offsets = [7, 0], sizes = [36, 64], strides = [1, 1]} : vector<43x64xf32> to vector<36x64xf32>
    %474 = math.absf %471 : vector<1x64xf32>
    %cst_50 = arith.constant 0.000000e+00 : f32
    %475 = vector.broadcast %cst_50 : f32 to vector<1x64xf32>
    %476 = arith.subf %475, %474 : vector<1x64xf32>
    %477 = math.exp %476 : vector<1x64xf32>
    %cst_51 = arith.constant 0.000000e+00 : f32
    %478 = vector.broadcast %cst_51 : f32 to vector<1x64xf32>
    %479 = arith.maximumf %471, %478 : vector<1x64xf32>
    %cst_52 = arith.constant 1.000000e+00 : f32
    %480 = vector.broadcast %cst_52 : f32 to vector<1x64xf32>
    %481 = arith.addf %480, %477 : vector<1x64xf32>
    %482 = math.log %481 : vector<1x64xf32>
    %483 = arith.addf %479, %482 : vector<1x64xf32>
    %cst_53 = arith.constant 1.000000e+00 : f32
    %484 = vector.broadcast %cst_53 : f32 to vector<1x64xf32>
    %485 = arith.addf %484, %477 : vector<1x64xf32>
    %cst_54 = arith.constant 1.000000e+00 : f32
    %486 = vector.broadcast %cst_54 : f32 to vector<1x64xf32>
    %487 = arith.divf %486, %485 : vector<1x64xf32>
    %cst_55 = arith.constant 0.000000e+00 : f32
    %488 = vector.broadcast %cst_55 : f32 to vector<1x64xf32>
    %489 = arith.cmpf oge, %471, %488 : vector<1x64xf32>
    %490 = arith.mulf %477, %487 : vector<1x64xf32>
    %491 = arith.select %489, %487, %490 : vector<1x64xi1>, vector<1x64xf32>
    %cst_56 = arith.constant 1.000000e+00 : f32
    %492 = vector.broadcast %cst_56 : f32 to vector<1x64xf32>
    %493 = arith.subf %492, %491 : vector<1x64xf32>
    %494 = arith.mulf %491, %493 : vector<1x64xf32>
    %495 = vector.broadcast %491 : vector<1x64xf32> to vector<6x64xf32>
    %496 = arith.mulf %495, %472 : vector<6x64xf32>
    %497 = vector.broadcast %491 : vector<1x64xf32> to vector<36x64xf32>
    %498 = arith.mulf %497, %473 : vector<36x64xf32>
    %499 = vector.extract_strided_slice %472 {offsets = [0, 0], sizes = [1, 64], strides = [1, 1]} : vector<6x64xf32> to vector<1x64xf32>
    %500 = vector.broadcast %499 : vector<1x64xf32> to vector<6x64xf32>
    %501 = arith.mulf %500, %472 : vector<6x64xf32>
    %502 = vector.extract_strided_slice %472 {offsets = [1, 0], sizes = [1, 64], strides = [1, 1]} : vector<6x64xf32> to vector<1x64xf32>
    %503 = vector.broadcast %502 : vector<1x64xf32> to vector<6x64xf32>
    %504 = arith.mulf %503, %472 : vector<6x64xf32>
    %505 = vector.extract_strided_slice %472 {offsets = [2, 0], sizes = [1, 64], strides = [1, 1]} : vector<6x64xf32> to vector<1x64xf32>
    %506 = vector.broadcast %505 : vector<1x64xf32> to vector<6x64xf32>
    %507 = arith.mulf %506, %472 : vector<6x64xf32>
    %508 = vector.extract_strided_slice %472 {offsets = [3, 0], sizes = [1, 64], strides = [1, 1]} : vector<6x64xf32> to vector<1x64xf32>
    %509 = vector.broadcast %508 : vector<1x64xf32> to vector<6x64xf32>
    %510 = arith.mulf %509, %472 : vector<6x64xf32>
    %511 = vector.extract_strided_slice %472 {offsets = [4, 0], sizes = [1, 64], strides = [1, 1]} : vector<6x64xf32> to vector<1x64xf32>
    %512 = vector.broadcast %511 : vector<1x64xf32> to vector<6x64xf32>
    %513 = arith.mulf %512, %472 : vector<6x64xf32>
    %514 = vector.extract_strided_slice %472 {offsets = [5, 0], sizes = [1, 64], strides = [1, 1]} : vector<6x64xf32> to vector<1x64xf32>
    %515 = vector.broadcast %514 : vector<1x64xf32> to vector<6x64xf32>
    %516 = arith.mulf %515, %472 : vector<6x64xf32>
    %517 = tpu.concatenate %501, %504, %507, %510, %513, %516 in 0 : vector<6x64xf32>, vector<6x64xf32>, vector<6x64xf32>, vector<6x64xf32>, vector<6x64xf32>, vector<6x64xf32> -> vector<36x64xf32>
    %518 = vector.broadcast %494 : vector<1x64xf32> to vector<36x64xf32>
    %519 = arith.mulf %518, %517 : vector<36x64xf32>
    %520 = arith.addf %498, %519 : vector<36x64xf32>
    %521 = tpu.concatenate %483, %496, %520 in 0 : vector<1x64xf32>, vector<6x64xf32>, vector<36x64xf32> -> vector<43x64xf32>
    %522 = vector.extract_strided_slice %521 {offsets = [0, 0], sizes = [43, 32], strides = [1, 1]} : vector<43x64xf32> to vector<43x32xf32>
    %523 = vector.extract_strided_slice %469 {offsets = [0, 64], sizes = [43, 32], strides = [1, 1]} : vector<43x99xf32> to vector<43x32xf32>
    %524 = vector.extract_strided_slice %469 {offsets = [0, 96], sizes = [43, 3], strides = [1, 1]} : vector<43x99xf32> to vector<43x3xf32>
    %525 = vector.extract_strided_slice %462 {offsets = [0, 0], sizes = [1, 32], strides = [1, 1]} : vector<43x32xf32> to vector<1x32xf32>
    %526 = vector.extract_strided_slice %462 {offsets = [1, 0], sizes = [6, 32], strides = [1, 1]} : vector<43x32xf32> to vector<6x32xf32>
    %527 = vector.extract_strided_slice %462 {offsets = [7, 0], sizes = [36, 32], strides = [1, 1]} : vector<43x32xf32> to vector<36x32xf32>
    %528 = vector.extract_strided_slice %523 {offsets = [0, 0], sizes = [1, 32], strides = [1, 1]} : vector<43x32xf32> to vector<1x32xf32>
    %529 = vector.extract_strided_slice %523 {offsets = [1, 0], sizes = [6, 32], strides = [1, 1]} : vector<43x32xf32> to vector<6x32xf32>
    %530 = vector.extract_strided_slice %523 {offsets = [7, 0], sizes = [36, 32], strides = [1, 1]} : vector<43x32xf32> to vector<36x32xf32>
    %531 = arith.mulf %525, %528 : vector<1x32xf32>
    %532 = vector.broadcast %525 : vector<1x32xf32> to vector<6x32xf32>
    %533 = arith.mulf %532, %529 : vector<6x32xf32>
    %534 = vector.broadcast %528 : vector<1x32xf32> to vector<6x32xf32>
    %535 = arith.mulf %534, %526 : vector<6x32xf32>
    %536 = arith.addf %533, %535 : vector<6x32xf32>
    %537 = vector.broadcast %525 : vector<1x32xf32> to vector<36x32xf32>
    %538 = arith.mulf %537, %530 : vector<36x32xf32>
    %539 = vector.broadcast %528 : vector<1x32xf32> to vector<36x32xf32>
    %540 = arith.mulf %539, %527 : vector<36x32xf32>
    %541 = arith.addf %538, %540 : vector<36x32xf32>
    %542 = vector.extract_strided_slice %526 {offsets = [0, 0], sizes = [1, 32], strides = [1, 1]} : vector<6x32xf32> to vector<1x32xf32>
    %543 = vector.broadcast %542 : vector<1x32xf32> to vector<6x32xf32>
    %544 = arith.mulf %543, %529 : vector<6x32xf32>
    %545 = vector.extract_strided_slice %529 {offsets = [0, 0], sizes = [1, 32], strides = [1, 1]} : vector<6x32xf32> to vector<1x32xf32>
    %546 = vector.broadcast %545 : vector<1x32xf32> to vector<6x32xf32>
    %547 = arith.mulf %546, %526 : vector<6x32xf32>
    %548 = arith.addf %544, %547 : vector<6x32xf32>
    %549 = vector.extract_strided_slice %526 {offsets = [1, 0], sizes = [1, 32], strides = [1, 1]} : vector<6x32xf32> to vector<1x32xf32>
    %550 = vector.broadcast %549 : vector<1x32xf32> to vector<6x32xf32>
    %551 = arith.mulf %550, %529 : vector<6x32xf32>
    %552 = vector.extract_strided_slice %529 {offsets = [1, 0], sizes = [1, 32], strides = [1, 1]} : vector<6x32xf32> to vector<1x32xf32>
    %553 = vector.broadcast %552 : vector<1x32xf32> to vector<6x32xf32>
    %554 = arith.mulf %553, %526 : vector<6x32xf32>
    %555 = arith.addf %551, %554 : vector<6x32xf32>
    %556 = vector.extract_strided_slice %526 {offsets = [2, 0], sizes = [1, 32], strides = [1, 1]} : vector<6x32xf32> to vector<1x32xf32>
    %557 = vector.broadcast %556 : vector<1x32xf32> to vector<6x32xf32>
    %558 = arith.mulf %557, %529 : vector<6x32xf32>
    %559 = vector.extract_strided_slice %529 {offsets = [2, 0], sizes = [1, 32], strides = [1, 1]} : vector<6x32xf32> to vector<1x32xf32>
    %560 = vector.broadcast %559 : vector<1x32xf32> to vector<6x32xf32>
    %561 = arith.mulf %560, %526 : vector<6x32xf32>
    %562 = arith.addf %558, %561 : vector<6x32xf32>
    %563 = vector.extract_strided_slice %526 {offsets = [3, 0], sizes = [1, 32], strides = [1, 1]} : vector<6x32xf32> to vector<1x32xf32>
    %564 = vector.broadcast %563 : vector<1x32xf32> to vector<6x32xf32>
    %565 = arith.mulf %564, %529 : vector<6x32xf32>
    %566 = vector.extract_strided_slice %529 {offsets = [3, 0], sizes = [1, 32], strides = [1, 1]} : vector<6x32xf32> to vector<1x32xf32>
    %567 = vector.broadcast %566 : vector<1x32xf32> to vector<6x32xf32>
    %568 = arith.mulf %567, %526 : vector<6x32xf32>
    %569 = arith.addf %565, %568 : vector<6x32xf32>
    %570 = vector.extract_strided_slice %526 {offsets = [4, 0], sizes = [1, 32], strides = [1, 1]} : vector<6x32xf32> to vector<1x32xf32>
    %571 = vector.broadcast %570 : vector<1x32xf32> to vector<6x32xf32>
    %572 = arith.mulf %571, %529 : vector<6x32xf32>
    %573 = vector.extract_strided_slice %529 {offsets = [4, 0], sizes = [1, 32], strides = [1, 1]} : vector<6x32xf32> to vector<1x32xf32>
    %574 = vector.broadcast %573 : vector<1x32xf32> to vector<6x32xf32>
    %575 = arith.mulf %574, %526 : vector<6x32xf32>
    %576 = arith.addf %572, %575 : vector<6x32xf32>
    %577 = vector.extract_strided_slice %526 {offsets = [5, 0], sizes = [1, 32], strides = [1, 1]} : vector<6x32xf32> to vector<1x32xf32>
    %578 = vector.broadcast %577 : vector<1x32xf32> to vector<6x32xf32>
    %579 = arith.mulf %578, %529 : vector<6x32xf32>
    %580 = vector.extract_strided_slice %529 {offsets = [5, 0], sizes = [1, 32], strides = [1, 1]} : vector<6x32xf32> to vector<1x32xf32>
    %581 = vector.broadcast %580 : vector<1x32xf32> to vector<6x32xf32>
    %582 = arith.mulf %581, %526 : vector<6x32xf32>
    %583 = arith.addf %579, %582 : vector<6x32xf32>
    %584 = tpu.concatenate %548, %555, %562, %569, %576, %583 in 0 : vector<6x32xf32>, vector<6x32xf32>, vector<6x32xf32>, vector<6x32xf32>, vector<6x32xf32>, vector<6x32xf32> -> vector<36x32xf32>
    %585 = arith.addf %541, %584 : vector<36x32xf32>
    %586 = tpu.concatenate %531, %536, %585 in 0 : vector<1x32xf32>, vector<6x32xf32>, vector<36x32xf32> -> vector<43x32xf32>
    %587 = vector.extract_strided_slice %30 {offsets = [0, 0], sizes = [1, 3], strides = [1, 1]} : vector<43x3xf32> to vector<1x3xf32>
    %588 = vector.extract_strided_slice %30 {offsets = [1, 0], sizes = [6, 3], strides = [1, 1]} : vector<43x3xf32> to vector<6x3xf32>
    %589 = vector.extract_strided_slice %30 {offsets = [7, 0], sizes = [36, 3], strides = [1, 1]} : vector<43x3xf32> to vector<36x3xf32>
    %590 = vector.extract_strided_slice %524 {offsets = [0, 0], sizes = [1, 3], strides = [1, 1]} : vector<43x3xf32> to vector<1x3xf32>
    %591 = vector.extract_strided_slice %524 {offsets = [1, 0], sizes = [6, 3], strides = [1, 1]} : vector<43x3xf32> to vector<6x3xf32>
    %592 = vector.extract_strided_slice %524 {offsets = [7, 0], sizes = [36, 3], strides = [1, 1]} : vector<43x3xf32> to vector<36x3xf32>
    %593 = arith.mulf %587, %590 : vector<1x3xf32>
    %594 = vector.broadcast %587 : vector<1x3xf32> to vector<6x3xf32>
    %595 = arith.mulf %594, %591 : vector<6x3xf32>
    %596 = vector.broadcast %590 : vector<1x3xf32> to vector<6x3xf32>
    %597 = arith.mulf %596, %588 : vector<6x3xf32>
    %598 = arith.addf %595, %597 : vector<6x3xf32>
    %599 = vector.broadcast %587 : vector<1x3xf32> to vector<36x3xf32>
    %600 = arith.mulf %599, %592 : vector<36x3xf32>
    %601 = vector.broadcast %590 : vector<1x3xf32> to vector<36x3xf32>
    %602 = arith.mulf %601, %589 : vector<36x3xf32>
    %603 = arith.addf %600, %602 : vector<36x3xf32>
    %604 = vector.extract_strided_slice %588 {offsets = [0, 0], sizes = [1, 3], strides = [1, 1]} : vector<6x3xf32> to vector<1x3xf32>
    %605 = vector.broadcast %604 : vector<1x3xf32> to vector<6x3xf32>
    %606 = arith.mulf %605, %591 : vector<6x3xf32>
    %607 = vector.extract_strided_slice %591 {offsets = [0, 0], sizes = [1, 3], strides = [1, 1]} : vector<6x3xf32> to vector<1x3xf32>
    %608 = vector.broadcast %607 : vector<1x3xf32> to vector<6x3xf32>
    %609 = arith.mulf %608, %588 : vector<6x3xf32>
    %610 = arith.addf %606, %609 : vector<6x3xf32>
    %611 = vector.extract_strided_slice %588 {offsets = [1, 0], sizes = [1, 3], strides = [1, 1]} : vector<6x3xf32> to vector<1x3xf32>
    %612 = vector.broadcast %611 : vector<1x3xf32> to vector<6x3xf32>
    %613 = arith.mulf %612, %591 : vector<6x3xf32>
    %614 = vector.extract_strided_slice %591 {offsets = [1, 0], sizes = [1, 3], strides = [1, 1]} : vector<6x3xf32> to vector<1x3xf32>
    %615 = vector.broadcast %614 : vector<1x3xf32> to vector<6x3xf32>
    %616 = arith.mulf %615, %588 : vector<6x3xf32>
    %617 = arith.addf %613, %616 : vector<6x3xf32>
    %618 = vector.extract_strided_slice %588 {offsets = [2, 0], sizes = [1, 3], strides = [1, 1]} : vector<6x3xf32> to vector<1x3xf32>
    %619 = vector.broadcast %618 : vector<1x3xf32> to vector<6x3xf32>
    %620 = arith.mulf %619, %591 : vector<6x3xf32>
    %621 = vector.extract_strided_slice %591 {offsets = [2, 0], sizes = [1, 3], strides = [1, 1]} : vector<6x3xf32> to vector<1x3xf32>
    %622 = vector.broadcast %621 : vector<1x3xf32> to vector<6x3xf32>
    %623 = arith.mulf %622, %588 : vector<6x3xf32>
    %624 = arith.addf %620, %623 : vector<6x3xf32>
    %625 = vector.extract_strided_slice %588 {offsets = [3, 0], sizes = [1, 3], strides = [1, 1]} : vector<6x3xf32> to vector<1x3xf32>
    %626 = vector.broadcast %625 : vector<1x3xf32> to vector<6x3xf32>
    %627 = arith.mulf %626, %591 : vector<6x3xf32>
    %628 = vector.extract_strided_slice %591 {offsets = [3, 0], sizes = [1, 3], strides = [1, 1]} : vector<6x3xf32> to vector<1x3xf32>
    %629 = vector.broadcast %628 : vector<1x3xf32> to vector<6x3xf32>
    %630 = arith.mulf %629, %588 : vector<6x3xf32>
    %631 = arith.addf %627, %630 : vector<6x3xf32>
    %632 = vector.extract_strided_slice %588 {offsets = [4, 0], sizes = [1, 3], strides = [1, 1]} : vector<6x3xf32> to vector<1x3xf32>
    %633 = vector.broadcast %632 : vector<1x3xf32> to vector<6x3xf32>
    %634 = arith.mulf %633, %591 : vector<6x3xf32>
    %635 = vector.extract_strided_slice %591 {offsets = [4, 0], sizes = [1, 3], strides = [1, 1]} : vector<6x3xf32> to vector<1x3xf32>
    %636 = vector.broadcast %635 : vector<1x3xf32> to vector<6x3xf32>
    %637 = arith.mulf %636, %588 : vector<6x3xf32>
    %638 = arith.addf %634, %637 : vector<6x3xf32>
    %639 = vector.extract_strided_slice %588 {offsets = [5, 0], sizes = [1, 3], strides = [1, 1]} : vector<6x3xf32> to vector<1x3xf32>
    %640 = vector.broadcast %639 : vector<1x3xf32> to vector<6x3xf32>
    %641 = arith.mulf %640, %591 : vector<6x3xf32>
    %642 = vector.extract_strided_slice %591 {offsets = [5, 0], sizes = [1, 3], strides = [1, 1]} : vector<6x3xf32> to vector<1x3xf32>
    %643 = vector.broadcast %642 : vector<1x3xf32> to vector<6x3xf32>
    %644 = arith.mulf %643, %588 : vector<6x3xf32>
    %645 = arith.addf %641, %644 : vector<6x3xf32>
    %646 = tpu.concatenate %610, %617, %624, %631, %638, %645 in 0 : vector<6x3xf32>, vector<6x3xf32>, vector<6x3xf32>, vector<6x3xf32>, vector<6x3xf32>, vector<6x3xf32> -> vector<36x3xf32>
    %647 = arith.addf %603, %646 : vector<36x3xf32>
    %648 = tpu.concatenate %593, %598, %647 in 0 : vector<1x3xf32>, vector<6x3xf32>, vector<36x3xf32> -> vector<43x3xf32>
    %649 = tpu.concatenate %586, %648, %277 in 1 : vector<43x32xf32>, vector<43x3xf32>, vector<43x32xf32> -> vector<43x67xf32>
    %c216 = arith.constant 216 : index
    %c0_57 = arith.constant 0 : index
    %650 = vector.load %arg1[%c216, %c0_57] : memref<424x128xf32, #tpu.memory_space<vmem>>, vector<67x32xf32>
    %cst_58 = arith.constant dense<0.000000e+00> : vector<43x32xf32>
    %651 = tpu.matmul %649, %650, %cst_58 {dimension_numbers = #tpu.dot_dimension_numbers<[1], [0], [0], [1], [0, 0, 1, 1], [], []>} : vector<43x67xf32>, vector<67x32xf32>, vector<43x32xf32> -> vector<43x32xf32>
    %c5 = arith.constant 5 : index
    %c0_59 = arith.constant 0 : index
    %652 = vector.load %arg2[%c5, %c0_59] : memref<8x128xf32, #tpu.memory_space<vmem>>, vector<1x32xf32>
    %653 = vector.broadcast %35 : vector<43x1xf32> to vector<43x32xf32>
    %654 = vector.broadcast %652 : vector<1x32xf32> to vector<43x32xf32>
    %655 = arith.mulf %653, %654 : vector<43x32xf32>
    %656 = arith.addf %651, %655 : vector<43x32xf32>
    %657 = vector.extract_strided_slice %656 {offsets = [0, 0], sizes = [1, 32], strides = [1, 1]} : vector<43x32xf32> to vector<1x32xf32>
    %658 = vector.extract_strided_slice %656 {offsets = [1, 0], sizes = [6, 32], strides = [1, 1]} : vector<43x32xf32> to vector<6x32xf32>
    %659 = vector.extract_strided_slice %656 {offsets = [7, 0], sizes = [36, 32], strides = [1, 1]} : vector<43x32xf32> to vector<36x32xf32>
    %660 = math.absf %657 : vector<1x32xf32>
    %cst_60 = arith.constant 0.000000e+00 : f32
    %661 = vector.broadcast %cst_60 : f32 to vector<1x32xf32>
    %662 = arith.subf %661, %660 : vector<1x32xf32>
    %663 = math.exp %662 : vector<1x32xf32>
    %cst_61 = arith.constant 0.000000e+00 : f32
    %664 = vector.broadcast %cst_61 : f32 to vector<1x32xf32>
    %665 = arith.maximumf %657, %664 : vector<1x32xf32>
    %cst_62 = arith.constant 1.000000e+00 : f32
    %666 = vector.broadcast %cst_62 : f32 to vector<1x32xf32>
    %667 = arith.addf %666, %663 : vector<1x32xf32>
    %668 = math.log %667 : vector<1x32xf32>
    %669 = arith.addf %665, %668 : vector<1x32xf32>
    %cst_63 = arith.constant 1.000000e+00 : f32
    %670 = vector.broadcast %cst_63 : f32 to vector<1x32xf32>
    %671 = arith.addf %670, %663 : vector<1x32xf32>
    %cst_64 = arith.constant 1.000000e+00 : f32
    %672 = vector.broadcast %cst_64 : f32 to vector<1x32xf32>
    %673 = arith.divf %672, %671 : vector<1x32xf32>
    %cst_65 = arith.constant 0.000000e+00 : f32
    %674 = vector.broadcast %cst_65 : f32 to vector<1x32xf32>
    %675 = arith.cmpf oge, %657, %674 : vector<1x32xf32>
    %676 = arith.mulf %663, %673 : vector<1x32xf32>
    %677 = arith.select %675, %673, %676 : vector<1x32xi1>, vector<1x32xf32>
    %cst_66 = arith.constant 1.000000e+00 : f32
    %678 = vector.broadcast %cst_66 : f32 to vector<1x32xf32>
    %679 = arith.subf %678, %677 : vector<1x32xf32>
    %680 = arith.mulf %677, %679 : vector<1x32xf32>
    %681 = vector.broadcast %677 : vector<1x32xf32> to vector<6x32xf32>
    %682 = arith.mulf %681, %658 : vector<6x32xf32>
    %683 = vector.broadcast %677 : vector<1x32xf32> to vector<36x32xf32>
    %684 = arith.mulf %683, %659 : vector<36x32xf32>
    %685 = vector.extract_strided_slice %658 {offsets = [0, 0], sizes = [1, 32], strides = [1, 1]} : vector<6x32xf32> to vector<1x32xf32>
    %686 = vector.broadcast %685 : vector<1x32xf32> to vector<6x32xf32>
    %687 = arith.mulf %686, %658 : vector<6x32xf32>
    %688 = vector.extract_strided_slice %658 {offsets = [1, 0], sizes = [1, 32], strides = [1, 1]} : vector<6x32xf32> to vector<1x32xf32>
    %689 = vector.broadcast %688 : vector<1x32xf32> to vector<6x32xf32>
    %690 = arith.mulf %689, %658 : vector<6x32xf32>
    %691 = vector.extract_strided_slice %658 {offsets = [2, 0], sizes = [1, 32], strides = [1, 1]} : vector<6x32xf32> to vector<1x32xf32>
    %692 = vector.broadcast %691 : vector<1x32xf32> to vector<6x32xf32>
    %693 = arith.mulf %692, %658 : vector<6x32xf32>
    %694 = vector.extract_strided_slice %658 {offsets = [3, 0], sizes = [1, 32], strides = [1, 1]} : vector<6x32xf32> to vector<1x32xf32>
    %695 = vector.broadcast %694 : vector<1x32xf32> to vector<6x32xf32>
    %696 = arith.mulf %695, %658 : vector<6x32xf32>
    %697 = vector.extract_strided_slice %658 {offsets = [4, 0], sizes = [1, 32], strides = [1, 1]} : vector<6x32xf32> to vector<1x32xf32>
    %698 = vector.broadcast %697 : vector<1x32xf32> to vector<6x32xf32>
    %699 = arith.mulf %698, %658 : vector<6x32xf32>
    %700 = vector.extract_strided_slice %658 {offsets = [5, 0], sizes = [1, 32], strides = [1, 1]} : vector<6x32xf32> to vector<1x32xf32>
    %701 = vector.broadcast %700 : vector<1x32xf32> to vector<6x32xf32>
    %702 = arith.mulf %701, %658 : vector<6x32xf32>
    %703 = tpu.concatenate %687, %690, %693, %696, %699, %702 in 0 : vector<6x32xf32>, vector<6x32xf32>, vector<6x32xf32>, vector<6x32xf32>, vector<6x32xf32>, vector<6x32xf32> -> vector<36x32xf32>
    %704 = vector.broadcast %680 : vector<1x32xf32> to vector<36x32xf32>
    %705 = arith.mulf %704, %703 : vector<36x32xf32>
    %706 = arith.addf %684, %705 : vector<36x32xf32>
    %707 = tpu.concatenate %669, %682, %706 in 0 : vector<1x32xf32>, vector<6x32xf32>, vector<36x32xf32> -> vector<43x32xf32>
    %c288 = arith.constant 288 : index
    %c0_67 = arith.constant 0 : index
    %708 = vector.load %arg1[%c288, %c0_67] : memref<424x128xf32, #tpu.memory_space<vmem>>, vector<64x36xf32>
    %cst_68 = arith.constant dense<0.000000e+00> : vector<43x36xf32>
    %709 = tpu.matmul %521, %708, %cst_68 {dimension_numbers = #tpu.dot_dimension_numbers<[1], [0], [0], [1], [0, 0, 1, 1], [], []>} : vector<43x64xf32>, vector<64x36xf32>, vector<43x36xf32> -> vector<43x36xf32>
    %c6 = arith.constant 6 : index
    %c0_69 = arith.constant 0 : index
    %710 = vector.load %arg2[%c6, %c0_69] : memref<8x128xf32, #tpu.memory_space<vmem>>, vector<1x36xf32>
    %711 = vector.broadcast %35 : vector<43x1xf32> to vector<43x36xf32>
    %712 = vector.broadcast %710 : vector<1x36xf32> to vector<43x36xf32>
    %713 = arith.mulf %711, %712 : vector<43x36xf32>
    %714 = arith.addf %709, %713 : vector<43x36xf32>
    %715 = vector.extract_strided_slice %714 {offsets = [0, 0], sizes = [43, 32], strides = [1, 1]} : vector<43x36xf32> to vector<43x32xf32>
    %716 = vector.extract_strided_slice %714 {offsets = [0, 32], sizes = [43, 3], strides = [1, 1]} : vector<43x36xf32> to vector<43x3xf32>
    %717 = vector.extract_strided_slice %714 {offsets = [0, 35], sizes = [43, 1], strides = [1, 1]} : vector<43x36xf32> to vector<43x1xf32>
    %718 = vector.extract_strided_slice %707 {offsets = [0, 0], sizes = [1, 32], strides = [1, 1]} : vector<43x32xf32> to vector<1x32xf32>
    %719 = vector.extract_strided_slice %707 {offsets = [1, 0], sizes = [6, 32], strides = [1, 1]} : vector<43x32xf32> to vector<6x32xf32>
    %720 = vector.extract_strided_slice %707 {offsets = [7, 0], sizes = [36, 32], strides = [1, 1]} : vector<43x32xf32> to vector<36x32xf32>
    %721 = vector.extract_strided_slice %715 {offsets = [0, 0], sizes = [1, 32], strides = [1, 1]} : vector<43x32xf32> to vector<1x32xf32>
    %722 = vector.extract_strided_slice %715 {offsets = [1, 0], sizes = [6, 32], strides = [1, 1]} : vector<43x32xf32> to vector<6x32xf32>
    %723 = vector.extract_strided_slice %715 {offsets = [7, 0], sizes = [36, 32], strides = [1, 1]} : vector<43x32xf32> to vector<36x32xf32>
    %724 = arith.mulf %718, %721 : vector<1x32xf32>
    %725 = vector.broadcast %718 : vector<1x32xf32> to vector<6x32xf32>
    %726 = arith.mulf %725, %722 : vector<6x32xf32>
    %727 = vector.broadcast %721 : vector<1x32xf32> to vector<6x32xf32>
    %728 = arith.mulf %727, %719 : vector<6x32xf32>
    %729 = arith.addf %726, %728 : vector<6x32xf32>
    %730 = vector.broadcast %718 : vector<1x32xf32> to vector<36x32xf32>
    %731 = arith.mulf %730, %723 : vector<36x32xf32>
    %732 = vector.broadcast %721 : vector<1x32xf32> to vector<36x32xf32>
    %733 = arith.mulf %732, %720 : vector<36x32xf32>
    %734 = arith.addf %731, %733 : vector<36x32xf32>
    %735 = vector.extract_strided_slice %719 {offsets = [0, 0], sizes = [1, 32], strides = [1, 1]} : vector<6x32xf32> to vector<1x32xf32>
    %736 = vector.broadcast %735 : vector<1x32xf32> to vector<6x32xf32>
    %737 = arith.mulf %736, %722 : vector<6x32xf32>
    %738 = vector.extract_strided_slice %722 {offsets = [0, 0], sizes = [1, 32], strides = [1, 1]} : vector<6x32xf32> to vector<1x32xf32>
    %739 = vector.broadcast %738 : vector<1x32xf32> to vector<6x32xf32>
    %740 = arith.mulf %739, %719 : vector<6x32xf32>
    %741 = arith.addf %737, %740 : vector<6x32xf32>
    %742 = vector.extract_strided_slice %719 {offsets = [1, 0], sizes = [1, 32], strides = [1, 1]} : vector<6x32xf32> to vector<1x32xf32>
    %743 = vector.broadcast %742 : vector<1x32xf32> to vector<6x32xf32>
    %744 = arith.mulf %743, %722 : vector<6x32xf32>
    %745 = vector.extract_strided_slice %722 {offsets = [1, 0], sizes = [1, 32], strides = [1, 1]} : vector<6x32xf32> to vector<1x32xf32>
    %746 = vector.broadcast %745 : vector<1x32xf32> to vector<6x32xf32>
    %747 = arith.mulf %746, %719 : vector<6x32xf32>
    %748 = arith.addf %744, %747 : vector<6x32xf32>
    %749 = vector.extract_strided_slice %719 {offsets = [2, 0], sizes = [1, 32], strides = [1, 1]} : vector<6x32xf32> to vector<1x32xf32>
    %750 = vector.broadcast %749 : vector<1x32xf32> to vector<6x32xf32>
    %751 = arith.mulf %750, %722 : vector<6x32xf32>
    %752 = vector.extract_strided_slice %722 {offsets = [2, 0], sizes = [1, 32], strides = [1, 1]} : vector<6x32xf32> to vector<1x32xf32>
    %753 = vector.broadcast %752 : vector<1x32xf32> to vector<6x32xf32>
    %754 = arith.mulf %753, %719 : vector<6x32xf32>
    %755 = arith.addf %751, %754 : vector<6x32xf32>
    %756 = vector.extract_strided_slice %719 {offsets = [3, 0], sizes = [1, 32], strides = [1, 1]} : vector<6x32xf32> to vector<1x32xf32>
    %757 = vector.broadcast %756 : vector<1x32xf32> to vector<6x32xf32>
    %758 = arith.mulf %757, %722 : vector<6x32xf32>
    %759 = vector.extract_strided_slice %722 {offsets = [3, 0], sizes = [1, 32], strides = [1, 1]} : vector<6x32xf32> to vector<1x32xf32>
    %760 = vector.broadcast %759 : vector<1x32xf32> to vector<6x32xf32>
    %761 = arith.mulf %760, %719 : vector<6x32xf32>
    %762 = arith.addf %758, %761 : vector<6x32xf32>
    %763 = vector.extract_strided_slice %719 {offsets = [4, 0], sizes = [1, 32], strides = [1, 1]} : vector<6x32xf32> to vector<1x32xf32>
    %764 = vector.broadcast %763 : vector<1x32xf32> to vector<6x32xf32>
    %765 = arith.mulf %764, %722 : vector<6x32xf32>
    %766 = vector.extract_strided_slice %722 {offsets = [4, 0], sizes = [1, 32], strides = [1, 1]} : vector<6x32xf32> to vector<1x32xf32>
    %767 = vector.broadcast %766 : vector<1x32xf32> to vector<6x32xf32>
    %768 = arith.mulf %767, %719 : vector<6x32xf32>
    %769 = arith.addf %765, %768 : vector<6x32xf32>
    %770 = vector.extract_strided_slice %719 {offsets = [5, 0], sizes = [1, 32], strides = [1, 1]} : vector<6x32xf32> to vector<1x32xf32>
    %771 = vector.broadcast %770 : vector<1x32xf32> to vector<6x32xf32>
    %772 = arith.mulf %771, %722 : vector<6x32xf32>
    %773 = vector.extract_strided_slice %722 {offsets = [5, 0], sizes = [1, 32], strides = [1, 1]} : vector<6x32xf32> to vector<1x32xf32>
    %774 = vector.broadcast %773 : vector<1x32xf32> to vector<6x32xf32>
    %775 = arith.mulf %774, %719 : vector<6x32xf32>
    %776 = arith.addf %772, %775 : vector<6x32xf32>
    %777 = tpu.concatenate %741, %748, %755, %762, %769, %776 in 0 : vector<6x32xf32>, vector<6x32xf32>, vector<6x32xf32>, vector<6x32xf32>, vector<6x32xf32>, vector<6x32xf32> -> vector<36x32xf32>
    %778 = arith.addf %734, %777 : vector<36x32xf32>
    %779 = tpu.concatenate %724, %729, %778 in 0 : vector<1x32xf32>, vector<6x32xf32>, vector<36x32xf32> -> vector<43x32xf32>
    %780 = vector.extract_strided_slice %30 {offsets = [0, 0], sizes = [1, 3], strides = [1, 1]} : vector<43x3xf32> to vector<1x3xf32>
    %781 = vector.extract_strided_slice %30 {offsets = [1, 0], sizes = [6, 3], strides = [1, 1]} : vector<43x3xf32> to vector<6x3xf32>
    %782 = vector.extract_strided_slice %30 {offsets = [7, 0], sizes = [36, 3], strides = [1, 1]} : vector<43x3xf32> to vector<36x3xf32>
    %783 = vector.extract_strided_slice %716 {offsets = [0, 0], sizes = [1, 3], strides = [1, 1]} : vector<43x3xf32> to vector<1x3xf32>
    %784 = vector.extract_strided_slice %716 {offsets = [1, 0], sizes = [6, 3], strides = [1, 1]} : vector<43x3xf32> to vector<6x3xf32>
    %785 = vector.extract_strided_slice %716 {offsets = [7, 0], sizes = [36, 3], strides = [1, 1]} : vector<43x3xf32> to vector<36x3xf32>
    %786 = arith.mulf %780, %783 : vector<1x3xf32>
    %787 = vector.broadcast %780 : vector<1x3xf32> to vector<6x3xf32>
    %788 = arith.mulf %787, %784 : vector<6x3xf32>
    %789 = vector.broadcast %783 : vector<1x3xf32> to vector<6x3xf32>
    %790 = arith.mulf %789, %781 : vector<6x3xf32>
    %791 = arith.addf %788, %790 : vector<6x3xf32>
    %792 = vector.broadcast %780 : vector<1x3xf32> to vector<36x3xf32>
    %793 = arith.mulf %792, %785 : vector<36x3xf32>
    %794 = vector.broadcast %783 : vector<1x3xf32> to vector<36x3xf32>
    %795 = arith.mulf %794, %782 : vector<36x3xf32>
    %796 = arith.addf %793, %795 : vector<36x3xf32>
    %797 = vector.extract_strided_slice %781 {offsets = [0, 0], sizes = [1, 3], strides = [1, 1]} : vector<6x3xf32> to vector<1x3xf32>
    %798 = vector.broadcast %797 : vector<1x3xf32> to vector<6x3xf32>
    %799 = arith.mulf %798, %784 : vector<6x3xf32>
    %800 = vector.extract_strided_slice %784 {offsets = [0, 0], sizes = [1, 3], strides = [1, 1]} : vector<6x3xf32> to vector<1x3xf32>
    %801 = vector.broadcast %800 : vector<1x3xf32> to vector<6x3xf32>
    %802 = arith.mulf %801, %781 : vector<6x3xf32>
    %803 = arith.addf %799, %802 : vector<6x3xf32>
    %804 = vector.extract_strided_slice %781 {offsets = [1, 0], sizes = [1, 3], strides = [1, 1]} : vector<6x3xf32> to vector<1x3xf32>
    %805 = vector.broadcast %804 : vector<1x3xf32> to vector<6x3xf32>
    %806 = arith.mulf %805, %784 : vector<6x3xf32>
    %807 = vector.extract_strided_slice %784 {offsets = [1, 0], sizes = [1, 3], strides = [1, 1]} : vector<6x3xf32> to vector<1x3xf32>
    %808 = vector.broadcast %807 : vector<1x3xf32> to vector<6x3xf32>
    %809 = arith.mulf %808, %781 : vector<6x3xf32>
    %810 = arith.addf %806, %809 : vector<6x3xf32>
    %811 = vector.extract_strided_slice %781 {offsets = [2, 0], sizes = [1, 3], strides = [1, 1]} : vector<6x3xf32> to vector<1x3xf32>
    %812 = vector.broadcast %811 : vector<1x3xf32> to vector<6x3xf32>
    %813 = arith.mulf %812, %784 : vector<6x3xf32>
    %814 = vector.extract_strided_slice %784 {offsets = [2, 0], sizes = [1, 3], strides = [1, 1]} : vector<6x3xf32> to vector<1x3xf32>
    %815 = vector.broadcast %814 : vector<1x3xf32> to vector<6x3xf32>
    %816 = arith.mulf %815, %781 : vector<6x3xf32>
    %817 = arith.addf %813, %816 : vector<6x3xf32>
    %818 = vector.extract_strided_slice %781 {offsets = [3, 0], sizes = [1, 3], strides = [1, 1]} : vector<6x3xf32> to vector<1x3xf32>
    %819 = vector.broadcast %818 : vector<1x3xf32> to vector<6x3xf32>
    %820 = arith.mulf %819, %784 : vector<6x3xf32>
    %821 = vector.extract_strided_slice %784 {offsets = [3, 0], sizes = [1, 3], strides = [1, 1]} : vector<6x3xf32> to vector<1x3xf32>
    %822 = vector.broadcast %821 : vector<1x3xf32> to vector<6x3xf32>
    %823 = arith.mulf %822, %781 : vector<6x3xf32>
    %824 = arith.addf %820, %823 : vector<6x3xf32>
    %825 = vector.extract_strided_slice %781 {offsets = [4, 0], sizes = [1, 3], strides = [1, 1]} : vector<6x3xf32> to vector<1x3xf32>
    %826 = vector.broadcast %825 : vector<1x3xf32> to vector<6x3xf32>
    %827 = arith.mulf %826, %784 : vector<6x3xf32>
    %828 = vector.extract_strided_slice %784 {offsets = [4, 0], sizes = [1, 3], strides = [1, 1]} : vector<6x3xf32> to vector<1x3xf32>
    %829 = vector.broadcast %828 : vector<1x3xf32> to vector<6x3xf32>
    %830 = arith.mulf %829, %781 : vector<6x3xf32>
    %831 = arith.addf %827, %830 : vector<6x3xf32>
    %832 = vector.extract_strided_slice %781 {offsets = [5, 0], sizes = [1, 3], strides = [1, 1]} : vector<6x3xf32> to vector<1x3xf32>
    %833 = vector.broadcast %832 : vector<1x3xf32> to vector<6x3xf32>
    %834 = arith.mulf %833, %784 : vector<6x3xf32>
    %835 = vector.extract_strided_slice %784 {offsets = [5, 0], sizes = [1, 3], strides = [1, 1]} : vector<6x3xf32> to vector<1x3xf32>
    %836 = vector.broadcast %835 : vector<1x3xf32> to vector<6x3xf32>
    %837 = arith.mulf %836, %781 : vector<6x3xf32>
    %838 = arith.addf %834, %837 : vector<6x3xf32>
    %839 = tpu.concatenate %803, %810, %817, %824, %831, %838 in 0 : vector<6x3xf32>, vector<6x3xf32>, vector<6x3xf32>, vector<6x3xf32>, vector<6x3xf32>, vector<6x3xf32> -> vector<36x3xf32>
    %840 = arith.addf %796, %839 : vector<36x3xf32>
    %841 = tpu.concatenate %786, %791, %840 in 0 : vector<1x3xf32>, vector<6x3xf32>, vector<36x3xf32> -> vector<43x3xf32>
    %842 = tpu.concatenate %779, %841, %522 in 1 : vector<43x32xf32>, vector<43x3xf32>, vector<43x32xf32> -> vector<43x67xf32>
    %c352 = arith.constant 352 : index
    %c0_70 = arith.constant 0 : index
    %843 = vector.load %arg1[%c352, %c0_70] : memref<424x128xf32, #tpu.memory_space<vmem>>, vector<67x1xf32>
    %cst_71 = arith.constant dense<0.000000e+00> : vector<43x1xf32>
    %844 = tpu.matmul %842, %843, %cst_71 {dimension_numbers = #tpu.dot_dimension_numbers<[1], [0], [0], [1], [0, 0, 1, 1], [], []>} : vector<43x67xf32>, vector<67x1xf32>, vector<43x1xf32> -> vector<43x1xf32>
    %c7 = arith.constant 7 : index
    %c0_72 = arith.constant 0 : index
    %845 = vector.load %arg2[%c7, %c0_72] : memref<8x128xf32, #tpu.memory_space<vmem>>, vector<1x1xf32>
    %846 = vector.broadcast %845 : vector<1x1xf32> to vector<43x1xf32>
    %847 = arith.mulf %35, %846 : vector<43x1xf32>
    %848 = arith.addf %844, %847 : vector<43x1xf32>
    %849 = vector.extract_strided_slice %848 {offsets = [0, 0], sizes = [1, 1], strides = [1, 1]} : vector<43x1xf32> to vector<1x1xf32>
    %850 = vector.extract_strided_slice %848 {offsets = [1, 0], sizes = [6, 1], strides = [1, 1]} : vector<43x1xf32> to vector<6x1xf32>
    %851 = vector.extract_strided_slice %848 {offsets = [7, 0], sizes = [36, 1], strides = [1, 1]} : vector<43x1xf32> to vector<36x1xf32>
    %852 = math.absf %849 : vector<1x1xf32>
    %cst_73 = arith.constant 0.000000e+00 : f32
    %853 = vector.broadcast %cst_73 : f32 to vector<1x1xf32>
    %854 = arith.subf %853, %852 : vector<1x1xf32>
    %855 = math.exp %854 : vector<1x1xf32>
    %cst_74 = arith.constant 0.000000e+00 : f32
    %856 = vector.broadcast %cst_74 : f32 to vector<1x1xf32>
    %857 = arith.maximumf %849, %856 : vector<1x1xf32>
    %cst_75 = arith.constant 1.000000e+00 : f32
    %858 = vector.broadcast %cst_75 : f32 to vector<1x1xf32>
    %859 = arith.addf %858, %855 : vector<1x1xf32>
    %860 = math.log %859 : vector<1x1xf32>
    %861 = arith.addf %857, %860 : vector<1x1xf32>
    %cst_76 = arith.constant 1.000000e+00 : f32
    %862 = vector.broadcast %cst_76 : f32 to vector<1x1xf32>
    %863 = arith.addf %862, %855 : vector<1x1xf32>
    %cst_77 = arith.constant 1.000000e+00 : f32
    %864 = vector.broadcast %cst_77 : f32 to vector<1x1xf32>
    %865 = arith.divf %864, %863 : vector<1x1xf32>
    %cst_78 = arith.constant 0.000000e+00 : f32
    %866 = vector.broadcast %cst_78 : f32 to vector<1x1xf32>
    %867 = arith.cmpf oge, %849, %866 : vector<1x1xf32>
    %868 = arith.mulf %855, %865 : vector<1x1xf32>
    %869 = arith.select %867, %865, %868 : vector<1x1xi1>, vector<1x1xf32>
    %cst_79 = arith.constant 1.000000e+00 : f32
    %870 = vector.broadcast %cst_79 : f32 to vector<1x1xf32>
    %871 = arith.subf %870, %869 : vector<1x1xf32>
    %872 = arith.mulf %869, %871 : vector<1x1xf32>
    %873 = vector.broadcast %869 : vector<1x1xf32> to vector<6x1xf32>
    %874 = arith.mulf %873, %850 : vector<6x1xf32>
    %875 = vector.broadcast %869 : vector<1x1xf32> to vector<36x1xf32>
    %876 = arith.mulf %875, %851 : vector<36x1xf32>
    %877 = vector.extract_strided_slice %850 {offsets = [0, 0], sizes = [1, 1], strides = [1, 1]} : vector<6x1xf32> to vector<1x1xf32>
    %878 = vector.broadcast %877 : vector<1x1xf32> to vector<6x1xf32>
    %879 = arith.mulf %878, %850 : vector<6x1xf32>
    %880 = vector.extract_strided_slice %850 {offsets = [1, 0], sizes = [1, 1], strides = [1, 1]} : vector<6x1xf32> to vector<1x1xf32>
    %881 = vector.broadcast %880 : vector<1x1xf32> to vector<6x1xf32>
    %882 = arith.mulf %881, %850 : vector<6x1xf32>
    %883 = vector.extract_strided_slice %850 {offsets = [2, 0], sizes = [1, 1], strides = [1, 1]} : vector<6x1xf32> to vector<1x1xf32>
    %884 = vector.broadcast %883 : vector<1x1xf32> to vector<6x1xf32>
    %885 = arith.mulf %884, %850 : vector<6x1xf32>
    %886 = vector.extract_strided_slice %850 {offsets = [3, 0], sizes = [1, 1], strides = [1, 1]} : vector<6x1xf32> to vector<1x1xf32>
    %887 = vector.broadcast %886 : vector<1x1xf32> to vector<6x1xf32>
    %888 = arith.mulf %887, %850 : vector<6x1xf32>
    %889 = vector.extract_strided_slice %850 {offsets = [4, 0], sizes = [1, 1], strides = [1, 1]} : vector<6x1xf32> to vector<1x1xf32>
    %890 = vector.broadcast %889 : vector<1x1xf32> to vector<6x1xf32>
    %891 = arith.mulf %890, %850 : vector<6x1xf32>
    %892 = vector.extract_strided_slice %850 {offsets = [5, 0], sizes = [1, 1], strides = [1, 1]} : vector<6x1xf32> to vector<1x1xf32>
    %893 = vector.broadcast %892 : vector<1x1xf32> to vector<6x1xf32>
    %894 = arith.mulf %893, %850 : vector<6x1xf32>
    %895 = tpu.concatenate %879, %882, %885, %888, %891, %894 in 0 : vector<6x1xf32>, vector<6x1xf32>, vector<6x1xf32>, vector<6x1xf32>, vector<6x1xf32>, vector<6x1xf32> -> vector<36x1xf32>
    %896 = vector.broadcast %872 : vector<1x1xf32> to vector<36x1xf32>
    %897 = arith.mulf %896, %895 : vector<36x1xf32>
    %898 = arith.addf %876, %897 : vector<36x1xf32>
    %899 = tpu.concatenate %861, %874, %898 in 0 : vector<1x1xf32>, vector<6x1xf32>, vector<36x1xf32> -> vector<43x1xf32>
    %900 = arith.subf %899, %717 : vector<43x1xf32>
    %901 = vector.shape_cast %900 : vector<43x1xf32> to vector<43x1xf32>
    %902 = vector.broadcast %901 : vector<43x1xf32> to vector<43x128xf32>
    %c0_80 = arith.constant 0 : index
    %c0_81 = arith.constant 0 : index
    %903 = vector.load %arg3[%c0_80, %c0_81] : memref<43x128xf32, #tpu.memory_space<vmem>>, vector<43x128xf32>
    tpu.vector_store %arg3[%c0_80, %c0_81], %902 {strides = array<i32>} : memref<43x128xf32, #tpu.memory_space<vmem>>, vector<43x128xf32>,
    return
  }
}

</mosaic_0001>

<llo_original>
// kernel: custom-call.11
$region0: #{custom-call.11}
  %s0 = inlined_call_operand.vmem [shape: f32[3,3], index: 0, kind: input, shape index: {}]
  %s1 = inlined_call_operand.vmem [shape: f32[3,3], index: 1, kind: output, shape index: {0}]
  %s2 = inlined_call_operand.hbm [shape: s32[3], index: 2, kind: output, shape index: {1}]
  %s3 = inlined_call_operand.vmem [shape: s32[3], index: 3, kind: output, shape index: {2}]
  %4 = xla_tuple %s1, %s2, %s3
  $region1: #{custom-call.11} parent=0
    #allocation0 [shape = 'u8[4096]{0}', space=vmem, size = 0x1000, scoped, tag = 'operand span for operand 0']
    #allocation1 [shape = 'u8[2048]{0}', space=vmem, size = 0x800, scoped, tag = 'packed  for operand 0']
    #allocation2 [shape = 'u8[4096]{0}', space=vmem, size = 0x1000, scoped, tag = 'operand span for operand 1']
    #allocation3 [shape = 'u8[2048]{0}', space=vmem, size = 0x800, scoped, tag = 'packed  for operand 1']
    #allocation4 [shape = 'u8[4096]{0}', space=vmem, size = 0x1000, scoped, tag = 'operand span for operand 2']
    #allocation5 [shape = 'u8[512]{0}', space=vmem, size = 0x400, scoped, tag = 'packed  for operand 2']
    #allocation6 [shape = 's32[1]{0}', space=sflag, size = 0x4, scoped, tag = 'scoped memory for custom-call.11']
    #allocation7 [shape = 'u8[4096]{0}', space=vmem, size = 0x1000, scoped, tag = 'operand span for operand 3']
    #allocation8 [shape = 'u8[512]{0}', space=vmem, size = 0x400, scoped, tag = 'packed  for operand 3']
    #allocation9 [shape = 's32[3,128]{1,0}', space=vmem, size = 0x1000, scoped, tag = 'scratch for permutations']
    %5 = vsyncpa [#allocation6], 0
    %p7 = scmp.gt.s32.totalorder 4, 0
    // Predicated region
    $region2: #{custom-call.11} parent=1 // pred_check
      %p8 = pneg %p7
    $region3: #{custom-call.11} parent=1 // pred_check_branch
      %10 = sbr.rel (%p8) target = $region5
    $region4: #{custom-call.11} parent=1 // pred_region
      %s11 = sshra.s32 4, 3
      %p12 = scmp.gt.s32.totalorder %s11, 0
      // Predicated region
      $region6: #{custom-call.11} parent=4 // pred_check
        %p13 = pneg %p12
      $region7: #{custom-call.11} parent=4 // pred_check_branch
        %15 = sbr.rel (%p13) target = $region9
      $region8: #{custom-call.11} parent=4 // pred_region
        %s16 = ssub.s32 %s11, 1
        %s17 = smul.u32 %s16, 128
        %s18 = sshra.s32 %s17, 4
        %s19 = scalar_lea.vmem %s0, %s18
        %v20 = vld [vmem:[%s0] sm:$0xff]
        // While loop
        $region10: #{custom-call.11} parent=8 // loop_pre_header
          _
        $region11: #{custom-call.11} parent=8 // loop_header
          %s21 = sphi %s0, %s43
          %s22 = sphi [#allocation1], %s44
          %v23 = vphi %v20, %v45
          %s24 = ssub.s32 %s19, 64
          %p25 = scmp.gt.s32.totalorder %s21, %s24
        $region12: #{custom-call.11} parent=8 // loop_header_branch
          %27 = sbr.rel (%p25) target = $region16
        $region13: #{custom-call.11} parent=8 // loop_body
          %28 = vst [vmem:[%s22] sm:$0xff] %v23
          %v29 = vld [vmem:[%s21 + $0x8] sm:$0xff]
          %30 = vst [vmem:[%s22 + $0x8] sm:$0xff] %v29
          %v31 = vld [vmem:[%s21 + $0x10] sm:$0xff]
          %32 = vst [vmem:[%s22 + $0x10] sm:$0xff] %v31
          %v33 = vld [vmem:[%s21 + $0x18] sm:$0xff]
          %34 = vst [vmem:[%s22 + $0x18] sm:$0xff] %v33
          %v35 = vld [vmem:[%s21 + $0x20] sm:$0xff]
          %36 = vst [vmem:[%s22 + $0x20] sm:$0xff] %v35
          %v37 = vld [vmem:[%s21 + $0x28] sm:$0xff]
          %38 = vst [vmem:[%s22 + $0x28] sm:$0xff] %v37
          %v39 = vld [vmem:[%s21 + $0x30] sm:$0xff]
          %40 = vst [vmem:[%s22 + $0x30] sm:$0xff] %v39
          %v41 = vld [vmem:[%s21 + $0x38] sm:$0xff]
          %42 = vst [vmem:[%s22 + $0x38] sm:$0xff] %v41
        $region14: #{custom-call.11} parent=8 // loop_footer
          %s43 = scalar_lea.vmem %s21, 64
          %s44 = scalar_lea.vmem %s22, 64
          %v45 = vld [vmem:[%s21 + $0x40] sm:$0xff]
        $region15: #{custom-call.11} parent=8 // loop_footer_branch
          %46 = sbr.rel target = $region11
        $region16: #{custom-call.11} parent=8 // loop_exit
          _
        // While loop
        $region17: #{custom-call.11} parent=8 // loop_pre_header
          _
        $region18: #{custom-call.11} parent=8 // loop_header
          %s47 = sphi %s21, %s55
          %s48 = sphi %s22, %s56
          %v49 = vphi %v23, %v49
          %p50 = scmp.gt.s32.totalorder %s47, %s19
        $region19: #{custom-call.11} parent=8 // loop_header_branch
          %52 = sbr.rel (%p50) target = $region23
        $region20: #{custom-call.11} parent=8 // loop_body
          %v53 = vld [vmem:[%s47] sm:$0xff]
          %54 = vst [vmem:[%s48] sm:$0xff] %v53
        $region21: #{custom-call.11} parent=8 // loop_footer
          %s55 = scalar_lea.vmem %s47, 8
          %s56 = scalar_lea.vmem %s48, 8
        $region22: #{custom-call.11} parent=8 // loop_footer_branch
          %57 = sbr.rel target = $region18
        $region23: #{custom-call.11} parent=8 // loop_exit
          _
      $region9: #{custom-call.11} parent=4 // pred_fallthru
        _
      %s58 = sand.u32 4, 7
      %s59 = sshllo.u32 0, %s58
      %s60 = smul.u32 %s11, 128
      %s61 = sshra.s32 %s60, 4
      %s62 = scalar_lea.vmem [#allocation1], %s61
      %s63 = smul.u32 %s11, 128
      %s64 = sshra.s32 %s63, 4
      %s65 = scalar_lea.vmem %s0, %s64
      %v66 = vld [vmem:[%s65] sm:%s59]
      %67 = vst [vmem:[%s62] sm:%s59] %v66
    $region5: #{custom-call.11} parent=1 // pred_fallthru
      _
    %s69 = sshllo.u32 0, 4
    %v70 = vld [vmem:[#allocation1] sm:%s69]
    %71 = vst [vmem:[#allocation0] sm:%s69] %v70
    %v72 = vld [vmem:[#allocation0] sm:$0xff]
    %73 = vst [vmem:[#allocation2] sm:$0xff] %v72
    %74 = vst [vmem:[#allocation4] sm:$0x1] 0
    %v75 = vlaneseq
    %v76 = vshrl.u32 %v75, 7
    %v77 = vmov %v76
    %79 = vst [vmem:[#allocation9] sm:$0xff] %v77
    loop: start=0, step=1, limit=3
    $region25: #{custom-call.11} parent=1 // loop_pre_header
      _
    $region26: #{custom-call.11} parent=1 // loop_header
      %s81 = sphi 0, %s85
      %p82 = scmp.ge.s32.totalorder %s81, 3
    $region27: #{custom-call.11} parent=1 // loop_header_branch
      %84 = sbr.rel (%p82) target = $region31
    $region28: #{custom-call.11} parent=1 // loop_body
      %v86 = vstv %s81
      %v87 = vlaneseq
      %v88 = vshrl.u32 %v87, 7
      %v89 = vmov %v88
      %v90 = vld [vmem:[#allocation2] sm:$0xff]
      %v91 = vand.u32 2147483647, %v90
      %v93 = vstv %s81
      %vm94 = vcmp.ge.s32.totalorder %v89, %v93
      %vm95 = vcmp.lt.s32.totalorder %v89, 3
      %vm96 = vmand %vm94, %vm95
      %vm97 = vcmp.lt.f32.partialorder -inf, %v91
      %vm98 = vmand %vm96, %vm97
      %v99 = vsel %vm98, %v89, %v86
      %v100 = vsel %vm98, %v91, -inf
      %v101 = vrot.slane %v100, 1
      %v102 = vrot.slane %v99, 1
      %vm103 = vcmp.ge.f32.partialorder %v101, %v100
      %v104 = vsel %vm103, %v101, %v100
      %v105 = vsel %vm103, %v102, %v99
      %v106 = vrot.slane %v101, 1
      %v107 = vrot.slane %v102, 1
      %vm108 = vcmp.ge.f32.partialorder %v106, %v104
      %v109 = vsel %vm108, %v106, %v104
      %v110 = vsel %vm108, %v107, %v105
      %v111 = vrot.slane %v106, 1
      %v112 = vrot.slane %v107, 1
      %vm113 = vcmp.ge.f32.partialorder %v111, %v109
      %v114 = vsel %vm113, %v111, %v109
      %v115 = vsel %vm113, %v112, %v110
      %v116 = vrot.slane %v111, 1
      %v117 = vrot.slane %v112, 1
      %vm118 = vcmp.ge.f32.partialorder %v116, %v114
      %v119 = vsel %vm118, %v116, %v114
      %v120 = vsel %vm118, %v117, %v115
      %v121 = vrot.slane %v116, 1
      %v122 = vrot.slane %v117, 1
      %vm123 = vcmp.ge.f32.partialorder %v121, %v119
      %v124 = vsel %vm123, %v121, %v119
      %v125 = vsel %vm123, %v122, %v120
      %v126 = vrot.slane %v121, 1
      %v127 = vrot.slane %v122, 1
      %vm128 = vcmp.ge.f32.partialorder %v126, %v124
      %v129 = vsel %vm128, %v126, %v124
      %v130 = vsel %vm128, %v127, %v125
      %v131 = vrot.slane %v126, 1
      %v132 = vrot.slane %v127, 1
      %vm133 = vcmp.ge.f32.partialorder %v131, %v129
      %v134 = vsel %vm133, %v131, %v129
      %v135 = vsel %vm133, %v132, %v130
      %s136 = ssub.s32 128, %s81
      %137 = vrot.lane.b32.xlu0 %v135, %s136
      %v138 = vpop.permute.xlu0 %137
      %s139 = vtos %v138
      %v140 = vstv %s81
      %v141 = vlaneseq
      %v142 = vand.u32 %v141, 127
      %vm143 = vcmp.eq.s32.totalorder %v142, %v140
      %v144 = vstv %s139
      %v145 = vld [vmem:[#allocation4] ss:$0 sm:$0xff]
      %v146 = vsel %vm143, %v144, %v145
      %147 = vst [vmem:[#allocation4] sm:$0x1] %v146
      %s148 = scalar_lea.vmem [#allocation2], %s81
      %s149 = scalar_lea.vmem [#allocation2], %s139
      %v150 = vld [vmem:[%s148] ss:$0 sm:$0xff]
      %v151 = vld [vmem:[%s149] ss:$0 sm:$0xff]
      %152 = vst [vmem:[%s149] sm:$0x1] %v150
      %153 = vst [vmem:[%s148] sm:$0x1] %v151
      %s154 = scalar_lea.vmem [#allocation9], %s81
      %s155 = scalar_lea.vmem [#allocation9], %s139
      %v156 = vld [vmem:[%s154] ss:$0 sm:$0xff]
      %v157 = vld [vmem:[%s155] ss:$0 sm:$0xff]
      %158 = vst [vmem:[%s155] sm:$0x1] %v156
      %159 = vst [vmem:[%s154] sm:$0x1] %v157
      %vm160 = vcmp.ne.f32.partialorder %v151, 0.0
      %vm161 = vmand %vm143, %vm160
      %v162 = vsel %vm161, %v151, 1.0
      %v163 = vlaneseq
      %v164 = vand.u32 %v163, 127
      %v165 = vstv %s81
      %vm166 = vcmp.gt.s32.totalorder %v164, %v165
      %v167 = vsel %vm166, %v151, 0.0
      %v168 = vlaneseq
      %v169 = vshrl.u32 %v168, 7
      %v170 = vmov %v169
      %v171 = vld [vmem:[#allocation2] sm:$0xff]
      %v173 = vstv %s81
      %vm174 = vcmp.gt.s32.totalorder %v170, %v173
      %v175 = vsel %vm174, %v162, 1.0
      %v176 = vrcp.pop %v175
      %v177 = vmul.f32 %v171, %v176
      %vm178 = vmand %vm174, %vm143
      %v179 = vsel %vm178, %v177, 0.0
      %180 = vadd.xlane.f32.xlu0 %v179
      %v181 = vpop.xlane.xlu0 %180
      %v182 = vmul.f32 %v181, %v167
      %v183 = vsub.f32 %v177, %v182
      %184 = vst [vmem:[#allocation2] sm:$0xff] %v183
    $region29: #{custom-call.11} parent=1 // loop_footer
      %s85 = sadd.s32 1, %s81
    $region30: #{custom-call.11} parent=1 // loop_footer_branch
      %80 = sbr.rel target = $region26
    $region31: #{custom-call.11} parent=1 // loop_exit
      _
    %v185 = vld [vmem:[#allocation9] sm:$0xff]
    %s186 = scalar_lea.vmem [#allocation9], 8
    %s187 = scalar_lea.vmem [#allocation9], 16
    %s188 = scalar_lea.vmem [#allocation9], 24
    %s189 = scalar_lea.vmem [#allocation9], 32
    %s190 = scalar_lea.vmem [#allocation9], 40
    %s191 = scalar_lea.vmem [#allocation9], 48
    %s192 = scalar_lea.vmem [#allocation9], 56
    %s193 = scalar_lea.vmem [#allocation9], 64
    %s194 = scalar_lea.vmem [#allocation9], 72
    %s195 = scalar_lea.vmem [#allocation9], 80
    %s196 = scalar_lea.vmem [#allocation9], 88
    %s197 = scalar_lea.vmem [#allocation9], 96
    %s198 = scalar_lea.vmem [#allocation9], 104
    %s199 = scalar_lea.vmem [#allocation9], 112
    %s200 = scalar_lea.vmem [#allocation9], 120
    %201 = vxpose.xlu0.b32.start [1/16] %v185, 128
    %202 = vxpose.xlu0.b32.cont [2/16] 0, 128
    %203 = vxpose.xlu0.b32.cont [3/16] 0, 128
    %204 = vxpose.xlu0.b32.cont [4/16] 0, 128
    %205 = vxpose.xlu0.b32.cont [5/16] 0, 128
    %206 = vxpose.xlu0.b32.cont [6/16] 0, 128
    %207 = vxpose.xlu0.b32.cont [7/16] 0, 128
    %208 = vxpose.xlu0.b32.cont [8/16] 0, 128
    %209 = vxpose.xlu0.b32.cont [9/16] 0, 128
    %210 = vxpose.xlu0.b32.cont [10/16] 0, 128
    %211 = vxpose.xlu0.b32.cont [11/16] 0, 128
    %212 = vxpose.xlu0.b32.cont [12/16] 0, 128
    %213 = vxpose.xlu0.b32.cont [13/16] 0, 128
    %214 = vxpose.xlu0.b32.cont [14/16] 0, 128
    %215 = vxpose.xlu0.b32.cont [15/16] 0, 128
    %216 = vxpose.xlu0.b32.end [16/16] 0, 128
    %v217 = vpop.trf.xlu0
    %v218 = vpop.trf.xlu0
    %v219 = vpop.trf.xlu0
    %v220 = vpop.trf.xlu0
    %v221 = vpop.trf.xlu0
    %v222 = vpop.trf.xlu0
    %v223 = vpop.trf.xlu0
    %v224 = vpop.trf.xlu0
    %v225 = vpop.trf.xlu0
    %v226 = vpop.trf.xlu0
    %v227 = vpop.trf.xlu0
    %v228 = vpop.trf.xlu0
    %v229 = vpop.trf.xlu0
    %v230 = vpop.trf.xlu0
    %v231 = vpop.trf.xlu0
    %v232 = vpop.trf.xlu0
    %233 = vst [vmem:[#allocation7] sm:$0x1] %v217
    %s235 = sshllo.u32 0, 4
    %v237 = vld [vmem:[#allocation2] sm:%s235]
    %s238 = sshllo.u32 0, 4
    %239 = vst [vmem:[#allocation3] sm:%s238] %v237
    %s241 = sshllo.u32 0, 1
    %v243 = vld [vmem:[#allocation4] sm:%s241]
    %s244 = sshllo.u32 0, 1
    %245 = vst [vmem:[#allocation5] sm:%s244] %v243
    %s247 = sshllo.u32 0, 1
    %v249 = vld [vmem:[#allocation7] sm:%s247]
    %s250 = sshllo.u32 0, 1
    %251 = vst [vmem:[#allocation8] sm:%s250] %v249
    %p253 = scmp.gt.s32.totalorder 4, 0
    // Predicated region
    $region32: #{custom-call.11} parent=1 // pred_check
      %p254 = pneg %p253
    $region33: #{custom-call.11} parent=1 // pred_check_branch
      %256 = sbr.rel (%p254) target = $region35
    $region34: #{custom-call.11} parent=1 // pred_region
      %s257 = sshra.s32 4, 3
      %p258 = scmp.gt.s32.totalorder %s257, 0
      // Predicated region
      $region36: #{custom-call.11} parent=34 // pred_check
        %p259 = pneg %p258
      $region37: #{custom-call.11} parent=34 // pred_check_branch
        %261 = sbr.rel (%p259) target = $region39
      $region38: #{custom-call.11} parent=34 // pred_region
        %s262 = ssub.s32 %s257, 1
        %s263 = smul.u32 %s262, 128
        %s264 = sshra.s32 %s263, 4
        %s265 = scalar_lea.vmem [#allocation3], %s264
        %v266 = vld [vmem:[#allocation3] sm:$0xff]
        // While loop
        $region40: #{custom-call.11} parent=38 // loop_pre_header
          _
        $region41: #{custom-call.11} parent=38 // loop_header
          %s267 = sphi [#allocation3], %s289
          %s268 = sphi %s1, %s290
          %v269 = vphi %v266, %v291
          %s270 = ssub.s32 %s265, 64
          %p271 = scmp.gt.s32.totalorder %s267, %s270
        $region42: #{custom-call.11} parent=38 // loop_header_branch
          %273 = sbr.rel (%p271) target = $region46
        $region43: #{custom-call.11} parent=38 // loop_body
          %274 = vst [vmem:[%s268] sm:$0xff] %v269
          %v275 = vld [vmem:[%s267 + $0x8] sm:$0xff]
          %276 = vst [vmem:[%s268 + $0x8] sm:$0xff] %v275
          %v277 = vld [vmem:[%s267 + $0x10] sm:$0xff]
          %278 = vst [vmem:[%s268 + $0x10] sm:$0xff] %v277
          %v279 = vld [vmem:[%s267 + $0x18] sm:$0xff]
          %280 = vst [vmem:[%s268 + $0x18] sm:$0xff] %v279
          %v281 = vld [vmem:[%s267 + $0x20] sm:$0xff]
          %282 = vst [vmem:[%s268 + $0x20] sm:$0xff] %v281
          %v283 = vld [vmem:[%s267 + $0x28] sm:$0xff]
          %284 = vst [vmem:[%s268 + $0x28] sm:$0xff] %v283
          %v285 = vld [vmem:[%s267 + $0x30] sm:$0xff]
          %286 = vst [vmem:[%s268 + $0x30] sm:$0xff] %v285
          %v287 = vld [vmem:[%s267 + $0x38] sm:$0xff]
          %288 = vst [vmem:[%s268 + $0x38] sm:$0xff] %v287
        $region44: #{custom-call.11} parent=38 // loop_footer
          %s289 = scalar_lea.vmem %s267, 64
          %s290 = scalar_lea.vmem %s268, 64
          %v291 = vld [vmem:[%s267 + $0x40] sm:$0xff]
        $region45: #{custom-call.11} parent=38 // loop_footer_branch
          %292 = sbr.rel target = $region41
        $region46: #{custom-call.11} parent=38 // loop_exit
          _
        // While loop
        $region47: #{custom-call.11} parent=38 // loop_pre_header
          _
        $region48: #{custom-call.11} parent=38 // loop_header
          %s293 = sphi %s267, %s301
          %s294 = sphi %s268, %s302
          %v295 = vphi %v269, %v295
          %p296 = scmp.gt.s32.totalorder %s293, %s265
        $region49: #{custom-call.11} parent=38 // loop_header_branch
          %298 = sbr.rel (%p296) target = $region53
        $region50: #{custom-call.11} parent=38 // loop_body
          %v299 = vld [vmem:[%s293] sm:$0xff]
          %300 = vst [vmem:[%s294] sm:$0xff] %v299
        $region51: #{custom-call.11} parent=38 // loop_footer
          %s301 = scalar_lea.vmem %s293, 8
          %s302 = scalar_lea.vmem %s294, 8
        $region52: #{custom-call.11} parent=38 // loop_footer_branch
          %303 = sbr.rel target = $region48
        $region53: #{custom-call.11} parent=38 // loop_exit
          _
      $region39: #{custom-call.11} parent=34 // pred_fallthru
        _
      %s304 = sand.u32 4, 7
      %s305 = sshllo.u32 0, %s304
      %s306 = smul.u32 %s257, 128
      %s307 = sshra.s32 %s306, 4
      %s308 = scalar_lea.vmem %s1, %s307
      %s309 = smul.u32 %s257, 128
      %s310 = sshra.s32 %s309, 4
      %s311 = scalar_lea.vmem [#allocation3], %s310
      %v312 = vld [vmem:[%s311] sm:%s305]
      %313 = vst [vmem:[%s308] sm:%s305] %v312
    $region35: #{custom-call.11} parent=1 // pred_fallthru
      _
    // Predicated region
    $region54: #{custom-call.11} parent=1 // pred_check
      _
    $region55: #{custom-call.11} parent=1 // pred_check_branch
      %315 = sbr.rel (0) target = $region57
    $region56: #{custom-call.11} parent=1 // pred_region
      %s317 = ssub.s32 16, 16
      %318 = vsyncadd [#allocation6], %s317
      %s319 = sshll.u32 [#allocation5], 4
      %s320 = int_to_ptr.vmem [resolvable:$true] %s319
      %322 = dma.vmem_to_hbm [thread:$0]  %s320, 16, %s2, [#allocation6]
    $region57: #{custom-call.11} parent=1 // pred_fallthru
      _
    // Predicated region
    $region58: #{custom-call.11} parent=1 // pred_check
      _
    $region59: #{custom-call.11} parent=1 // pred_check_branch
      %324 = sbr.rel (0) target = $region61
    $region60: #{custom-call.11} parent=1 // pred_region
      %p326 = scmp.gt.s32.totalorder 1, 0
      // Predicated region
      $region62: #{custom-call.11} parent=60 // pred_check
        %p327 = pneg %p326
      $region63: #{custom-call.11} parent=60 // pred_check_branch
        %329 = sbr.rel (%p327) target = $region65
      $region64: #{custom-call.11} parent=60 // pred_region
        %s330 = sshra.s32 1, 3
        %p331 = scmp.gt.s32.totalorder %s330, 0
        // Predicated region
        $region66: #{custom-call.11} parent=64 // pred_check
          %p332 = pneg %p331
        $region67: #{custom-call.11} parent=64 // pred_check_branch
          %334 = sbr.rel (%p332) target = $region69
        $region68: #{custom-call.11} parent=64 // pred_region
          %s335 = ssub.s32 %s330, 1
          %s336 = smul.u32 %s335, 128
          %s337 = sshra.s32 %s336, 4
          %s338 = scalar_lea.vmem [#allocation8], %s337
          %v339 = vld [vmem:[#allocation8] sm:$0xff]
          // While loop
          $region70: #{custom-call.11} parent=68 // loop_pre_header
            _
          $region71: #{custom-call.11} parent=68 // loop_header
            %s340 = sphi [#allocation8], %s362
            %s341 = sphi %s3, %s363
            %v342 = vphi %v339, %v364
            %s343 = ssub.s32 %s338, 64
            %p344 = scmp.gt.s32.totalorder %s340, %s343
          $region72: #{custom-call.11} parent=68 // loop_header_branch
            %346 = sbr.rel (%p344) target = $region76
          $region73: #{custom-call.11} parent=68 // loop_body
            %347 = vst [vmem:[%s341] sm:$0xff] %v342
            %v348 = vld [vmem:[%s340 + $0x8] sm:$0xff]
            %349 = vst [vmem:[%s341 + $0x8] sm:$0xff] %v348
            %v350 = vld [vmem:[%s340 + $0x10] sm:$0xff]
            %351 = vst [vmem:[%s341 + $0x10] sm:$0xff] %v350
            %v352 = vld [vmem:[%s340 + $0x18] sm:$0xff]
            %353 = vst [vmem:[%s341 + $0x18] sm:$0xff] %v352
            %v354 = vld [vmem:[%s340 + $0x20] sm:$0xff]
            %355 = vst [vmem:[%s341 + $0x20] sm:$0xff] %v354
            %v356 = vld [vmem:[%s340 + $0x28] sm:$0xff]
            %357 = vst [vmem:[%s341 + $0x28] sm:$0xff] %v356
            %v358 = vld [vmem:[%s340 + $0x30] sm:$0xff]
            %359 = vst [vmem:[%s341 + $0x30] sm:$0xff] %v358
            %v360 = vld [vmem:[%s340 + $0x38] sm:$0xff]
            %361 = vst [vmem:[%s341 + $0x38] sm:$0xff] %v360
          $region74: #{custom-call.11} parent=68 // loop_footer
            %s362 = scalar_lea.vmem %s340, 64
            %s363 = scalar_lea.vmem %s341, 64
            %v364 = vld [vmem:[%s340 + $0x40] sm:$0xff]
          $region75: #{custom-call.11} parent=68 // loop_footer_branch
            %365 = sbr.rel target = $region71
          $region76: #{custom-call.11} parent=68 // loop_exit
            _
          // While loop
          $region77: #{custom-call.11} parent=68 // loop_pre_header
            _
          $region78: #{custom-call.11} parent=68 // loop_header
            %s366 = sphi %s340, %s374
            %s367 = sphi %s341, %s375
            %v368 = vphi %v342, %v368
            %p369 = scmp.gt.s32.totalorder %s366, %s338
          $region79: #{custom-call.11} parent=68 // loop_header_branch
            %371 = sbr.rel (%p369) target = $region83
          $region80: #{custom-call.11} parent=68 // loop_body
            %v372 = vld [vmem:[%s366] sm:$0xff]
            %373 = vst [vmem:[%s367] sm:$0xff] %v372
          $region81: #{custom-call.11} parent=68 // loop_footer
            %s374 = scalar_lea.vmem %s366, 8
            %s375 = scalar_lea.vmem %s367, 8
          $region82: #{custom-call.11} parent=68 // loop_footer_branch
            %376 = sbr.rel target = $region78
          $region83: #{custom-call.11} parent=68 // loop_exit
            _
        $region69: #{custom-call.11} parent=64 // pred_fallthru
          _
        %s377 = sand.u32 1, 7
        %s378 = sshllo.u32 0, %s377
        %s379 = smul.u32 %s330, 128
        %s380 = sshra.s32 %s379, 4
        %s381 = scalar_lea.vmem %s3, %s380
        %s382 = smul.u32 %s330, 128
        %s383 = sshra.s32 %s382, 4
        %s384 = scalar_lea.vmem [#allocation8], %s383
        %v385 = vld [vmem:[%s384] sm:%s378]
        %386 = vst [vmem:[%s381] sm:%s378] %v385
      $region65: #{custom-call.11} parent=60 // pred_fallthru
        _
    $region61: #{custom-call.11} parent=1 // pred_fallthru
      _
    // Predicated region
    $region84: #{custom-call.11} parent=1 // pred_check
      _
    $region85: #{custom-call.11} parent=1 // pred_check_branch
      %388 = sbr.rel (0) target = $region87
    $region86: #{custom-call.11} parent=1 // pred_region
      %389 = dma.done [#allocation6], 16
    $region87: #{custom-call.11} parent=1 // pred_fallthru
      _
    // Predicated region
    $region88: #{custom-call.11} parent=1 // pred_check
      _
    $region89: #{custom-call.11} parent=1 // pred_check_branch
      %391 = sbr.rel (0) target = $region91
    $region90: #{custom-call.11} parent=1 // pred_region
      _
    $region91: #{custom-call.11} parent=1 // pred_fallthru
      _
    %392 = vsyncpa [#allocation6], 1

// kernel: custom-call.13
$region0: #{custom-call.13}
  %s0 = inlined_call_operand.vmem [shape: f32[1,3,3], index: 0, kind: input, shape index: {}]
  %s1 = inlined_call_operand.vmem [shape: f32[1,3,3], index: 1, kind: output, shape index: {}]
  $region1: #{custom-call.13} parent=0
    #allocation0 [shape = 'u8[4096]{0}', space=vmem, size = 0x1000, scoped, tag = 'operand span for operand 0']
    #allocation1 [shape = 'u8[2048]{0}', space=vmem, size = 0x800, scoped, tag = 'packed  for operand 0']
    #allocation2 [shape = 'u8[4096]{0}', space=vmem, size = 0x1000, scoped, tag = 'operand span for operand 1']
    #allocation3 [shape = 'u8[2048]{0}', space=vmem, size = 0x800, scoped, tag = 'packed  for operand 1']
    #allocation4 [shape = 'f32[3,3]{1,0}', space=vmem, size = 0x1000, scoped, tag = 'rescaled input a']
    // Predicated region
    $region2: #{custom-call.13} parent=1 // pred_check
      _
    $region3: #{custom-call.13} parent=1 // pred_check_branch
      %3 = sbr.rel (0) target = $region5
    $region4: #{custom-call.13} parent=1 // pred_region
      // Predicated region
      $region6: #{custom-call.13} parent=4 // pred_check
        _
      $region7: #{custom-call.13} parent=4 // pred_check_branch
        %5 = sbr.rel target = $region9
      $region8: #{custom-call.13} parent=4 // pred_region
        // Predicated region
        $region21: #{custom-call.13} parent=8 // pred_check
          _
        $region22: #{custom-call.13} parent=8 // pred_check_branch
          %20 = sbr.rel (0) target = $region24
        $region23: #{custom-call.13} parent=8 // pred_region
          loop: start=0, step=1, limit=1
          $region25: #{custom-call.13} parent=23 // loop_pre_header
            _
          $region26: #{custom-call.13} parent=23 // loop_header
            %s23 = sphi 0, %s27
            %p24 = scmp.ge.s32.totalorder %s23, 1
            %s28 = sphi %s0, %s0
            %s29 = sphi [#allocation1], [#allocation1]
          $region27: #{custom-call.13} parent=23 // loop_header_branch
            %26 = sbr.rel (%p24) target = $region31
          $region28: #{custom-call.13} parent=23 // loop_body
            %v30 = vld [vmem:[%s28] sm:$0xf]
            %31 = vst [vmem:[%s29] sm:$0xf] %v30
          $region29: #{custom-call.13} parent=23 // loop_footer
            %s27 = sadd.s32 1, %s23
          $region30: #{custom-call.13} parent=23 // loop_footer_branch
            %22 = sbr.rel target = $region26
          $region31: #{custom-call.13} parent=23 // loop_exit
            _
        $region24: #{custom-call.13} parent=8 // pred_fallthru
          _
      $region9: #{custom-call.13} parent=4 // pred_fallthru
        _
      // Predicated region
      $region10: #{custom-call.13} parent=4 // pred_check
        _
      $region11: #{custom-call.13} parent=4 // pred_check_branch
        %7 = sbr.rel (0) target = $region13
      $region12: #{custom-call.13} parent=4 // pred_region
        loop: start=0, step=1, limit=1
        $region14: #{custom-call.13} parent=12 // loop_pre_header
          _
        $region15: #{custom-call.13} parent=12 // loop_header
          %s10 = sphi 0, %s14
          %p11 = scmp.ge.s32.totalorder %s10, 1
          %s15 = sphi %s0, %s0
          %s16 = sphi [#allocation1], [#allocation1]
        $region16: #{custom-call.13} parent=12 // loop_header_branch
          %13 = sbr.rel (%p11) target = $region20
        $region17: #{custom-call.13} parent=12 // loop_body
          %v17 = vld [vmem:[%s15] sm:$0xf]
          %18 = vst [vmem:[%s16] sm:$0xf] %v17
        $region18: #{custom-call.13} parent=12 // loop_footer
          %s14 = sadd.s32 1, %s10
        $region19: #{custom-call.13} parent=12 // loop_footer_branch
          %9 = sbr.rel target = $region15
        $region20: #{custom-call.13} parent=12 // loop_exit
          _
      $region13: #{custom-call.13} parent=4 // pred_fallthru
        _
    $region5: #{custom-call.13} parent=1 // pred_fallthru
      _
    %32 = vnop
    %s34 = sshllo.u32 0, 4
    %v35 = vld [vmem:[#allocation1] sm:%s34]
    %36 = vst [vmem:[#allocation0] sm:%s34] %v35
    %v37 = vlaneseq
    %v38 = vand.u32 %v37, 127
    %vm39 = vcmp.lt.s32.totalorder %v38, 3
    %v40 = vlaneseq
    %v41 = vshrl.u32 %v40, 7
    %vm43 = vcmp.eq.s32.totalorder %v41, %v38
    %v44 = vld [vmem:[#allocation0] sm:$0xff]
    %v45 = vsel %vm43, %v44, 0.0
    %46 = vadd.xlane.f32.xlu0 %v45
    %v47 = vpop.xlane.xlu0 %46
    %vm48 = vcmp.ge.s32.totalorder %v41, %v38
    %vm49 = vmand %vm48, %vm39
    %v50 = vsel %vm49, %v44, 0.0
    %v51 = vrcp.pop %v47
    %v52 = vmul.f32 %v50, %v51
    %53 = vst [vmem:[#allocation4] sm:$0xff] %v52
    %v54 = vlaneseq
    %v55 = vand.u32 %v54, 127
    %v56 = vlaneseq
    %v57 = vshrl.u32 %v56, 7
    %vm59 = vcmp.eq.s32.totalorder %v55, %v57
    %v60 = vlaneseq
    %v61 = vand.u32 %v60, 127
    %vm62 = vcmp.eq.s32.totalorder %v61, 0
    %v63 = vsel %vm62, 1.0, -1.0
    %v64 = vsel %vm59, %v63, 0.0
    %s65 = scalar_lea.vmem [#allocation4], 1
    %v66 = vld [vmem:[%s65] ss:$0 sm:$0xff]
    %v67 = vxor.u32 %v66, 2147483648
    %v68 = vlaneseq
    %v69 = vand.u32 %v68, 127
    %vm70 = vcmp.eq.s32.totalorder %v69, 1
    %v71 = vmul.f32 %v67, %v64
    %72 = vadd.xlane.f32.xlu0 %v71
    %v73 = vpop.xlane.xlu0 %72
    %v74 = vsel %vm70, %v73, %v64
    %s75 = scalar_lea.vmem [#allocation4], 2
    %v76 = vld [vmem:[%s75] ss:$0 sm:$0xff]
    %v77 = vxor.u32 %v76, 2147483648
    %v78 = vlaneseq
    %v79 = vand.u32 %v78, 127
    %vm80 = vcmp.eq.s32.totalorder %v79, 2
    %v81 = vmul.f32 %v77, %v74
    %82 = vadd.xlane.f32.xlu0 %v81
    %v83 = vpop.xlane.xlu0 %82
    %v84 = vsel %vm80, %v83, %v74
    %v85 = vrcp.pop %v47
    %v86 = vmul.f32 %v84, %v85
    %vm87 = vweird.f32 %v47
    %v88 = vsel %vm87, %v84, %v86
    %89 = vst [vmem:[#allocation2] sm:$0xff] %v88
    %s91 = sshllo.u32 0, 4
    %v93 = vld [vmem:[#allocation2] sm:%s91]
    %s94 = sshllo.u32 0, 4
    %95 = vst [vmem:[#allocation3] sm:%s94] %v93
    // Predicated region
    $region32: #{custom-call.13} parent=1 // pred_check
      _
    $region33: #{custom-call.13} parent=1 // pred_check_branch
      %97 = sbr.rel (0) target = $region35
    $region34: #{custom-call.13} parent=1 // pred_region
      // Predicated region
      $region36: #{custom-call.13} parent=34 // pred_check
        _
      $region37: #{custom-call.13} parent=34 // pred_check_branch
        %99 = sbr.rel target = $region39
      $region38: #{custom-call.13} parent=34 // pred_region
        // Predicated region
        $region51: #{custom-call.13} parent=38 // pred_check
          _
        $region52: #{custom-call.13} parent=38 // pred_check_branch
          %114 = sbr.rel (0) target = $region54
        $region53: #{custom-call.13} parent=38 // pred_region
          loop: start=0, step=1, limit=1
          $region55: #{custom-call.13} parent=53 // loop_pre_header
            _
          $region56: #{custom-call.13} parent=53 // loop_header
            %s117 = sphi 0, %s121
            %p118 = scmp.ge.s32.totalorder %s117, 1
            %s122 = sphi [#allocation3], [#allocation3]
            %s123 = sphi %s1, %s1
          $region57: #{custom-call.13} parent=53 // loop_header_branch
            %120 = sbr.rel (%p118) target = $region61
          $region58: #{custom-call.13} parent=53 // loop_body
            %v124 = vld [vmem:[%s122] sm:$0xf]
            %125 = vst [vmem:[%s123] sm:$0xf] %v124
          $region59: #{custom-call.13} parent=53 // loop_footer
            %s121 = sadd.s32 1, %s117
          $region60: #{custom-call.13} parent=53 // loop_footer_branch
            %116 = sbr.rel target = $region56
          $region61: #{custom-call.13} parent=53 // loop_exit
            _
        $region54: #{custom-call.13} parent=38 // pred_fallthru
          _
      $region39: #{custom-call.13} parent=34 // pred_fallthru
        _
      // Predicated region
      $region40: #{custom-call.13} parent=34 // pred_check
        _
      $region41: #{custom-call.13} parent=34 // pred_check_branch
        %101 = sbr.rel (0) target = $region43
      $region42: #{custom-call.13} parent=34 // pred_region
        loop: start=0, step=1, limit=1
        $region44: #{custom-call.13} parent=42 // loop_pre_header
          _
        $region45: #{custom-call.13} parent=42 // loop_header
          %s104 = sphi 0, %s108
          %p105 = scmp.ge.s32.totalorder %s104, 1
          %s109 = sphi [#allocation3], [#allocation3]
          %s110 = sphi %s1, %s1
        $region46: #{custom-call.13} parent=42 // loop_header_branch
          %107 = sbr.rel (%p105) target = $region50
        $region47: #{custom-call.13} parent=42 // loop_body
          %v111 = vld [vmem:[%s109] sm:$0xf]
          %112 = vst [vmem:[%s110] sm:$0xf] %v111
        $region48: #{custom-call.13} parent=42 // loop_footer
          %s108 = sadd.s32 1, %s104
        $region49: #{custom-call.13} parent=42 // loop_footer_branch
          %103 = sbr.rel target = $region45
        $region50: #{custom-call.13} parent=42 // loop_exit
          _
      $region43: #{custom-call.13} parent=34 // pred_fallthru
        _
    $region35: #{custom-call.13} parent=1 // pred_fallthru
      _
    %126 = vnop

// kernel: custom-call.12
$region0: #{custom-call.12}
  %s0 = inlined_call_operand.vmem [shape: f32[1,3,3], index: 0, kind: input, shape index: {}]
  %s1 = inlined_call_operand.vmem [shape: f32[1,3,3], index: 1, kind: output, shape index: {}]
  $region1: #{custom-call.12} parent=0
    #allocation0 [shape = 'u8[4096]{0}', space=vmem, size = 0x1000, scoped, tag = 'operand span for operand 0']
    #allocation1 [shape = 'u8[2048]{0}', space=vmem, size = 0x800, scoped, tag = 'packed  for operand 0']
    #allocation2 [shape = 'u8[4096]{0}', space=vmem, size = 0x1000, scoped, tag = 'operand span for operand 1']
    #allocation3 [shape = 'u8[2048]{0}', space=vmem, size = 0x800, scoped, tag = 'packed  for operand 1']
    #allocation4 [shape = 'f32[3,3]{1,0}', space=vmem, size = 0x1000, scoped, tag = 'rescaled input a']
    // Predicated region
    $region2: #{custom-call.12} parent=1 // pred_check
      _
    $region3: #{custom-call.12} parent=1 // pred_check_branch
      %3 = sbr.rel (0) target = $region5
    $region4: #{custom-call.12} parent=1 // pred_region
      // Predicated region
      $region6: #{custom-call.12} parent=4 // pred_check
        _
      $region7: #{custom-call.12} parent=4 // pred_check_branch
        %5 = sbr.rel target = $region9
      $region8: #{custom-call.12} parent=4 // pred_region
        // Predicated region
        $region21: #{custom-call.12} parent=8 // pred_check
          _
        $region22: #{custom-call.12} parent=8 // pred_check_branch
          %20 = sbr.rel (0) target = $region24
        $region23: #{custom-call.12} parent=8 // pred_region
          loop: start=0, step=1, limit=1
          $region25: #{custom-call.12} parent=23 // loop_pre_header
            _
          $region26: #{custom-call.12} parent=23 // loop_header
            %s23 = sphi 0, %s27
            %p24 = scmp.ge.s32.totalorder %s23, 1
            %s28 = sphi %s0, %s0
            %s29 = sphi [#allocation1], [#allocation1]
          $region27: #{custom-call.12} parent=23 // loop_header_branch
            %26 = sbr.rel (%p24) target = $region31
          $region28: #{custom-call.12} parent=23 // loop_body
            %v30 = vld [vmem:[%s28] sm:$0xf]
            %31 = vst [vmem:[%s29] sm:$0xf] %v30
          $region29: #{custom-call.12} parent=23 // loop_footer
            %s27 = sadd.s32 1, %s23
          $region30: #{custom-call.12} parent=23 // loop_footer_branch
            %22 = sbr.rel target = $region26
          $region31: #{custom-call.12} parent=23 // loop_exit
            _
        $region24: #{custom-call.12} parent=8 // pred_fallthru
          _
      $region9: #{custom-call.12} parent=4 // pred_fallthru
        _
      // Predicated region
      $region10: #{custom-call.12} parent=4 // pred_check
        _
      $region11: #{custom-call.12} parent=4 // pred_check_branch
        %7 = sbr.rel (0) target = $region13
      $region12: #{custom-call.12} parent=4 // pred_region
        loop: start=0, step=1, limit=1
        $region14: #{custom-call.12} parent=12 // loop_pre_header
          _
        $region15: #{custom-call.12} parent=12 // loop_header
          %s10 = sphi 0, %s14
          %p11 = scmp.ge.s32.totalorder %s10, 1
          %s15 = sphi %s0, %s0
          %s16 = sphi [#allocation1], [#allocation1]
        $region16: #{custom-call.12} parent=12 // loop_header_branch
          %13 = sbr.rel (%p11) target = $region20
        $region17: #{custom-call.12} parent=12 // loop_body
          %v17 = vld [vmem:[%s15] sm:$0xf]
          %18 = vst [vmem:[%s16] sm:$0xf] %v17
        $region18: #{custom-call.12} parent=12 // loop_footer
          %s14 = sadd.s32 1, %s10
        $region19: #{custom-call.12} parent=12 // loop_footer_branch
          %9 = sbr.rel target = $region15
        $region20: #{custom-call.12} parent=12 // loop_exit
          _
      $region13: #{custom-call.12} parent=4 // pred_fallthru
        _
    $region5: #{custom-call.12} parent=1 // pred_fallthru
      _
    %32 = vnop
    %s34 = sshllo.u32 0, 4
    %v35 = vld [vmem:[#allocation1] sm:%s34]
    %36 = vst [vmem:[#allocation0] sm:%s34] %v35
    %v37 = vlaneseq
    %v38 = vand.u32 %v37, 127
    %vm39 = vcmp.lt.s32.totalorder %v38, 3
    %v40 = vlaneseq
    %v41 = vshrl.u32 %v40, 7
    %vm43 = vcmp.eq.s32.totalorder %v41, %v38
    %v44 = vld [vmem:[#allocation0] sm:$0xff]
    %v45 = vsel %vm43, %v44, 0.0
    %46 = vadd.xlane.f32.xlu0 %v45
    %v47 = vpop.xlane.xlu0 %46
    %vm48 = vcmp.le.s32.totalorder %v41, %v38
    %vm49 = vmand %vm48, %vm39
    %v50 = vsel %vm49, %v44, 0.0
    %v51 = vrcp.pop %v47
    %v52 = vmul.f32 %v50, %v51
    %53 = vst [vmem:[#allocation4] sm:$0xff] %v52
    %v54 = vlaneseq
    %v55 = vand.u32 %v54, 127
    %v56 = vlaneseq
    %v57 = vshrl.u32 %v56, 7
    %vm59 = vcmp.eq.s32.totalorder %v55, %v57
    %v60 = vlaneseq
    %v61 = vand.u32 %v60, 127
    %vm62 = vcmp.eq.s32.totalorder %v61, 2
    %v63 = vsel %vm62, 1.0, -1.0
    %v64 = vsel %vm59, %v63, 0.0
    %s65 = scalar_lea.vmem [#allocation4], 1
    %v66 = vld [vmem:[%s65] ss:$0 sm:$0xff]
    %v67 = vxor.u32 %v66, 2147483648
    %v68 = vlaneseq
    %v69 = vand.u32 %v68, 127
    %vm70 = vcmp.eq.s32.totalorder %v69, 1
    %v71 = vmul.f32 %v67, %v64
    %72 = vadd.xlane.f32.xlu0 %v71
    %v73 = vpop.xlane.xlu0 %72
    %v74 = vsel %vm70, %v73, %v64
    %v75 = vld [vmem:[#allocation4] ss:$0 sm:$0xff]
    %v76 = vxor.u32 %v75, 2147483648
    %v77 = vlaneseq
    %v78 = vand.u32 %v77, 127
    %vm79 = vcmp.eq.s32.totalorder %v78, 0
    %v80 = vmul.f32 %v76, %v74
    %81 = vadd.xlane.f32.xlu0 %v80
    %v82 = vpop.xlane.xlu0 %81
    %v83 = vsel %vm79, %v82, %v74
    %v84 = vrcp.pop %v47
    %v85 = vmul.f32 %v83, %v84
    %vm86 = vweird.f32 %v47
    %v87 = vsel %vm86, %v83, %v85
    %88 = vst [vmem:[#allocation2] sm:$0xff] %v87
    %s90 = sshllo.u32 0, 4
    %v92 = vld [vmem:[#allocation2] sm:%s90]
    %s93 = sshllo.u32 0, 4
    %94 = vst [vmem:[#allocation3] sm:%s93] %v92
    // Predicated region
    $region32: #{custom-call.12} parent=1 // pred_check
      _
    $region33: #{custom-call.12} parent=1 // pred_check_branch
      %96 = sbr.rel (0) target = $region35
    $region34: #{custom-call.12} parent=1 // pred_region
      // Predicated region
      $region36: #{custom-call.12} parent=34 // pred_check
        _
      $region37: #{custom-call.12} parent=34 // pred_check_branch
        %98 = sbr.rel target = $region39
      $region38: #{custom-call.12} parent=34 // pred_region
        // Predicated region
        $region51: #{custom-call.12} parent=38 // pred_check
          _
        $region52: #{custom-call.12} parent=38 // pred_check_branch
          %113 = sbr.rel (0) target = $region54
        $region53: #{custom-call.12} parent=38 // pred_region
          loop: start=0, step=1, limit=1
          $region55: #{custom-call.12} parent=53 // loop_pre_header
            _
          $region56: #{custom-call.12} parent=53 // loop_header
            %s116 = sphi 0, %s120
            %p117 = scmp.ge.s32.totalorder %s116, 1
            %s121 = sphi [#allocation3], [#allocation3]
            %s122 = sphi %s1, %s1
          $region57: #{custom-call.12} parent=53 // loop_header_branch
            %119 = sbr.rel (%p117) target = $region61
          $region58: #{custom-call.12} parent=53 // loop_body
            %v123 = vld [vmem:[%s121] sm:$0xf]
            %124 = vst [vmem:[%s122] sm:$0xf] %v123
          $region59: #{custom-call.12} parent=53 // loop_footer
            %s120 = sadd.s32 1, %s116
          $region60: #{custom-call.12} parent=53 // loop_footer_branch
            %115 = sbr.rel target = $region56
          $region61: #{custom-call.12} parent=53 // loop_exit
            _
        $region54: #{custom-call.12} parent=38 // pred_fallthru
          _
      $region39: #{custom-call.12} parent=34 // pred_fallthru
        _
      // Predicated region
      $region40: #{custom-call.12} parent=34 // pred_check
        _
      $region41: #{custom-call.12} parent=34 // pred_check_branch
        %100 = sbr.rel (0) target = $region43
      $region42: #{custom-call.12} parent=34 // pred_region
        loop: start=0, step=1, limit=1
        $region44: #{custom-call.12} parent=42 // loop_pre_header
          _
        $region45: #{custom-call.12} parent=42 // loop_header
          %s103 = sphi 0, %s107
          %p104 = scmp.ge.s32.totalorder %s103, 1
          %s108 = sphi [#allocation3], [#allocation3]
          %s109 = sphi %s1, %s1
        $region46: #{custom-call.12} parent=42 // loop_header_branch
          %106 = sbr.rel (%p104) target = $region50
        $region47: #{custom-call.12} parent=42 // loop_body
          %v110 = vld [vmem:[%s108] sm:$0xf]
          %111 = vst [vmem:[%s109] sm:$0xf] %v110
        $region48: #{custom-call.12} parent=42 // loop_footer
          %s107 = sadd.s32 1, %s103
        $region49: #{custom-call.12} parent=42 // loop_footer_branch
          %102 = sbr.rel target = $region45
        $region50: #{custom-call.12} parent=42 // loop_exit
          _
      $region43: #{custom-call.12} parent=34 // pred_fallthru
        _
    $region35: #{custom-call.12} parent=1 // pred_fallthru
      _
    %125 = vnop

// kernel: lnn_forward.1
$region0: #{lnn_forward.1}
  #allocation0 [shape = 'u32[]', space=smem, size = 0x4, offset = 0x4, fixed_abs, tag = 'smem constant byte address 0x4 - core index']
  #allocation1 [shape = 'u32[144,128]{1,0:T(1,128)}', space=vmem, size = 0x12000, scoped, tag = 'internal scratch']
  %s0 = inlined_call_operand.vmem [shape: f32[1,6], index: 0, kind: input, shape index: {}]
  %s1 = inlined_call_operand.hbm [shape: f32[424,128], index: 1, kind: input, shape index: {}]
  %s2 = inlined_call_operand.vmem [shape: f32[8,128], index: 2, kind: input, shape index: {}]
  %s3 = inlined_call_operand.vmem [shape: f32[43,128], index: 3, kind: output, shape index: {}]
  %s4 = sld [smem:[#allocation0]]
  $region26: #{lnn_forward.1} parent=0
    _
  %s6 = ssub.s32 1, %s4
  %s7 = scalar_select 0, %s6, %s4
  $region1: #{lnn_forward.1} parent=0
    #allocation2 [shape = 'u8[217088]{0}', space=vmem, size = 0x35000, scoped, tag = 'input window, operand 1, single buffered']
    #allocation3 [shape = 's32[1]{0}', space=sflag, size = 0x4, scoped, tag = 'scoped memory for lnn_forward.1']
    %8 = vsyncpa [#allocation3], 0
    // Predicated region
    $region2: #{lnn_forward.1} parent=1 // pred_check
      _
    $region3: #{lnn_forward.1} parent=1 // pred_check_branch
      %10 = sbr.rel (0) target = $region5
    $region4: #{lnn_forward.1} parent=1 // pred_region
      _
    $region5: #{lnn_forward.1} parent=1 // pred_fallthru
      _
    // Predicated region
    $region6: #{lnn_forward.1} parent=1 // pred_check
      _
    $region7: #{lnn_forward.1} parent=1 // pred_check_branch
      %12 = sbr.rel (0) target = $region9
    $region8: #{lnn_forward.1} parent=1 // pred_region
      %s14 = ssub.s32 6784, 6784
      %15 = vsyncadd [#allocation3], %s14
      %s16 = sshll.u32 [#allocation2], 4
      %s17 = int_to_ptr.vmem [resolvable:$true] %s16
      %22 = dma.hbm_to_vmem [thread:$0]  %s1, 6784, %s17, [#allocation3], 128, 128, 8
    $region9: #{lnn_forward.1} parent=1 // pred_fallthru
      _
    // Predicated region
    $region10: #{lnn_forward.1} parent=1 // pred_check
      _
    $region11: #{lnn_forward.1} parent=1 // pred_check_branch
      %24 = sbr.rel (0) target = $region13
    $region12: #{lnn_forward.1} parent=1 // pred_region
      _
    $region13: #{lnn_forward.1} parent=1 // pred_fallthru
      _
    // Predicated region
    $region14: #{lnn_forward.1} parent=1 // pred_check
      _
    $region15: #{lnn_forward.1} parent=1 // pred_check_branch
      %26 = sbr.rel (0) target = $region17
    $region16: #{lnn_forward.1} parent=1 // pred_region
      %27 = dma.done [#allocation3], 6784
    $region17: #{lnn_forward.1} parent=1 // pred_fallthru
      _
    %v28 = vld [vmem:[%s0] sm:$0x1]
    %v29 = vlaneseq
    %v30 = vshrl.u32 %v29, 7
    %v31 = vadd.s32 %v30, 8
    %v32 = vadd.s32 %v30, 16
    %v33 = vadd.s32 %v30, 24
    %v34 = vadd.s32 %v30, 32
    %v35 = vadd.s32 %v30, 40
    %v36 = vlaneseq
    %v37 = vand.u32 %v36, 127
    %vm38 = vcmp.eq.s32.totalorder %v30, 0
    %vm39 = vcmp.eq.s32.totalorder %v31, 0
    %vm40 = vcmp.eq.s32.totalorder %v32, 0
    %vm41 = vcmp.eq.s32.totalorder %v33, 0
    %vm42 = vcmp.eq.s32.totalorder %v34, 0
    %vm43 = vcmp.eq.s32.totalorder %v35, 0
    %v45 = vlaneseq
    %v46 = vshrl.u32 %v45, 7
    %v47 = vsub.s32 0, %v46
    %v48 = vrot.slane %v28, %v47
    %v50 = vsel %vm38, %v48, 0.0
    %v51 = vsel %vm39, %v48, 0.0
    %v52 = vsel %vm40, %v48, 0.0
    %v53 = vsel %vm41, %v48, 0.0
    %v54 = vsel %vm42, %v48, 0.0
    %v55 = vsel %vm43, %v48, 0.0
    %v56 = vadd.s32 %v37, 1
    %vm57 = vcmp.eq.s32.totalorder %v30, %v56
    %vm58 = vcmp.eq.s32.totalorder %v31, %v56
    %vm59 = vcmp.eq.s32.totalorder %v32, %v56
    %vm60 = vcmp.eq.s32.totalorder %v33, %v56
    %vm61 = vcmp.eq.s32.totalorder %v34, %v56
    %vm62 = vcmp.eq.s32.totalorder %v35, %v56
    %v63 = vsel %vm57, 1, 0
    %v64 = vsel %vm58, 1, 0
    %v65 = vsel %vm59, 1, 0
    %v66 = vsel %vm60, 1, 0
    %v67 = vsel %vm61, 1, 0
    %v68 = vsel %vm62, 1, 0
    %v69 = vcvt.s32.f32 %v63
    %v70 = vcvt.s32.f32 %v64
    %v71 = vcvt.s32.f32 %v65
    %v72 = vcvt.s32.f32 %v66
    %v73 = vcvt.s32.f32 %v67
    %v74 = vcvt.s32.f32 %v68
    %v75 = vadd.f32 %v50, %v69
    %v76 = vadd.f32 %v51, %v70
    %v77 = vadd.f32 %v52, %v71
    %v78 = vadd.f32 %v53, %v72
    %v79 = vadd.f32 %v54, %v73
    %v80 = vadd.f32 %v55, %v74
    %v81 = vadd.s32 %v56, 3
    %vm82 = vcmp.eq.s32.totalorder %v30, %v81
    %vm83 = vcmp.eq.s32.totalorder %v31, %v81
    %vm84 = vcmp.eq.s32.totalorder %v32, %v81
    %vm85 = vcmp.eq.s32.totalorder %v33, %v81
    %vm86 = vcmp.eq.s32.totalorder %v34, %v81
    %vm87 = vcmp.eq.s32.totalorder %v35, %v81
    %v88 = vsel %vm82, 1, 0
    %v89 = vsel %vm83, 1, 0
    %v90 = vsel %vm84, 1, 0
    %v91 = vsel %vm85, 1, 0
    %v92 = vsel %vm86, 1, 0
    %v93 = vsel %vm87, 1, 0
    %v94 = vcvt.s32.f32 %v88
    %v95 = vcvt.s32.f32 %v89
    %v96 = vcvt.s32.f32 %v90
    %v97 = vcvt.s32.f32 %v91
    %v98 = vcvt.s32.f32 %v92
    %v99 = vcvt.s32.f32 %v93
    %106 = vrot.lane.b32.xlu0 %v94, 3
    %v107 = vpop.permute.xlu0 %106
    %108 = vrot.lane.b32.xlu0 %v95, 3
    %v109 = vpop.permute.xlu0 %108
    %110 = vrot.lane.b32.xlu0 %v96, 3
    %v111 = vpop.permute.xlu0 %110
    %112 = vrot.lane.b32.xlu0 %v97, 3
    %v113 = vpop.permute.xlu0 %112
    %114 = vrot.lane.b32.xlu0 %v98, 3
    %v115 = vpop.permute.xlu0 %114
    %116 = vrot.lane.b32.xlu0 %v99, 3
    %v117 = vpop.permute.xlu0 %116
    %v124 = vadd.f32 %v50, %v107
    %v125 = vadd.f32 %v51, %v109
    %v126 = vadd.f32 %v52, %v111
    %v127 = vadd.f32 %v53, %v113
    %v128 = vadd.f32 %v54, %v115
    %v129 = vadd.f32 %v55, %v117
    %v130 = vsel %vm38, 1, 0
    %v131 = vsel %vm39, 1, 0
    %v132 = vsel %vm40, 1, 0
    %v133 = vsel %vm41, 1, 0
    %v134 = vsel %vm42, 1, 0
    %v135 = vsel %vm43, 1, 0
    %v136 = vcvt.s32.f32 %v130
    %v137 = vcvt.s32.f32 %v131
    %v138 = vcvt.s32.f32 %v132
    %v139 = vcvt.s32.f32 %v133
    %v140 = vcvt.s32.f32 %v134
    %v141 = vcvt.s32.f32 %v135
    %v142 = vld [vmem:[#allocation2] sm:$0x7]
    %v143 = vld [vmem:[%s2] sm:$0x1]
    %v144 = vlaneseq
    %v145 = vshrl.u32 %v144, 7
    %v146 = vsub.s32 0, %v145
    %v147 = vrot.slane %v143, %v146
    %v148 = vmul.f32 %v136, %v147
    %v149 = vmul.f32 %v137, %v147
    %v150 = vmul.f32 %v138, %v147
    %v151 = vmul.f32 %v139, %v147
    %v152 = vmul.f32 %v140, %v147
    %v153 = vmul.f32 %v141, %v147
    %vm154 = vcmask 23552
    %v156 = vsel %vm154, %v75, 0
    %v159 = vsel %vm154, %v76, 0
    %v162 = vsel %vm154, %v77, 0
    %v165 = vsel %vm154, %v78, 0
    %v168 = vsel %vm154, %v79, 0
    %v171 = vsel %vm154, %v80, 0
    %vm173 = vcmask 1042432
    %v175 = vsel %vm173, %v142, 0
    %177 = vmatprep.subr.mxu0 0.0
    %178 = vmatpush1.msra.mxu0 %v175
    %179 = vmatprep.subr.mxu0 0.0
    %180 = vmatpush1.msra.mxu0 0.0
    %181 = vmatprep.subr.mxu0 0.0
    %182 = vmatpush1.msra.mxu0 0.0
    %183 = vmatprep.subr.mxu0 0.0
    %184 = vmatpush1.msra.mxu0 0.0
    %185 = vmatprep.subr.mxu0 0.0
    %186 = vmatpush1.msra.mxu0 0.0
    %187 = vmatprep.subr.mxu0 0.0
    %188 = vmatpush1.msra.mxu0 0.0
    %189 = vmatprep.subr.mxu0 0.0
    %190 = vmatpush1.msra.mxu0 0.0
    %191 = vmatprep.subr.mxu0 0.0
    %192 = vmatpush1.msra.mxu0 0.0
    %193 = vmatprep.subr.mxu0 0.0
    %194 = vmatpush1.msra.mxu0 0.0
    %195 = vmatprep.subr.mxu0 0.0
    %196 = vmatpush1.msra.mxu0 0.0
    %197 = vmatprep.subr.mxu0 0.0
    %198 = vmatpush1.msra.mxu0 0.0
    %199 = vmatprep.subr.mxu0 0.0
    %200 = vmatpush1.msra.mxu0 0.0
    %201 = vmatprep.subr.mxu0 0.0
    %202 = vmatpush1.msra.mxu0 0.0
    %203 = vmatprep.subr.mxu0 0.0
    %204 = vmatpush1.msra.mxu0 0.0
    %205 = vmatprep.subr.mxu0 0.0
    %206 = vmatpush1.msra.mxu0 0.0
    %207 = vmatprep.subr.mxu0 0.0
    %208 = vmatpush1.msra.mxu0 0.0
    %209 = vmatprep.subr.mxu0 0.0
    %210 = vmatpush1.msra.mxu0 0.0
    %211 = vmatprep.subr.mxu0 0.0
    %212 = vmatpush1.msra.mxu0 0.0
    %213 = vmatprep.subr.mxu0 0.0
    %214 = vmatpush1.msra.mxu0 0.0
    %215 = vmatprep.subr.mxu0 0.0
    %216 = vmatpush1.msra.mxu0 0.0
    %217 = vmatprep.subr.mxu0 0.0
    %218 = vmatpush1.msra.mxu0 0.0
    %219 = vmatprep.subr.mxu0 0.0
    %220 = vmatpush1.msra.mxu0 0.0
    %221 = vmatprep.subr.mxu0 0.0
    %222 = vmatpush1.msra.mxu0 0.0
    %223 = vmatprep.subr.mxu0 0.0
    %224 = vmatpush1.msra.mxu0 0.0
    %225 = vmatprep.subr.mxu0 0.0
    %226 = vmatpush1.msra.mxu0 0.0
    %227 = vmatprep.subr.mxu0 0.0
    %228 = vmatpush1.msra.mxu0 0.0
    %229 = vmatprep.subr.mxu0 0.0
    %230 = vmatpush1.msra.mxu0 0.0
    %231 = vmatprep.subr.mxu0 0.0
    %232 = vmatpush1.msra.mxu0 0.0
    %233 = vmatprep.subr.mxu0 0.0
    %234 = vmatpush1.msra.mxu0 0.0
    %235 = vmatprep.subr.mxu0 0.0
    %236 = vmatpush1.msra.mxu0 0.0
    %237 = vmatprep.subr.mxu0 0.0
    %238 = vmatpush1.msra.mxu0 0.0
    %239 = vmatprep.subr.mxu0 0.0
    %240 = vmatpush1.msra.mxu0 0.0
    %241 = vmatprep.mubr.f32.mxu0 0.0
    %242 = vmatmul.mubr.f32.gmra.mrb[0].mxu0 %v156
    %v243 = vpop.f32.mrb[0].mxu0
    %v244 = vadd.f32 %v148, %v243
    %v245 = vpop.f32.mrb[0].mxu0
    %246 = vmatprep.mubr.f32.mxu0 0.0
    %247 = vmatmul.mubr.f32.gmra.mrb[0].mxu0 %v159
    %v248 = vpop.f32.mrb[0].mxu0
    %v249 = vadd.f32 %v149, %v248
    %v250 = vpop.f32.mrb[0].mxu0
    %251 = vmatprep.mubr.f32.mxu0 0.0
    %252 = vmatmul.mubr.f32.gmra.mrb[0].mxu0 %v162
    %v253 = vpop.f32.mrb[0].mxu0
    %v254 = vadd.f32 %v150, %v253
    %v255 = vpop.f32.mrb[0].mxu0
    %256 = vmatprep.mubr.f32.mxu0 0.0
    %257 = vmatmul.mubr.f32.gmra.mrb[0].mxu0 %v165
    %v258 = vpop.f32.mrb[0].mxu0
    %v259 = vadd.f32 %v151, %v258
    %v260 = vpop.f32.mrb[0].mxu0
    %261 = vmatprep.mubr.f32.mxu0 0.0
    %262 = vmatmul.mubr.f32.gmra.mrb[0].mxu0 %v168
    %v263 = vpop.f32.mrb[0].mxu0
    %v264 = vadd.f32 %v152, %v263
    %v265 = vpop.f32.mrb[0].mxu0
    %266 = vmatprep.mubr.f32.mxu0 0.0
    %267 = vmatmul.mubr.f32.gmra.mrb[0].mxu0 %v171
    %v268 = vpop.f32.mrb[0].mxu0
    %v269 = vadd.f32 %v153, %v268
    %v270 = vpop.f32.mrb[0].mxu0
    %271 = vdwg.mxu0
    %v272 = vand.u32 2147483647, %v244
    %v273 = vsub.f32 0.0, %v272
    %v274 = vmul.f32 %v273, 1.442695
    %v275 = vpow.pop %v274
    %v276 = vmax.f32 %v244, 0.0
    %v277 = vadd.f32 %v275, 1.0
    %v278 = vlog2.pop %v277
    %v279 = vmul.f32 %v278, 0.6931472
    %v280 = vadd.f32 %v276, %v279
    %v281 = vrcp.pop %v277
    %v282 = vmul.f32 1.0, %v281
    %vm283 = vcmp.ge.f32.partialorder %v244, 0.0
    %v284 = vmul.f32 %v275, %v282
    %v285 = vsel %vm283, %v282, %v284
    %v286 = vsub.f32 1.0, %v285
    %v287 = vmul.f32 %v285, %v286
    %v288 = vlaneseq
    %v289 = vshrl.u32 %v288, 7
    %v290 = vsub.s32 0, %v289
    %v291 = vrot.slane %v285, %v290
    %v292 = vmul.f32 %v291, %v244
    %v293 = vmul.f32 %v291, %v249
    %v294 = vmul.f32 %v291, %v254
    %v295 = vmul.f32 %v291, %v259
    %v296 = vmul.f32 %v291, %v264
    %v297 = vmul.f32 %v291, %v269
    %v298 = vlaneseq
    %v299 = vshrl.u32 %v298, 7
    %v300 = vsub.s32 1, %v299
    %v301 = vrot.slane %v244, %v300
    %v302 = vmul.f32 %v301, %v244
    %v303 = vlaneseq
    %v304 = vshrl.u32 %v303, 7
    %v305 = vsub.s32 2, %v304
    %v306 = vrot.slane %v244, %v305
    %v307 = vmul.f32 %v306, %v244
    %v308 = vlaneseq
    %v309 = vshrl.u32 %v308, 7
    %v310 = vsub.s32 3, %v309
    %v311 = vrot.slane %v244, %v310
    %v312 = vmul.f32 %v311, %v244
    %v313 = vlaneseq
    %v314 = vshrl.u32 %v313, 7
    %v315 = vsub.s32 4, %v314
    %v316 = vrot.slane %v244, %v315
    %v317 = vmul.f32 %v316, %v244
    %v318 = vlaneseq
    %v319 = vshrl.u32 %v318, 7
    %v320 = vsub.s32 5, %v319
    %v321 = vrot.slane %v244, %v320
    %v322 = vmul.f32 %v321, %v244
    %v323 = vlaneseq
    %v324 = vshrl.u32 %v323, 7
    %v325 = vsub.s32 6, %v324
    %v326 = vrot.slane %v244, %v325
    %v327 = vmul.f32 %v326, %v244
    %v329 = vrot.slane %v302, 1
    %v332 = vrot.slane %v307, 3
    %v335 = vrot.slane %v312, 5
    %v338 = vrot.slane %v317, 7
    %v341 = vrot.slane %v322, 1
    %v344 = vrot.slane %v327, 3
    %vm346 = vcmask 1045504
    %v347 = vsel %vm346, %v329, %v332
    %vm348 = vcmask 1043456
    %v349 = vsel %vm348, %v332, %v335
    %vm350 = vcmask 1041408
    %v351 = vsel %vm350, %v335, %v338
    %v352 = vsel %vm346, %v341, %v344
    %v353 = vlaneseq
    %v354 = vshrl.u32 %v353, 7
    %v355 = vsub.s32 0, %v354
    %v356 = vrot.slane %v287, %v355
    %v357 = vmul.f32 %v356, %v347
    %v358 = vmul.f32 %v356, %v349
    %v359 = vmul.f32 %v356, %v351
    %v360 = vmul.f32 %v356, %v352
    %v361 = vmul.f32 %v356, %v344
    %vm367 = vcmask 1046528
    %v368 = vrot.slane %v357, 1
    %v369 = vrot.slane %v358, 1
    %v370 = vsel %vm367, %v368, %v369
    %v371 = vrot.slane %v359, 1
    %v372 = vsel %vm367, %v369, %v371
    %v373 = vrot.slane %v360, 1
    %v374 = vsel %vm367, %v371, %v373
    %v375 = vrot.slane %v361, 1
    %v376 = vsel %vm367, %v373, %v375
    %v383 = vadd.f32 %v292, %v368
    %v384 = vadd.f32 %v293, %v370
    %v385 = vadd.f32 %v294, %v372
    %v386 = vadd.f32 %v295, %v374
    %v387 = vadd.f32 %v296, %v376
    %v388 = vadd.f32 %v297, %v375
    %vm389 = vcmask 1040384
    %v390 = vsel %vm389, %v280, %v292
    %v391 = vsel %vm367, %v390, %v383
    %393 = vrot.lane.b32.xlu0 %v244, 67
    %v394 = vpop.permute.xlu0 %393
    %v396 = vmul.f32 %v124, %v394
    %v397 = vlaneseq
    %v398 = vshrl.u32 %v397, 7
    %v399 = vsub.s32 0, %v398
    %v400 = vrot.slane %v124, %v399
    %v401 = vrot.slane %v244, 1
    %402 = vrot.lane.b32.xlu0 %v401, 67
    %v403 = vpop.permute.xlu0 %402
    %v405 = vmul.f32 %v400, %v403
    %v406 = vlaneseq
    %v407 = vshrl.u32 %v406, 7
    %v408 = vsub.s32 0, %v407
    %v409 = vrot.slane %v244, %v408
    %v411 = vrot.slane %v124, 1
    %412 = vrot.lane.b32.xlu0 %v411, 61
    %v413 = vpop.permute.xlu0 %412
    %v415 = vmul.f32 %v409, %v413
    %417 = vrot.lane.b32.xlu0 %v415, 67
    %v418 = vpop.permute.xlu0 %417
    %v420 = vadd.f32 %v405, %v418
    %v426 = vrot.slane %v244, 7
    %v427 = vrot.slane %v249, 7
    %v428 = vsel %vm389, %v426, %v427
    %v429 = vrot.slane %v254, 7
    %v430 = vsel %vm389, %v427, %v429
    %v431 = vrot.slane %v259, 7
    %v432 = vsel %vm389, %v429, %v431
    %v433 = vrot.slane %v264, 7
    %v434 = vsel %vm389, %v431, %v433
    %v435 = vrot.slane %v269, 7
    %v436 = vsel %vm389, %v433, %v435
    %437 = vrot.lane.b32.xlu0 %v428, 67
    %v438 = vpop.permute.xlu0 %437
    %439 = vrot.lane.b32.xlu0 %v430, 67
    %v440 = vpop.permute.xlu0 %439
    %441 = vrot.lane.b32.xlu0 %v432, 67
    %v442 = vpop.permute.xlu0 %441
    %443 = vrot.lane.b32.xlu0 %v434, 67
    %v444 = vpop.permute.xlu0 %443
    %445 = vrot.lane.b32.xlu0 %v436, 67
    %v446 = vpop.permute.xlu0 %445
    %v452 = vmul.f32 %v400, %v438
    %v453 = vmul.f32 %v400, %v440
    %v454 = vmul.f32 %v400, %v442
    %v455 = vmul.f32 %v400, %v444
    %v456 = vmul.f32 %v400, %v446
    %v462 = vrot.slane %v124, 7
    %v463 = vrot.slane %v125, 7
    %v464 = vsel %vm389, %v462, %v463
    %v465 = vrot.slane %v126, 7
    %v466 = vsel %vm389, %v463, %v465
    %v467 = vrot.slane %v127, 7
    %v468 = vsel %vm389, %v465, %v467
    %v469 = vrot.slane %v128, 7
    %v470 = vsel %vm389, %v467, %v469
    %v471 = vrot.slane %v129, 7
    %v472 = vsel %vm389, %v469, %v471
    %473 = vrot.lane.b32.xlu0 %v464, 61
    %v474 = vpop.permute.xlu0 %473
    %475 = vrot.lane.b32.xlu0 %v466, 61
    %v476 = vpop.permute.xlu0 %475
    %477 = vrot.lane.b32.xlu0 %v468, 61
    %v478 = vpop.permute.xlu0 %477
    %479 = vrot.lane.b32.xlu0 %v470, 61
    %v480 = vpop.permute.xlu0 %479
    %481 = vrot.lane.b32.xlu0 %v472, 61
    %v482 = vpop.permute.xlu0 %481
    %v488 = vmul.f32 %v409, %v474
    %v489 = vmul.f32 %v409, %v476
    %v490 = vmul.f32 %v409, %v478
    %v491 = vmul.f32 %v409, %v480
    %v492 = vmul.f32 %v409, %v482
    %498 = vrot.lane.b32.xlu0 %v488, 67
    %v499 = vpop.permute.xlu0 %498
    %500 = vrot.lane.b32.xlu0 %v489, 67
    %v501 = vpop.permute.xlu0 %500
    %502 = vrot.lane.b32.xlu0 %v490, 67
    %v503 = vpop.permute.xlu0 %502
    %504 = vrot.lane.b32.xlu0 %v491, 67
    %v505 = vpop.permute.xlu0 %504
    %506 = vrot.lane.b32.xlu0 %v492, 67
    %v507 = vpop.permute.xlu0 %506
    %v513 = vadd.f32 %v452, %v499
    %v514 = vadd.f32 %v453, %v501
    %v515 = vadd.f32 %v454, %v503
    %v516 = vadd.f32 %v455, %v505
    %v517 = vadd.f32 %v456, %v507
    %v518 = vlaneseq
    %v519 = vshrl.u32 %v518, 7
    %v520 = vsub.s32 1, %v519
    %v521 = vrot.slane %v124, %v520
    %v522 = vmul.f32 %v521, %v403
    %v523 = vmul.f32 %v301, %v413
    %525 = vrot.lane.b32.xlu0 %v523, 67
    %v526 = vpop.permute.xlu0 %525
    %v528 = vadd.f32 %v522, %v526
    %v529 = vlaneseq
    %v530 = vshrl.u32 %v529, 7
    %v531 = vsub.s32 2, %v530
    %v532 = vrot.slane %v124, %v531
    %v533 = vmul.f32 %v532, %v403
    %v534 = vmul.f32 %v306, %v413
    %536 = vrot.lane.b32.xlu0 %v534, 67
    %v537 = vpop.permute.xlu0 %536
    %v539 = vadd.f32 %v533, %v537
    %v540 = vlaneseq
    %v541 = vshrl.u32 %v540, 7
    %v542 = vsub.s32 3, %v541
    %v543 = vrot.slane %v124, %v542
    %v544 = vmul.f32 %v543, %v403
    %v545 = vmul.f32 %v311, %v413
    %547 = vrot.lane.b32.xlu0 %v545, 67
    %v548 = vpop.permute.xlu0 %547
    %v550 = vadd.f32 %v544, %v548
    %v551 = vlaneseq
    %v552 = vshrl.u32 %v551, 7
    %v553 = vsub.s32 4, %v552
    %v554 = vrot.slane %v124, %v553
    %v555 = vmul.f32 %v554, %v403
    %v556 = vmul.f32 %v316, %v413
    %558 = vrot.lane.b32.xlu0 %v556, 67
    %v559 = vpop.permute.xlu0 %558
    %v561 = vadd.f32 %v555, %v559
    %v562 = vlaneseq
    %v563 = vshrl.u32 %v562, 7
    %v564 = vsub.s32 5, %v563
    %v565 = vrot.slane %v124, %v564
    %v566 = vmul.f32 %v565, %v403
    %v567 = vmul.f32 %v321, %v413
    %569 = vrot.lane.b32.xlu0 %v567, 67
    %v570 = vpop.permute.xlu0 %569
    %v572 = vadd.f32 %v566, %v570
    %v573 = vlaneseq
    %v574 = vshrl.u32 %v573, 7
    %v575 = vsub.s32 6, %v574
    %v576 = vrot.slane %v124, %v575
    %v577 = vmul.f32 %v576, %v403
    %v578 = vmul.f32 %v326, %v413
    %580 = vrot.lane.b32.xlu0 %v578, 67
    %v581 = vpop.permute.xlu0 %580
    %v583 = vadd.f32 %v577, %v581
    %v585 = vrot.slane %v539, 2
    %v588 = vrot.slane %v550, 4
    %v591 = vrot.slane %v561, 6
    %v594 = vrot.slane %v583, 2
    %v596 = vsel %vm346, %v528, %v585
    %v597 = vsel %vm348, %v585, %v588
    %v598 = vsel %vm350, %v588, %v591
    %v599 = vsel %vm346, %v572, %v594
    %v600 = vadd.f32 %v513, %v596
    %v601 = vadd.f32 %v514, %v597
    %v602 = vadd.f32 %v515, %v598
    %v603 = vadd.f32 %v516, %v599
    %v604 = vadd.f32 %v517, %v594
    %v606 = vrot.slane %v420, 7
    %v613 = vrot.slane %v600, 1
    %v614 = vrot.slane %v601, 1
    %v615 = vsel %vm367, %v613, %v614
    %v616 = vrot.slane %v602, 1
    %v617 = vsel %vm367, %v614, %v616
    %v618 = vrot.slane %v603, 1
    %v619 = vsel %vm367, %v616, %v618
    %v620 = vrot.slane %v604, 1
    %v621 = vsel %vm367, %v618, %v620
    %v623 = vsel %vm389, %v396, %v606
    %v624 = vsel %vm367, %v623, %v613
    %626 = vrot.lane.b32.xlu0 %v624, 125
    %v627 = vpop.permute.xlu0 %626
    %628 = vrot.lane.b32.xlu0 %v615, 125
    %v629 = vpop.permute.xlu0 %628
    %630 = vrot.lane.b32.xlu0 %v617, 125
    %v631 = vpop.permute.xlu0 %630
    %632 = vrot.lane.b32.xlu0 %v619, 125
    %v633 = vpop.permute.xlu0 %632
    %634 = vrot.lane.b32.xlu0 %v621, 125
    %v635 = vpop.permute.xlu0 %634
    %636 = vrot.lane.b32.xlu0 %v620, 125
    %v637 = vpop.permute.xlu0 %636
    %644 = vrot.lane.b32.xlu0 %v75, 3
    %v645 = vpop.permute.xlu0 %644
    %646 = vrot.lane.b32.xlu0 %v76, 3
    %v647 = vpop.permute.xlu0 %646
    %648 = vrot.lane.b32.xlu0 %v77, 3
    %v649 = vpop.permute.xlu0 %648
    %650 = vrot.lane.b32.xlu0 %v78, 3
    %v651 = vpop.permute.xlu0 %650
    %652 = vrot.lane.b32.xlu0 %v79, 3
    %v653 = vpop.permute.xlu0 %652
    %654 = vrot.lane.b32.xlu0 %v80, 3
    %v655 = vpop.permute.xlu0 %654
    %v662 = vsel %vm154, %v627, %v645
    %v663 = vsel %vm154, %v629, %v647
    %v664 = vsel %vm154, %v631, %v649
    %v665 = vsel %vm154, %v633, %v651
    %v666 = vsel %vm154, %v635, %v653
    %v667 = vsel %vm154, %v637, %v655
    %v668 = vld [vmem:[#allocation2 + $0x8] sm:$0x3f]
    %v669 = vld [vmem:[%s2 + $0x1] sm:$0x1]
    %v670 = vlaneseq
    %v671 = vshrl.u32 %v670, 7
    %v672 = vsub.s32 0, %v671
    %v673 = vrot.slane %v669, %v672
    %v674 = vmul.f32 %v136, %v673
    %v675 = vmul.f32 %v137, %v673
    %v676 = vmul.f32 %v138, %v673
    %v677 = vmul.f32 %v139, %v673
    %v678 = vmul.f32 %v140, %v673
    %v679 = vmul.f32 %v141, %v673
    %vm680 = vcmask 48128
    %v682 = vsel %vm680, %v662, 0
    %v685 = vsel %vm680, %v663, 0
    %v688 = vsel %vm680, %v664, 0
    %v691 = vsel %vm680, %v665, 0
    %v694 = vsel %vm680, %v666, 0
    %v697 = vsel %vm680, %v667, 0
    %v700 = vsel %vm346, %v668, 0
    %702 = vmatprep.subr.mxu0 0.0
    %703 = vmatpush1.msra.mxu0 %v700
    %704 = vmatprep.subr.mxu0 0.0
    %705 = vmatpush1.msra.mxu0 0.0
    %706 = vmatprep.subr.mxu0 0.0
    %707 = vmatpush1.msra.mxu0 0.0
    %708 = vmatprep.subr.mxu0 0.0
    %709 = vmatpush1.msra.mxu0 0.0
    %710 = vmatprep.subr.mxu0 0.0
    %711 = vmatpush1.msra.mxu0 0.0
    %712 = vmatprep.subr.mxu0 0.0
    %713 = vmatpush1.msra.mxu0 0.0
    %714 = vmatprep.subr.mxu0 0.0
    %715 = vmatpush1.msra.mxu0 0.0
    %716 = vmatprep.subr.mxu0 0.0
    %717 = vmatpush1.msra.mxu0 0.0
    %718 = vmatprep.subr.mxu0 0.0
    %719 = vmatpush1.msra.mxu0 0.0
    %720 = vmatprep.subr.mxu0 0.0
    %721 = vmatpush1.msra.mxu0 0.0
    %722 = vmatprep.subr.mxu0 0.0
    %723 = vmatpush1.msra.mxu0 0.0
    %724 = vmatprep.subr.mxu0 0.0
    %725 = vmatpush1.msra.mxu0 0.0
    %726 = vmatprep.subr.mxu0 0.0
    %727 = vmatpush1.msra.mxu0 0.0
    %728 = vmatprep.subr.mxu0 0.0
    %729 = vmatpush1.msra.mxu0 0.0
    %730 = vmatprep.subr.mxu0 0.0
    %731 = vmatpush1.msra.mxu0 0.0
    %732 = vmatprep.subr.mxu0 0.0
    %733 = vmatpush1.msra.mxu0 0.0
    %734 = vmatprep.subr.mxu0 0.0
    %735 = vmatpush1.msra.mxu0 0.0
    %736 = vmatprep.subr.mxu0 0.0
    %737 = vmatpush1.msra.mxu0 0.0
    %738 = vmatprep.subr.mxu0 0.0
    %739 = vmatpush1.msra.mxu0 0.0
    %740 = vmatprep.subr.mxu0 0.0
    %741 = vmatpush1.msra.mxu0 0.0
    %742 = vmatprep.subr.mxu0 0.0
    %743 = vmatpush1.msra.mxu0 0.0
    %744 = vmatprep.subr.mxu0 0.0
    %745 = vmatpush1.msra.mxu0 0.0
    %746 = vmatprep.subr.mxu0 0.0
    %747 = vmatpush1.msra.mxu0 0.0
    %748 = vmatprep.subr.mxu0 0.0
    %749 = vmatpush1.msra.mxu0 0.0
    %750 = vmatprep.subr.mxu0 0.0
    %751 = vmatpush1.msra.mxu0 0.0
    %752 = vmatprep.subr.mxu0 0.0
    %753 = vmatpush1.msra.mxu0 0.0
    %754 = vmatprep.subr.mxu0 0.0
    %755 = vmatpush1.msra.mxu0 0.0
    %756 = vmatprep.subr.mxu0 0.0
    %757 = vmatpush1.msra.mxu0 0.0
    %758 = vmatprep.subr.mxu0 0.0
    %759 = vmatpush1.msra.mxu0 0.0
    %760 = vmatprep.subr.mxu0 0.0
    %761 = vmatpush1.msra.mxu0 0.0
    %762 = vmatprep.subr.mxu0 0.0
    %763 = vmatpush1.msra.mxu0 0.0
    %764 = vmatprep.subr.mxu0 0.0
    %765 = vmatpush1.msra.mxu0 0.0
    %766 = vmatprep.mubr.f32.mxu0 0.0
    %767 = vmatmul.mubr.f32.gmra.mrb[0].mxu0 %v682
    %v768 = vpop.f32.mrb[0].mxu0
    %v769 = vadd.f32 %v674, %v768
    %v770 = vpop.f32.mrb[0].mxu0
    %771 = vmatprep.mubr.f32.mxu0 0.0
    %772 = vmatmul.mubr.f32.gmra.mrb[0].mxu0 %v685
    %v773 = vpop.f32.mrb[0].mxu0
    %v774 = vadd.f32 %v675, %v773
    %v775 = vpop.f32.mrb[0].mxu0
    %776 = vmatprep.mubr.f32.mxu0 0.0
    %777 = vmatmul.mubr.f32.gmra.mrb[0].mxu0 %v688
    %v778 = vpop.f32.mrb[0].mxu0
    %v779 = vadd.f32 %v676, %v778
    %v780 = vpop.f32.mrb[0].mxu0
    %781 = vmatprep.mubr.f32.mxu0 0.0
    %782 = vmatmul.mubr.f32.gmra.mrb[0].mxu0 %v691
    %v783 = vpop.f32.mrb[0].mxu0
    %v784 = vadd.f32 %v677, %v783
    %v785 = vpop.f32.mrb[0].mxu0
    %786 = vmatprep.mubr.f32.mxu0 0.0
    %787 = vmatmul.mubr.f32.gmra.mrb[0].mxu0 %v694
    %v788 = vpop.f32.mrb[0].mxu0
    %v789 = vadd.f32 %v678, %v788
    %v790 = vpop.f32.mrb[0].mxu0
    %791 = vmatprep.mubr.f32.mxu0 0.0
    %792 = vmatmul.mubr.f32.gmra.mrb[0].mxu0 %v697
    %v793 = vpop.f32.mrb[0].mxu0
    %v794 = vadd.f32 %v679, %v793
    %v795 = vpop.f32.mrb[0].mxu0
    %796 = vdwg.mxu0
    %v797 = vand.u32 2147483647, %v769
    %v798 = vsub.f32 0.0, %v797
    %v799 = vmul.f32 %v798, 1.442695
    %v800 = vpow.pop %v799
    %v801 = vmax.f32 %v769, 0.0
    %v802 = vadd.f32 %v800, 1.0
    %v803 = vlog2.pop %v802
    %v804 = vmul.f32 %v803, 0.6931472
    %v805 = vadd.f32 %v801, %v804
    %v806 = vrcp.pop %v802
    %v807 = vmul.f32 1.0, %v806
    %vm808 = vcmp.ge.f32.partialorder %v769, 0.0
    %v809 = vmul.f32 %v800, %v807
    %v810 = vsel %vm808, %v807, %v809
    %v811 = vsub.f32 1.0, %v810
    %v812 = vmul.f32 %v810, %v811
    %v813 = vlaneseq
    %v814 = vshrl.u32 %v813, 7
    %v815 = vsub.s32 0, %v814
    %v816 = vrot.slane %v810, %v815
    %v817 = vmul.f32 %v816, %v769
    %v818 = vmul.f32 %v816, %v774
    %v819 = vmul.f32 %v816, %v779
    %v820 = vmul.f32 %v816, %v784
    %v821 = vmul.f32 %v816, %v789
    %v822 = vmul.f32 %v816, %v794
    %v823 = vlaneseq
    %v824 = vshrl.u32 %v823, 7
    %v825 = vsub.s32 1, %v824
    %v826 = vrot.slane %v769, %v825
    %v827 = vmul.f32 %v826, %v769
    %v828 = vlaneseq
    %v829 = vshrl.u32 %v828, 7
    %v830 = vsub.s32 2, %v829
    %v831 = vrot.slane %v769, %v830
    %v832 = vmul.f32 %v831, %v769
    %v833 = vlaneseq
    %v834 = vshrl.u32 %v833, 7
    %v835 = vsub.s32 3, %v834
    %v836 = vrot.slane %v769, %v835
    %v837 = vmul.f32 %v836, %v769
    %v838 = vlaneseq
    %v839 = vshrl.u32 %v838, 7
    %v840 = vsub.s32 4, %v839
    %v841 = vrot.slane %v769, %v840
    %v842 = vmul.f32 %v841, %v769
    %v843 = vlaneseq
    %v844 = vshrl.u32 %v843, 7
    %v845 = vsub.s32 5, %v844
    %v846 = vrot.slane %v769, %v845
    %v847 = vmul.f32 %v846, %v769
    %v848 = vlaneseq
    %v849 = vshrl.u32 %v848, 7
    %v850 = vsub.s32 6, %v849
    %v851 = vrot.slane %v769, %v850
    %v852 = vmul.f32 %v851, %v769
    %v854 = vrot.slane %v827, 1
    %v857 = vrot.slane %v832, 3
    %v860 = vrot.slane %v837, 5
    %v863 = vrot.slane %v842, 7
    %v866 = vrot.slane %v847, 1
    %v869 = vrot.slane %v852, 3
    %v871 = vsel %vm346, %v854, %v857
    %v872 = vsel %vm348, %v857, %v860
    %v873 = vsel %vm350, %v860, %v863
    %v874 = vsel %vm346, %v866, %v869
    %v875 = vlaneseq
    %v876 = vshrl.u32 %v875, 7
    %v877 = vsub.s32 0, %v876
    %v878 = vrot.slane %v812, %v877
    %v879 = vmul.f32 %v878, %v871
    %v880 = vmul.f32 %v878, %v872
    %v881 = vmul.f32 %v878, %v873
    %v882 = vmul.f32 %v878, %v874
    %v883 = vmul.f32 %v878, %v869
    %v889 = vrot.slane %v879, 1
    %v890 = vrot.slane %v880, 1
    %v891 = vsel %vm367, %v889, %v890
    %v892 = vrot.slane %v881, 1
    %v893 = vsel %vm367, %v890, %v892
    %v894 = vrot.slane %v882, 1
    %v895 = vsel %vm367, %v892, %v894
    %v896 = vrot.slane %v883, 1
    %v897 = vsel %vm367, %v894, %v896
    %v904 = vadd.f32 %v817, %v889
    %v905 = vadd.f32 %v818, %v891
    %v906 = vadd.f32 %v819, %v893
    %v907 = vadd.f32 %v820, %v895
    %v908 = vadd.f32 %v821, %v897
    %v909 = vadd.f32 %v822, %v896
    %v910 = vsel %vm389, %v805, %v817
    %v911 = vsel %vm367, %v910, %v904
    %v912 = vld [vmem:[#allocation2 + $0x10] sm:$0xff]
    %v913 = vld [vmem:[#allocation2 + $0x18] sm:$0xff]
    %v914 = vld [vmem:[#allocation2 + $0x20] sm:$0xff]
    %v915 = vld [vmem:[#allocation2 + $0x28] sm:$0xff]
    %v916 = vld [vmem:[#allocation2 + $0x30] sm:$0xff]
    %v917 = vld [vmem:[#allocation2 + $0x38] sm:$0xff]
    %v918 = vld [vmem:[#allocation2 + $0x40] sm:$0xff]
    %v919 = vld [vmem:[#allocation2 + $0x48] sm:$0xff]
    %v920 = vld [vmem:[%s2 + $0x2] sm:$0x1]
    %v921 = vlaneseq
    %v922 = vshrl.u32 %v921, 7
    %v923 = vsub.s32 0, %v922
    %v924 = vrot.slane %v920, %v923
    %v925 = vmul.f32 %v136, %v924
    %v926 = vmul.f32 %v137, %v924
    %v927 = vmul.f32 %v138, %v924
    %v928 = vmul.f32 %v139, %v924
    %v929 = vmul.f32 %v140, %v924
    %v930 = vmul.f32 %v141, %v924
    %vm931 = vcmask 523264
    %v933 = vsel %vm931, %v391, 0
    %v936 = vsel %vm931, %v384, 0
    %v939 = vsel %vm931, %v385, 0
    %v942 = vsel %vm931, %v386, 0
    %v945 = vsel %vm931, %v387, 0
    %v948 = vsel %vm931, %v388, 0
    %950 = vmatprep.subr.mxu0 0.0
    %951 = vmatpush1.msra.mxu0 %v912
    %952 = vmatprep.subr.mxu0 0.0
    %953 = vmatpush1.msra.mxu0 %v913
    %954 = vmatprep.subr.mxu0 0.0
    %955 = vmatpush1.msra.mxu0 %v914
    %956 = vmatprep.subr.mxu0 0.0
    %957 = vmatpush1.msra.mxu0 %v915
    %958 = vmatprep.subr.mxu0 0.0
    %959 = vmatpush1.msra.mxu0 %v916
    %960 = vmatprep.subr.mxu0 0.0
    %961 = vmatpush1.msra.mxu0 %v917
    %962 = vmatprep.subr.mxu0 0.0
    %963 = vmatpush1.msra.mxu0 %v918
    %964 = vmatprep.subr.mxu0 0.0
    %965 = vmatpush1.msra.mxu0 %v919
    %966 = vmatprep.subr.mxu0 0.0
    %967 = vmatpush1.msra.mxu0 0.0
    %968 = vmatprep.subr.mxu0 0.0
    %969 = vmatpush1.msra.mxu0 0.0
    %970 = vmatprep.subr.mxu0 0.0
    %971 = vmatpush1.msra.mxu0 0.0
    %972 = vmatprep.subr.mxu0 0.0
    %973 = vmatpush1.msra.mxu0 0.0
    %974 = vmatprep.subr.mxu0 0.0
    %975 = vmatpush1.msra.mxu0 0.0
    %976 = vmatprep.subr.mxu0 0.0
    %977 = vmatpush1.msra.mxu0 0.0
    %978 = vmatprep.subr.mxu0 0.0
    %979 = vmatpush1.msra.mxu0 0.0
    %980 = vmatprep.subr.mxu0 0.0
    %981 = vmatpush1.msra.mxu0 0.0
    %982 = vmatprep.subr.mxu0 0.0
    %983 = vmatpush1.msra.mxu0 0.0
    %984 = vmatprep.subr.mxu0 0.0
    %985 = vmatpush1.msra.mxu0 0.0
    %986 = vmatprep.subr.mxu0 0.0
    %987 = vmatpush1.msra.mxu0 0.0
    %988 = vmatprep.subr.mxu0 0.0
    %989 = vmatpush1.msra.mxu0 0.0
    %990 = vmatprep.subr.mxu0 0.0
    %991 = vmatpush1.msra.mxu0 0.0
    %992 = vmatprep.subr.mxu0 0.0
    %993 = vmatpush1.msra.mxu0 0.0
    %994 = vmatprep.subr.mxu0 0.0
    %995 = vmatpush1.msra.mxu0 0.0
    %996 = vmatprep.subr.mxu0 0.0
    %997 = vmatpush1.msra.mxu0 0.0
    %998 = vmatprep.subr.mxu0 0.0
    %999 = vmatpush1.msra.mxu0 0.0
    %1000 = vmatprep.subr.mxu0 0.0
    %1001 = vmatpush1.msra.mxu0 0.0
    %1002 = vmatprep.subr.mxu0 0.0
    %1003 = vmatpush1.msra.mxu0 0.0
    %1004 = vmatprep.subr.mxu0 0.0
    %1005 = vmatpush1.msra.mxu0 0.0
    %1006 = vmatprep.subr.mxu0 0.0
    %1007 = vmatpush1.msra.mxu0 0.0
    %1008 = vmatprep.subr.mxu0 0.0
    %1009 = vmatpush1.msra.mxu0 0.0
    %1010 = vmatprep.subr.mxu0 0.0
    %1011 = vmatpush1.msra.mxu0 0.0
    %1012 = vmatprep.subr.mxu0 0.0
    %1013 = vmatpush1.msra.mxu0 0.0
    %1014 = vmatprep.mubr.f32.mxu0 0.0
    %1015 = vmatmul.mubr.f32.gmra.mrb[0].mxu0 %v933
    %v1016 = vpop.f32.mrb[0].mxu0
    %v1017 = vadd.f32 %v925, %v1016
    %v1018 = vpop.f32.mrb[0].mxu0
    %1019 = vmatprep.mubr.f32.mxu0 0.0
    %1020 = vmatmul.mubr.f32.gmra.mrb[0].mxu0 %v936
    %v1021 = vpop.f32.mrb[0].mxu0
    %v1022 = vadd.f32 %v926, %v1021
    %v1023 = vpop.f32.mrb[0].mxu0
    %1024 = vmatprep.mubr.f32.mxu0 0.0
    %1025 = vmatmul.mubr.f32.gmra.mrb[0].mxu0 %v939
    %v1026 = vpop.f32.mrb[0].mxu0
    %v1027 = vadd.f32 %v927, %v1026
    %v1028 = vpop.f32.mrb[0].mxu0
    %1029 = vmatprep.mubr.f32.mxu0 0.0
    %1030 = vmatmul.mubr.f32.gmra.mrb[0].mxu0 %v942
    %v1031 = vpop.f32.mrb[0].mxu0
    %v1032 = vadd.f32 %v928, %v1031
    %v1033 = vpop.f32.mrb[0].mxu0
    %1034 = vmatprep.mubr.f32.mxu0 0.0
    %1035 = vmatmul.mubr.f32.gmra.mrb[0].mxu0 %v945
    %v1036 = vpop.f32.mrb[0].mxu0
    %v1037 = vadd.f32 %v929, %v1036
    %v1038 = vpop.f32.mrb[0].mxu0
    %1039 = vmatprep.mubr.f32.mxu0 0.0
    %1040 = vmatmul.mubr.f32.gmra.mrb[0].mxu0 %v948
    %v1041 = vpop.f32.mrb[0].mxu0
    %v1042 = vadd.f32 %v930, %v1041
    %v1043 = vpop.f32.mrb[0].mxu0
    %1044 = vdwg.mxu0
    %v1045 = vand.u32 2147483647, %v1017
    %v1046 = vsub.f32 0.0, %v1045
    %v1047 = vmul.f32 %v1046, 1.442695
    %v1048 = vpow.pop %v1047
    %v1049 = vmax.f32 %v1017, 0.0
    %v1050 = vadd.f32 %v1048, 1.0
    %v1051 = vlog2.pop %v1050
    %v1052 = vmul.f32 %v1051, 0.6931472
    %v1053 = vadd.f32 %v1049, %v1052
    %v1054 = vrcp.pop %v1050
    %v1055 = vmul.f32 1.0, %v1054
    %vm1056 = vcmp.ge.f32.partialorder %v1017, 0.0
    %v1057 = vmul.f32 %v1048, %v1055
    %v1058 = vsel %vm1056, %v1055, %v1057
    %v1059 = vsub.f32 1.0, %v1058
    %v1060 = vmul.f32 %v1058, %v1059
    %v1061 = vlaneseq
    %v1062 = vshrl.u32 %v1061, 7
    %v1063 = vsub.s32 0, %v1062
    %v1064 = vrot.slane %v1058, %v1063
    %v1065 = vmul.f32 %v1064, %v1017
    %v1066 = vmul.f32 %v1064, %v1022
    %v1067 = vmul.f32 %v1064, %v1027
    %v1068 = vmul.f32 %v1064, %v1032
    %v1069 = vmul.f32 %v1064, %v1037
    %v1070 = vmul.f32 %v1064, %v1042
    %v1071 = vlaneseq
    %v1072 = vshrl.u32 %v1071, 7
    %v1073 = vsub.s32 1, %v1072
    %v1074 = vrot.slane %v1017, %v1073
    %v1075 = vmul.f32 %v1074, %v1017
    %v1076 = vlaneseq
    %v1077 = vshrl.u32 %v1076, 7
    %v1078 = vsub.s32 2, %v1077
    %v1079 = vrot.slane %v1017, %v1078
    %v1080 = vmul.f32 %v1079, %v1017
    %v1081 = vlaneseq
    %v1082 = vshrl.u32 %v1081, 7
    %v1083 = vsub.s32 3, %v1082
    %v1084 = vrot.slane %v1017, %v1083
    %v1085 = vmul.f32 %v1084, %v1017
    %v1086 = vlaneseq
    %v1087 = vshrl.u32 %v1086, 7
    %v1088 = vsub.s32 4, %v1087
    %v1089 = vrot.slane %v1017, %v1088
    %v1090 = vmul.f32 %v1089, %v1017
    %v1091 = vlaneseq
    %v1092 = vshrl.u32 %v1091, 7
    %v1093 = vsub.s32 5, %v1092
    %v1094 = vrot.slane %v1017, %v1093
    %v1095 = vmul.f32 %v1094, %v1017
    %v1096 = vlaneseq
    %v1097 = vshrl.u32 %v1096, 7
    %v1098 = vsub.s32 6, %v1097
    %v1099 = vrot.slane %v1017, %v1098
    %v1100 = vmul.f32 %v1099, %v1017
    %v1102 = vrot.slane %v1075, 1
    %v1105 = vrot.slane %v1080, 3
    %v1108 = vrot.slane %v1085, 5
    %v1111 = vrot.slane %v1090, 7
    %v1114 = vrot.slane %v1095, 1
    %v1117 = vrot.slane %v1100, 3
    %v1119 = vsel %vm346, %v1102, %v1105
    %v1120 = vsel %vm348, %v1105, %v1108
    %v1121 = vsel %vm350, %v1108, %v1111
    %v1122 = vsel %vm346, %v1114, %v1117
    %v1123 = vlaneseq
    %v1124 = vshrl.u32 %v1123, 7
    %v1125 = vsub.s32 0, %v1124
    %v1126 = vrot.slane %v1060, %v1125
    %v1127 = vmul.f32 %v1126, %v1119
    %v1128 = vmul.f32 %v1126, %v1120
    %v1129 = vmul.f32 %v1126, %v1121
    %v1130 = vmul.f32 %v1126, %v1122
    %v1131 = vmul.f32 %v1126, %v1117
    %v1137 = vrot.slane %v1127, 1
    %v1138 = vrot.slane %v1128, 1
    %v1139 = vsel %vm367, %v1137, %v1138
    %v1140 = vrot.slane %v1129, 1
    %v1141 = vsel %vm367, %v1138, %v1140
    %v1142 = vrot.slane %v1130, 1
    %v1143 = vsel %vm367, %v1140, %v1142
    %v1144 = vrot.slane %v1131, 1
    %v1145 = vsel %vm367, %v1142, %v1144
    %v1152 = vadd.f32 %v1065, %v1137
    %v1153 = vadd.f32 %v1066, %v1139
    %v1154 = vadd.f32 %v1067, %v1141
    %v1155 = vadd.f32 %v1068, %v1143
    %v1156 = vadd.f32 %v1069, %v1145
    %v1157 = vadd.f32 %v1070, %v1144
    %v1158 = vsel %vm389, %v1053, %v1065
    %v1159 = vsel %vm367, %v1158, %v1152
    %1161 = vrot.lane.b32.xlu0 %v1017, 64
    %v1162 = vpop.permute.xlu0 %1161
    %v1164 = vmul.f32 %v911, %v1162
    %v1165 = vlaneseq
    %v1166 = vshrl.u32 %v1165, 7
    %v1167 = vsub.s32 0, %v1166
    %v1168 = vrot.slane %v911, %v1167
    %v1169 = vrot.slane %v1017, 1
    %1170 = vrot.lane.b32.xlu0 %v1169, 64
    %v1171 = vpop.permute.xlu0 %1170
    %v1173 = vmul.f32 %v1168, %v1171
    %v1174 = vlaneseq
    %v1175 = vshrl.u32 %v1174, 7
    %v1176 = vsub.s32 0, %v1175
    %v1177 = vrot.slane %v1017, %v1176
    %v1179 = vrot.slane %v911, 1
    %1180 = vrot.lane.b32.xlu0 %v1179, 64
    %v1181 = vpop.permute.xlu0 %1180
    %v1183 = vmul.f32 %v1177, %v1181
    %1185 = vrot.lane.b32.xlu0 %v1183, 64
    %v1186 = vpop.permute.xlu0 %1185
    %v1188 = vadd.f32 %v1173, %v1186
    %v1194 = vrot.slane %v1017, 7
    %v1195 = vrot.slane %v1022, 7
    %v1196 = vsel %vm389, %v1194, %v1195
    %v1197 = vrot.slane %v1027, 7
    %v1198 = vsel %vm389, %v1195, %v1197
    %v1199 = vrot.slane %v1032, 7
    %v1200 = vsel %vm389, %v1197, %v1199
    %v1201 = vrot.slane %v1037, 7
    %v1202 = vsel %vm389, %v1199, %v1201
    %v1203 = vrot.slane %v1042, 7
    %v1204 = vsel %vm389, %v1201, %v1203
    %1205 = vrot.lane.b32.xlu0 %v1196, 64
    %v1206 = vpop.permute.xlu0 %1205
    %1207 = vrot.lane.b32.xlu0 %v1198, 64
    %v1208 = vpop.permute.xlu0 %1207
    %1209 = vrot.lane.b32.xlu0 %v1200, 64
    %v1210 = vpop.permute.xlu0 %1209
    %1211 = vrot.lane.b32.xlu0 %v1202, 64
    %v1212 = vpop.permute.xlu0 %1211
    %1213 = vrot.lane.b32.xlu0 %v1204, 64
    %v1214 = vpop.permute.xlu0 %1213
    %v1220 = vmul.f32 %v1168, %v1206
    %v1221 = vmul.f32 %v1168, %v1208
    %v1222 = vmul.f32 %v1168, %v1210
    %v1223 = vmul.f32 %v1168, %v1212
    %v1224 = vmul.f32 %v1168, %v1214
    %v1230 = vrot.slane %v911, 7
    %v1231 = vrot.slane %v905, 7
    %v1232 = vsel %vm389, %v1230, %v1231
    %v1233 = vrot.slane %v906, 7
    %v1234 = vsel %vm389, %v1231, %v1233
    %v1235 = vrot.slane %v907, 7
    %v1236 = vsel %vm389, %v1233, %v1235
    %v1237 = vrot.slane %v908, 7
    %v1238 = vsel %vm389, %v1235, %v1237
    %v1239 = vrot.slane %v909, 7
    %v1240 = vsel %vm389, %v1237, %v1239
    %1241 = vrot.lane.b32.xlu0 %v1232, 64
    %v1242 = vpop.permute.xlu0 %1241
    %1243 = vrot.lane.b32.xlu0 %v1234, 64
    %v1244 = vpop.permute.xlu0 %1243
    %1245 = vrot.lane.b32.xlu0 %v1236, 64
    %v1246 = vpop.permute.xlu0 %1245
    %1247 = vrot.lane.b32.xlu0 %v1238, 64
    %v1248 = vpop.permute.xlu0 %1247
    %1249 = vrot.lane.b32.xlu0 %v1240, 64
    %v1250 = vpop.permute.xlu0 %1249
    %v1256 = vmul.f32 %v1177, %v1242
    %v1257 = vmul.f32 %v1177, %v1244
    %v1258 = vmul.f32 %v1177, %v1246
    %v1259 = vmul.f32 %v1177, %v1248
    %v1260 = vmul.f32 %v1177, %v1250
    %1266 = vrot.lane.b32.xlu0 %v1256, 64
    %v1267 = vpop.permute.xlu0 %1266
    %1268 = vrot.lane.b32.xlu0 %v1257, 64
    %v1269 = vpop.permute.xlu0 %1268
    %1270 = vrot.lane.b32.xlu0 %v1258, 64
    %v1271 = vpop.permute.xlu0 %1270
    %1272 = vrot.lane.b32.xlu0 %v1259, 64
    %v1273 = vpop.permute.xlu0 %1272
    %1274 = vrot.lane.b32.xlu0 %v1260, 64
    %v1275 = vpop.permute.xlu0 %1274
    %v1281 = vadd.f32 %v1220, %v1267
    %v1282 = vadd.f32 %v1221, %v1269
    %v1283 = vadd.f32 %v1222, %v1271
    %v1284 = vadd.f32 %v1223, %v1273
    %v1285 = vadd.f32 %v1224, %v1275
    %v1286 = vlaneseq
    %v1287 = vshrl.u32 %v1286, 7
    %v1288 = vsub.s32 1, %v1287
    %v1289 = vrot.slane %v911, %v1288
    %v1290 = vmul.f32 %v1289, %v1171
    %v1291 = vmul.f32 %v1074, %v1181
    %1293 = vrot.lane.b32.xlu0 %v1291, 64
    %v1294 = vpop.permute.xlu0 %1293
    %v1296 = vadd.f32 %v1290, %v1294
    %v1297 = vlaneseq
    %v1298 = vshrl.u32 %v1297, 7
    %v1299 = vsub.s32 2, %v1298
    %v1300 = vrot.slane %v911, %v1299
    %v1301 = vmul.f32 %v1300, %v1171
    %v1302 = vmul.f32 %v1079, %v1181
    %1304 = vrot.lane.b32.xlu0 %v1302, 64
    %v1305 = vpop.permute.xlu0 %1304
    %v1307 = vadd.f32 %v1301, %v1305
    %v1308 = vlaneseq
    %v1309 = vshrl.u32 %v1308, 7
    %v1310 = vsub.s32 3, %v1309
    %v1311 = vrot.slane %v911, %v1310
    %v1312 = vmul.f32 %v1311, %v1171
    %v1313 = vmul.f32 %v1084, %v1181
    %1315 = vrot.lane.b32.xlu0 %v1313, 64
    %v1316 = vpop.permute.xlu0 %1315
    %v1318 = vadd.f32 %v1312, %v1316
    %v1319 = vlaneseq
    %v1320 = vshrl.u32 %v1319, 7
    %v1321 = vsub.s32 4, %v1320
    %v1322 = vrot.slane %v911, %v1321
    %v1323 = vmul.f32 %v1322, %v1171
    %v1324 = vmul.f32 %v1089, %v1181
    %1326 = vrot.lane.b32.xlu0 %v1324, 64
    %v1327 = vpop.permute.xlu0 %1326
    %v1329 = vadd.f32 %v1323, %v1327
    %v1330 = vlaneseq
    %v1331 = vshrl.u32 %v1330, 7
    %v1332 = vsub.s32 5, %v1331
    %v1333 = vrot.slane %v911, %v1332
    %v1334 = vmul.f32 %v1333, %v1171
    %v1335 = vmul.f32 %v1094, %v1181
    %1337 = vrot.lane.b32.xlu0 %v1335, 64
    %v1338 = vpop.permute.xlu0 %1337
    %v1340 = vadd.f32 %v1334, %v1338
    %v1341 = vlaneseq
    %v1342 = vshrl.u32 %v1341, 7
    %v1343 = vsub.s32 6, %v1342
    %v1344 = vrot.slane %v911, %v1343
    %v1345 = vmul.f32 %v1344, %v1171
    %v1346 = vmul.f32 %v1099, %v1181
    %1348 = vrot.lane.b32.xlu0 %v1346, 64
    %v1349 = vpop.permute.xlu0 %1348
    %v1351 = vadd.f32 %v1345, %v1349
    %v1353 = vrot.slane %v1307, 2
    %v1356 = vrot.slane %v1318, 4
    %v1359 = vrot.slane %v1329, 6
    %v1362 = vrot.slane %v1351, 2
    %v1364 = vsel %vm346, %v1296, %v1353
    %v1365 = vsel %vm348, %v1353, %v1356
    %v1366 = vsel %vm350, %v1356, %v1359
    %v1367 = vsel %vm346, %v1340, %v1362
    %v1368 = vadd.f32 %v1281, %v1364
    %v1369 = vadd.f32 %v1282, %v1365
    %v1370 = vadd.f32 %v1283, %v1366
    %v1371 = vadd.f32 %v1284, %v1367
    %v1372 = vadd.f32 %v1285, %v1362
    %v1374 = vrot.slane %v1188, 7
    %v1381 = vrot.slane %v1368, 1
    %v1382 = vrot.slane %v1369, 1
    %v1383 = vsel %vm367, %v1381, %v1382
    %v1384 = vrot.slane %v1370, 1
    %v1385 = vsel %vm367, %v1382, %v1384
    %v1386 = vrot.slane %v1371, 1
    %v1387 = vsel %vm367, %v1384, %v1386
    %v1388 = vrot.slane %v1372, 1
    %v1389 = vsel %vm367, %v1386, %v1388
    %v1396 = vsel %vm389, %v1164, %v1374
    %v1397 = vsel %vm367, %v1396, %v1381
    %1398 = vrot.lane.b32.xlu0 %v1017, 35
    %v1399 = vpop.permute.xlu0 %1398
    %v1401 = vmul.f32 %v124, %v1399
    %1402 = vrot.lane.b32.xlu0 %v1169, 35
    %v1403 = vpop.permute.xlu0 %1402
    %v1405 = vmul.f32 %v400, %v1403
    %1406 = vrot.lane.b32.xlu0 %v411, 93
    %v1407 = vpop.permute.xlu0 %1406
    %v1409 = vmul.f32 %v1177, %v1407
    %1411 = vrot.lane.b32.xlu0 %v1409, 35
    %v1412 = vpop.permute.xlu0 %1411
    %v1414 = vadd.f32 %v1405, %v1412
    %1415 = vrot.lane.b32.xlu0 %v1196, 35
    %v1416 = vpop.permute.xlu0 %1415
    %1417 = vrot.lane.b32.xlu0 %v1198, 35
    %v1418 = vpop.permute.xlu0 %1417
    %1419 = vrot.lane.b32.xlu0 %v1200, 35
    %v1420 = vpop.permute.xlu0 %1419
    %1421 = vrot.lane.b32.xlu0 %v1202, 35
    %v1422 = vpop.permute.xlu0 %1421
    %1423 = vrot.lane.b32.xlu0 %v1204, 35
    %v1424 = vpop.permute.xlu0 %1423
    %v1430 = vmul.f32 %v400, %v1416
    %v1431 = vmul.f32 %v400, %v1418
    %v1432 = vmul.f32 %v400, %v1420
    %v1433 = vmul.f32 %v400, %v1422
    %v1434 = vmul.f32 %v400, %v1424
    %1435 = vrot.lane.b32.xlu0 %v464, 93
    %v1436 = vpop.permute.xlu0 %1435
    %1437 = vrot.lane.b32.xlu0 %v466, 93
    %v1438 = vpop.permute.xlu0 %1437
    %1439 = vrot.lane.b32.xlu0 %v468, 93
    %v1440 = vpop.permute.xlu0 %1439
    %1441 = vrot.lane.b32.xlu0 %v470, 93
    %v1442 = vpop.permute.xlu0 %1441
    %1443 = vrot.lane.b32.xlu0 %v472, 93
    %v1444 = vpop.permute.xlu0 %1443
    %v1450 = vmul.f32 %v1177, %v1436
    %v1451 = vmul.f32 %v1177, %v1438
    %v1452 = vmul.f32 %v1177, %v1440
    %v1453 = vmul.f32 %v1177, %v1442
    %v1454 = vmul.f32 %v1177, %v1444
    %1460 = vrot.lane.b32.xlu0 %v1450, 35
    %v1461 = vpop.permute.xlu0 %1460
    %1462 = vrot.lane.b32.xlu0 %v1451, 35
    %v1463 = vpop.permute.xlu0 %1462
    %1464 = vrot.lane.b32.xlu0 %v1452, 35
    %v1465 = vpop.permute.xlu0 %1464
    %1466 = vrot.lane.b32.xlu0 %v1453, 35
    %v1467 = vpop.permute.xlu0 %1466
    %1468 = vrot.lane.b32.xlu0 %v1454, 35
    %v1469 = vpop.permute.xlu0 %1468
    %v1475 = vadd.f32 %v1430, %v1461
    %v1476 = vadd.f32 %v1431, %v1463
    %v1477 = vadd.f32 %v1432, %v1465
    %v1478 = vadd.f32 %v1433, %v1467
    %v1479 = vadd.f32 %v1434, %v1469
    %v1480 = vmul.f32 %v521, %v1403
    %v1481 = vmul.f32 %v1074, %v1407
    %1483 = vrot.lane.b32.xlu0 %v1481, 35
    %v1484 = vpop.permute.xlu0 %1483
    %v1486 = vadd.f32 %v1480, %v1484
    %v1487 = vmul.f32 %v532, %v1403
    %v1488 = vmul.f32 %v1079, %v1407
    %1490 = vrot.lane.b32.xlu0 %v1488, 35
    %v1491 = vpop.permute.xlu0 %1490
    %v1493 = vadd.f32 %v1487, %v1491
    %v1494 = vmul.f32 %v543, %v1403
    %v1495 = vmul.f32 %v1084, %v1407
    %1497 = vrot.lane.b32.xlu0 %v1495, 35
    %v1498 = vpop.permute.xlu0 %1497
    %v1500 = vadd.f32 %v1494, %v1498
    %v1501 = vmul.f32 %v554, %v1403
    %v1502 = vmul.f32 %v1089, %v1407
    %1504 = vrot.lane.b32.xlu0 %v1502, 35
    %v1505 = vpop.permute.xlu0 %1504
    %v1507 = vadd.f32 %v1501, %v1505
    %v1508 = vmul.f32 %v565, %v1403
    %v1509 = vmul.f32 %v1094, %v1407
    %1511 = vrot.lane.b32.xlu0 %v1509, 35
    %v1512 = vpop.permute.xlu0 %1511
    %v1514 = vadd.f32 %v1508, %v1512
    %v1515 = vmul.f32 %v576, %v1403
    %v1516 = vmul.f32 %v1099, %v1407
    %1518 = vrot.lane.b32.xlu0 %v1516, 35
    %v1519 = vpop.permute.xlu0 %1518
    %v1521 = vadd.f32 %v1515, %v1519
    %v1523 = vrot.slane %v1493, 2
    %v1526 = vrot.slane %v1500, 4
    %v1529 = vrot.slane %v1507, 6
    %v1532 = vrot.slane %v1521, 2
    %v1534 = vsel %vm346, %v1486, %v1523
    %v1535 = vsel %vm348, %v1523, %v1526
    %v1536 = vsel %vm350, %v1526, %v1529
    %v1537 = vsel %vm346, %v1514, %v1532
    %v1538 = vadd.f32 %v1475, %v1534
    %v1539 = vadd.f32 %v1476, %v1535
    %v1540 = vadd.f32 %v1477, %v1536
    %v1541 = vadd.f32 %v1478, %v1537
    %v1542 = vadd.f32 %v1479, %v1532
    %v1544 = vrot.slane %v1414, 7
    %v1551 = vrot.slane %v1538, 1
    %v1552 = vrot.slane %v1539, 1
    %v1553 = vsel %vm367, %v1551, %v1552
    %v1554 = vrot.slane %v1540, 1
    %v1555 = vsel %vm367, %v1552, %v1554
    %v1556 = vrot.slane %v1541, 1
    %v1557 = vsel %vm367, %v1554, %v1556
    %v1558 = vrot.slane %v1542, 1
    %v1559 = vsel %vm367, %v1556, %v1558
    %v1561 = vsel %vm389, %v1401, %v1544
    %v1562 = vsel %vm367, %v1561, %v1551
    %1564 = vrot.lane.b32.xlu0 %v1562, 29
    %v1565 = vpop.permute.xlu0 %1564
    %1566 = vrot.lane.b32.xlu0 %v1553, 29
    %v1567 = vpop.permute.xlu0 %1566
    %1568 = vrot.lane.b32.xlu0 %v1555, 29
    %v1569 = vpop.permute.xlu0 %1568
    %1570 = vrot.lane.b32.xlu0 %v1557, 29
    %v1571 = vpop.permute.xlu0 %1570
    %1572 = vrot.lane.b32.xlu0 %v1559, 29
    %v1573 = vpop.permute.xlu0 %1572
    %1574 = vrot.lane.b32.xlu0 %v1558, 29
    %v1575 = vpop.permute.xlu0 %1574
    %1582 = vrot.lane.b32.xlu0 %v391, 35
    %v1583 = vpop.permute.xlu0 %1582
    %1584 = vrot.lane.b32.xlu0 %v384, 35
    %v1585 = vpop.permute.xlu0 %1584
    %1586 = vrot.lane.b32.xlu0 %v385, 35
    %v1587 = vpop.permute.xlu0 %1586
    %1588 = vrot.lane.b32.xlu0 %v386, 35
    %v1589 = vpop.permute.xlu0 %1588
    %1590 = vrot.lane.b32.xlu0 %v387, 35
    %v1591 = vpop.permute.xlu0 %1590
    %1592 = vrot.lane.b32.xlu0 %v388, 35
    %v1593 = vpop.permute.xlu0 %1592
    %vm1600 = vcmask 261120
    %v1601 = vsel %vm1600, %v1397, %v1565
    %v1602 = vsel %vm1600, %v1383, %v1567
    %v1603 = vsel %vm1600, %v1385, %v1569
    %v1604 = vsel %vm1600, %v1387, %v1571
    %v1605 = vsel %vm1600, %v1389, %v1573
    %v1606 = vsel %vm1600, %v1388, %v1575
    %vm1607 = vcmask 285696
    %v1608 = vsel %vm1607, %v1601, %v1583
    %v1609 = vsel %vm1607, %v1602, %v1585
    %v1610 = vsel %vm1607, %v1603, %v1587
    %v1611 = vsel %vm1607, %v1604, %v1589
    %v1612 = vsel %vm1607, %v1605, %v1591
    %v1613 = vsel %vm1607, %v1606, %v1593
    %v1614 = vld [vmem:[#allocation2 + $0x50] sm:$0xff]
    %v1615 = vld [vmem:[#allocation2 + $0x58] sm:$0xff]
    %v1616 = vld [vmem:[#allocation2 + $0x60] sm:$0xff]
    %v1617 = vld [vmem:[#allocation2 + $0x68] sm:$0xff]
    %v1618 = vld [vmem:[#allocation2 + $0x70] sm:$0xff]
    %v1619 = vld [vmem:[#allocation2 + $0x78] sm:$0xff]
    %v1620 = vld [vmem:[#allocation2 + $0x80] sm:$0xff]
    %v1621 = vld [vmem:[#allocation2 + $0x88] sm:$0xff]
    %v1622 = vld [vmem:[#allocation2 + $0x90] sm:$0x7]
    %v1623 = vld [vmem:[%s2 + $0x3] sm:$0x1]
    %v1624 = vlaneseq
    %v1625 = vshrl.u32 %v1624, 7
    %v1626 = vsub.s32 0, %v1625
    %v1627 = vrot.slane %v1623, %v1626
    %v1628 = vmul.f32 %v136, %v1627
    %v1629 = vmul.f32 %v137, %v1627
    %v1630 = vmul.f32 %v138, %v1627
    %v1631 = vmul.f32 %v139, %v1627
    %v1632 = vmul.f32 %v140, %v1627
    %v1633 = vmul.f32 %v141, %v1627
    %vm1634 = vcmask 547840
    %v1636 = vsel %vm1634, %v1608, 0
    %v1639 = vsel %vm1634, %v1609, 0
    %v1642 = vsel %vm1634, %v1610, 0
    %v1645 = vsel %vm1634, %v1611, 0
    %v1648 = vsel %vm1634, %v1612, 0
    %v1651 = vsel %vm1634, %v1613, 0
    %v1654 = vsel %vm173, %v1622, 0
    %1656 = vmatprep.subr.mxu0 0.0
    %1657 = vmatpush1.msra.mxu0 %v1614
    %1658 = vmatprep.subr.mxu0 0.0
    %1659 = vmatpush1.msra.mxu0 %v1615
    %1660 = vmatprep.subr.mxu0 0.0
    %1661 = vmatpush1.msra.mxu0 %v1616
    %1662 = vmatprep.subr.mxu0 0.0
    %1663 = vmatpush1.msra.mxu0 %v1617
    %1664 = vmatprep.subr.mxu0 0.0
    %1665 = vmatpush1.msra.mxu0 %v1618
    %1666 = vmatprep.subr.mxu0 0.0
    %1667 = vmatpush1.msra.mxu0 %v1619
    %1668 = vmatprep.subr.mxu0 0.0
    %1669 = vmatpush1.msra.mxu0 %v1620
    %1670 = vmatprep.subr.mxu0 0.0
    %1671 = vmatpush1.msra.mxu0 %v1621
    %1672 = vmatprep.subr.mxu0 0.0
    %1673 = vmatpush1.msra.mxu0 %v1654
    %1674 = vmatprep.subr.mxu0 0.0
    %1675 = vmatpush1.msra.mxu0 0.0
    %1676 = vmatprep.subr.mxu0 0.0
    %1677 = vmatpush1.msra.mxu0 0.0
    %1678 = vmatprep.subr.mxu0 0.0
    %1679 = vmatpush1.msra.mxu0 0.0
    %1680 = vmatprep.subr.mxu0 0.0
    %1681 = vmatpush1.msra.mxu0 0.0
    %1682 = vmatprep.subr.mxu0 0.0
    %1683 = vmatpush1.msra.mxu0 0.0
    %1684 = vmatprep.subr.mxu0 0.0
    %1685 = vmatpush1.msra.mxu0 0.0
    %1686 = vmatprep.subr.mxu0 0.0
    %1687 = vmatpush1.msra.mxu0 0.0
    %1688 = vmatprep.subr.mxu0 0.0
    %1689 = vmatpush1.msra.mxu0 0.0
    %1690 = vmatprep.subr.mxu0 0.0
    %1691 = vmatpush1.msra.mxu0 0.0
    %1692 = vmatprep.subr.mxu0 0.0
    %1693 = vmatpush1.msra.mxu0 0.0
    %1694 = vmatprep.subr.mxu0 0.0
    %1695 = vmatpush1.msra.mxu0 0.0
    %1696 = vmatprep.subr.mxu0 0.0
    %1697 = vmatpush1.msra.mxu0 0.0
    %1698 = vmatprep.subr.mxu0 0.0
    %1699 = vmatpush1.msra.mxu0 0.0
    %1700 = vmatprep.subr.mxu0 0.0
    %1701 = vmatpush1.msra.mxu0 0.0
    %1702 = vmatprep.subr.mxu0 0.0
    %1703 = vmatpush1.msra.mxu0 0.0
    %1704 = vmatprep.subr.mxu0 0.0
    %1705 = vmatpush1.msra.mxu0 0.0
    %1706 = vmatprep.subr.mxu0 0.0
    %1707 = vmatpush1.msra.mxu0 0.0
    %1708 = vmatprep.subr.mxu0 0.0
    %1709 = vmatpush1.msra.mxu0 0.0
    %1710 = vmatprep.subr.mxu0 0.0
    %1711 = vmatpush1.msra.mxu0 0.0
    %1712 = vmatprep.subr.mxu0 0.0
    %1713 = vmatpush1.msra.mxu0 0.0
    %1714 = vmatprep.subr.mxu0 0.0
    %1715 = vmatpush1.msra.mxu0 0.0
    %1716 = vmatprep.subr.mxu0 0.0
    %1717 = vmatpush1.msra.mxu0 0.0
    %1718 = vmatprep.subr.mxu0 0.0
    %1719 = vmatpush1.msra.mxu0 0.0
    %1720 = vmatprep.mubr.f32.mxu0 0.0
    %1721 = vmatmul.mubr.f32.gmra.mrb[0].mxu0 %v1636
    %v1722 = vpop.f32.mrb[0].mxu0
    %v1723 = vadd.f32 %v1628, %v1722
    %v1724 = vpop.f32.mrb[0].mxu0
    %1725 = vmatprep.mubr.f32.mxu0 0.0
    %1726 = vmatmul.mubr.f32.gmra.mrb[0].mxu0 %v1639
    %v1727 = vpop.f32.mrb[0].mxu0
    %v1728 = vadd.f32 %v1629, %v1727
    %v1729 = vpop.f32.mrb[0].mxu0
    %1730 = vmatprep.mubr.f32.mxu0 0.0
    %1731 = vmatmul.mubr.f32.gmra.mrb[0].mxu0 %v1642
    %v1732 = vpop.f32.mrb[0].mxu0
    %v1733 = vadd.f32 %v1630, %v1732
    %v1734 = vpop.f32.mrb[0].mxu0
    %1735 = vmatprep.mubr.f32.mxu0 0.0
    %1736 = vmatmul.mubr.f32.gmra.mrb[0].mxu0 %v1645
    %v1737 = vpop.f32.mrb[0].mxu0
    %v1738 = vadd.f32 %v1631, %v1737
    %v1739 = vpop.f32.mrb[0].mxu0
    %1740 = vmatprep.mubr.f32.mxu0 0.0
    %1741 = vmatmul.mubr.f32.gmra.mrb[0].mxu0 %v1648
    %v1742 = vpop.f32.mrb[0].mxu0
    %v1743 = vadd.f32 %v1632, %v1742
    %v1744 = vpop.f32.mrb[0].mxu0
    %1745 = vmatprep.mubr.f32.mxu0 0.0
    %1746 = vmatmul.mubr.f32.gmra.mrb[0].mxu0 %v1651
    %v1747 = vpop.f32.mrb[0].mxu0
    %v1748 = vadd.f32 %v1633, %v1747
    %v1749 = vpop.f32.mrb[0].mxu0
    %1750 = vdwg.mxu0
    %v1751 = vand.u32 2147483647, %v1723
    %v1752 = vsub.f32 0.0, %v1751
    %v1753 = vmul.f32 %v1752, 1.442695
    %v1754 = vpow.pop %v1753
    %v1755 = vmax.f32 %v1723, 0.0
    %v1756 = vadd.f32 %v1754, 1.0
    %v1757 = vlog2.pop %v1756
    %v1758 = vmul.f32 %v1757, 0.6931472
    %v1759 = vadd.f32 %v1755, %v1758
    %v1760 = vrcp.pop %v1756
    %v1761 = vmul.f32 1.0, %v1760
    %vm1762 = vcmp.ge.f32.partialorder %v1723, 0.0
    %v1763 = vmul.f32 %v1754, %v1761
    %v1764 = vsel %vm1762, %v1761, %v1763
    %v1765 = vsub.f32 1.0, %v1764
    %v1766 = vmul.f32 %v1764, %v1765
    %v1767 = vlaneseq
    %v1768 = vshrl.u32 %v1767, 7
    %v1769 = vsub.s32 0, %v1768
    %v1770 = vrot.slane %v1764, %v1769
    %v1771 = vmul.f32 %v1770, %v1723
    %v1772 = vmul.f32 %v1770, %v1728
    %v1773 = vmul.f32 %v1770, %v1733
    %v1774 = vmul.f32 %v1770, %v1738
    %v1775 = vmul.f32 %v1770, %v1743
    %v1776 = vmul.f32 %v1770, %v1748
    %v1777 = vlaneseq
    %v1778 = vshrl.u32 %v1777, 7
    %v1779 = vsub.s32 1, %v1778
    %v1780 = vrot.slane %v1723, %v1779
    %v1781 = vmul.f32 %v1780, %v1723
    %v1782 = vlaneseq
    %v1783 = vshrl.u32 %v1782, 7
    %v1784 = vsub.s32 2, %v1783
    %v1785 = vrot.slane %v1723, %v1784
    %v1786 = vmul.f32 %v1785, %v1723
    %v1787 = vlaneseq
    %v1788 = vshrl.u32 %v1787, 7
    %v1789 = vsub.s32 3, %v1788
    %v1790 = vrot.slane %v1723, %v1789
    %v1791 = vmul.f32 %v1790, %v1723
    %v1792 = vlaneseq
    %v1793 = vshrl.u32 %v1792, 7
    %v1794 = vsub.s32 4, %v1793
    %v1795 = vrot.slane %v1723, %v1794
    %v1796 = vmul.f32 %v1795, %v1723
    %v1797 = vlaneseq
    %v1798 = vshrl.u32 %v1797, 7
    %v1799 = vsub.s32 5, %v1798
    %v1800 = vrot.slane %v1723, %v1799
    %v1801 = vmul.f32 %v1800, %v1723
    %v1802 = vlaneseq
    %v1803 = vshrl.u32 %v1802, 7
    %v1804 = vsub.s32 6, %v1803
    %v1805 = vrot.slane %v1723, %v1804
    %v1806 = vmul.f32 %v1805, %v1723
    %v1808 = vrot.slane %v1781, 1
    %v1811 = vrot.slane %v1786, 3
    %v1814 = vrot.slane %v1791, 5
    %v1817 = vrot.slane %v1796, 7
    %v1820 = vrot.slane %v1801, 1
    %v1823 = vrot.slane %v1806, 3
    %v1825 = vsel %vm346, %v1808, %v1811
    %v1826 = vsel %vm348, %v1811, %v1814
    %v1827 = vsel %vm350, %v1814, %v1817
    %v1828 = vsel %vm346, %v1820, %v1823
    %v1829 = vlaneseq
    %v1830 = vshrl.u32 %v1829, 7
    %v1831 = vsub.s32 0, %v1830
    %v1832 = vrot.slane %v1766, %v1831
    %v1833 = vmul.f32 %v1832, %v1825
    %v1834 = vmul.f32 %v1832, %v1826
    %v1835 = vmul.f32 %v1832, %v1827
    %v1836 = vmul.f32 %v1832, %v1828
    %v1837 = vmul.f32 %v1832, %v1823
    %v1843 = vrot.slane %v1833, 1
    %v1844 = vrot.slane %v1834, 1
    %v1845 = vsel %vm367, %v1843, %v1844
    %v1846 = vrot.slane %v1835, 1
    %v1847 = vsel %vm367, %v1844, %v1846
    %v1848 = vrot.slane %v1836, 1
    %v1849 = vsel %vm367, %v1846, %v1848
    %v1850 = vrot.slane %v1837, 1
    %v1851 = vsel %vm367, %v1848, %v1850
    %v1858 = vadd.f32 %v1771, %v1843
    %v1859 = vadd.f32 %v1772, %v1845
    %v1860 = vadd.f32 %v1773, %v1847
    %v1861 = vadd.f32 %v1774, %v1849
    %v1862 = vadd.f32 %v1775, %v1851
    %v1863 = vadd.f32 %v1776, %v1850
    %v1864 = vsel %vm389, %v1759, %v1771
    %v1865 = vsel %vm367, %v1864, %v1858
    %v1866 = vld [vmem:[#allocation2 + $0x98] sm:$0xff]
    %v1867 = vld [vmem:[#allocation2 + $0xa0] sm:$0xff]
    %v1868 = vld [vmem:[#allocation2 + $0xa8] sm:$0xff]
    %v1869 = vld [vmem:[#allocation2 + $0xb0] sm:$0xff]
    %v1870 = vld [vmem:[#allocation2 + $0xb8] sm:$0xff]
    %v1871 = vld [vmem:[#allocation2 + $0xc0] sm:$0xff]
    %v1872 = vld [vmem:[#allocation2 + $0xc8] sm:$0xff]
    %v1873 = vld [vmem:[#allocation2 + $0xd0] sm:$0xff]
    %v1874 = vld [vmem:[%s2 + $0x4] sm:$0x1]
    %v1875 = vlaneseq
    %v1876 = vshrl.u32 %v1875, 7
    %v1877 = vsub.s32 0, %v1876
    %v1878 = vrot.slane %v1874, %v1877
    %v1879 = vmul.f32 %v136, %v1878
    %v1880 = vmul.f32 %v137, %v1878
    %v1881 = vmul.f32 %v138, %v1878
    %v1882 = vmul.f32 %v139, %v1878
    %v1883 = vmul.f32 %v140, %v1878
    %v1884 = vmul.f32 %v141, %v1878
    %v1886 = vsel %vm931, %v1159, 0
    %v1889 = vsel %vm931, %v1153, 0
    %v1892 = vsel %vm931, %v1154, 0
    %v1895 = vsel %vm931, %v1155, 0
    %v1898 = vsel %vm931, %v1156, 0
    %v1901 = vsel %vm931, %v1157, 0
    %1903 = vmatprep.subr.mxu0 0.0
    %1904 = vmatpush1.msra.mxu0 %v1866
    %1905 = vmatprep.subr.mxu0 0.0
    %1906 = vmatpush1.msra.mxu0 %v1867
    %1907 = vmatprep.subr.mxu0 0.0
    %1908 = vmatpush1.msra.mxu0 %v1868
    %1909 = vmatprep.subr.mxu0 0.0
    %1910 = vmatpush1.msra.mxu0 %v1869
    %1911 = vmatprep.subr.mxu0 0.0
    %1912 = vmatpush1.msra.mxu0 %v1870
    %1913 = vmatprep.subr.mxu0 0.0
    %1914 = vmatpush1.msra.mxu0 %v1871
    %1915 = vmatprep.subr.mxu0 0.0
    %1916 = vmatpush1.msra.mxu0 %v1872
    %1917 = vmatprep.subr.mxu0 0.0
    %1918 = vmatpush1.msra.mxu0 %v1873
    %1919 = vmatprep.subr.mxu0 0.0
    %1920 = vmatpush1.msra.mxu0 0.0
    %1921 = vmatprep.subr.mxu0 0.0
    %1922 = vmatpush1.msra.mxu0 0.0
    %1923 = vmatprep.subr.mxu0 0.0
    %1924 = vmatpush1.msra.mxu0 0.0
    %1925 = vmatprep.subr.mxu0 0.0
    %1926 = vmatpush1.msra.mxu0 0.0
    %1927 = vmatprep.subr.mxu0 0.0
    %1928 = vmatpush1.msra.mxu0 0.0
    %1929 = vmatprep.subr.mxu0 0.0
    %1930 = vmatpush1.msra.mxu0 0.0
    %1931 = vmatprep.subr.mxu0 0.0
    %1932 = vmatpush1.msra.mxu0 0.0
    %1933 = vmatprep.subr.mxu0 0.0
    %1934 = vmatpush1.msra.mxu0 0.0
    %1935 = vmatprep.subr.mxu0 0.0
    %1936 = vmatpush1.msra.mxu0 0.0
    %1937 = vmatprep.subr.mxu0 0.0
    %1938 = vmatpush1.msra.mxu0 0.0
    %1939 = vmatprep.subr.mxu0 0.0
    %1940 = vmatpush1.msra.mxu0 0.0
    %1941 = vmatprep.subr.mxu0 0.0
    %1942 = vmatpush1.msra.mxu0 0.0
    %1943 = vmatprep.subr.mxu0 0.0
    %1944 = vmatpush1.msra.mxu0 0.0
    %1945 = vmatprep.subr.mxu0 0.0
    %1946 = vmatpush1.msra.mxu0 0.0
    %1947 = vmatprep.subr.mxu0 0.0
    %1948 = vmatpush1.msra.mxu0 0.0
    %1949 = vmatprep.subr.mxu0 0.0
    %1950 = vmatpush1.msra.mxu0 0.0
    %1951 = vmatprep.subr.mxu0 0.0
    %1952 = vmatpush1.msra.mxu0 0.0
    %1953 = vmatprep.subr.mxu0 0.0
    %1954 = vmatpush1.msra.mxu0 0.0
    %1955 = vmatprep.subr.mxu0 0.0
    %1956 = vmatpush1.msra.mxu0 0.0
    %1957 = vmatprep.subr.mxu0 0.0
    %1958 = vmatpush1.msra.mxu0 0.0
    %1959 = vmatprep.subr.mxu0 0.0
    %1960 = vmatpush1.msra.mxu0 0.0
    %1961 = vmatprep.subr.mxu0 0.0
    %1962 = vmatpush1.msra.mxu0 0.0
    %1963 = vmatprep.subr.mxu0 0.0
    %1964 = vmatpush1.msra.mxu0 0.0
    %1965 = vmatprep.subr.mxu0 0.0
    %1966 = vmatpush1.msra.mxu0 0.0
    %1967 = vmatprep.mubr.f32.mxu0 0.0
    %1968 = vmatmul.mubr.f32.gmra.mrb[0].mxu0 %v1886
    %v1969 = vpop.f32.mrb[0].mxu0
    %v1970 = vadd.f32 %v1879, %v1969
    %v1971 = vpop.f32.mrb[0].mxu0
    %1972 = vmatprep.mubr.f32.mxu0 0.0
    %1973 = vmatmul.mubr.f32.gmra.mrb[0].mxu0 %v1889
    %v1974 = vpop.f32.mrb[0].mxu0
    %v1975 = vadd.f32 %v1880, %v1974
    %v1976 = vpop.f32.mrb[0].mxu0
    %1977 = vmatprep.mubr.f32.mxu0 0.0
    %1978 = vmatmul.mubr.f32.gmra.mrb[0].mxu0 %v1892
    %v1979 = vpop.f32.mrb[0].mxu0
    %v1980 = vadd.f32 %v1881, %v1979
    %v1981 = vpop.f32.mrb[0].mxu0
    %1982 = vmatprep.mubr.f32.mxu0 0.0
    %1983 = vmatmul.mubr.f32.gmra.mrb[0].mxu0 %v1895
    %v1984 = vpop.f32.mrb[0].mxu0
    %v1985 = vadd.f32 %v1882, %v1984
    %v1986 = vpop.f32.mrb[0].mxu0
    %1987 = vmatprep.mubr.f32.mxu0 0.0
    %1988 = vmatmul.mubr.f32.gmra.mrb[0].mxu0 %v1898
    %v1989 = vpop.f32.mrb[0].mxu0
    %v1990 = vadd.f32 %v1883, %v1989
    %v1991 = vpop.f32.mrb[0].mxu0
    %1992 = vmatprep.mubr.f32.mxu0 0.0
    %1993 = vmatmul.mubr.f32.gmra.mrb[0].mxu0 %v1901
    %v1994 = vpop.f32.mrb[0].mxu0
    %v1995 = vadd.f32 %v1884, %v1994
    %v1996 = vpop.f32.mrb[0].mxu0
    %1997 = vdwg.mxu0
    %v1998 = vand.u32 2147483647, %v1970
    %v1999 = vsub.f32 0.0, %v1998
    %v2000 = vmul.f32 %v1999, 1.442695
    %v2001 = vpow.pop %v2000
    %v2002 = vmax.f32 %v1970, 0.0
    %v2003 = vadd.f32 %v2001, 1.0
    %v2004 = vlog2.pop %v2003
    %v2005 = vmul.f32 %v2004, 0.6931472
    %v2006 = vadd.f32 %v2002, %v2005
    %v2007 = vrcp.pop %v2003
    %v2008 = vmul.f32 1.0, %v2007
    %vm2009 = vcmp.ge.f32.partialorder %v1970, 0.0
    %v2010 = vmul.f32 %v2001, %v2008
    %v2011 = vsel %vm2009, %v2008, %v2010
    %v2012 = vsub.f32 1.0, %v2011
    %v2013 = vmul.f32 %v2011, %v2012
    %v2014 = vlaneseq
    %v2015 = vshrl.u32 %v2014, 7
    %v2016 = vsub.s32 0, %v2015
    %v2017 = vrot.slane %v2011, %v2016
    %v2018 = vmul.f32 %v2017, %v1970
    %v2019 = vmul.f32 %v2017, %v1975
    %v2020 = vmul.f32 %v2017, %v1980
    %v2021 = vmul.f32 %v2017, %v1985
    %v2022 = vmul.f32 %v2017, %v1990
    %v2023 = vmul.f32 %v2017, %v1995
    %v2024 = vlaneseq
    %v2025 = vshrl.u32 %v2024, 7
    %v2026 = vsub.s32 1, %v2025
    %v2027 = vrot.slane %v1970, %v2026
    %v2028 = vmul.f32 %v2027, %v1970
    %v2029 = vlaneseq
    %v2030 = vshrl.u32 %v2029, 7
    %v2031 = vsub.s32 2, %v2030
    %v2032 = vrot.slane %v1970, %v2031
    %v2033 = vmul.f32 %v2032, %v1970
    %v2034 = vlaneseq
    %v2035 = vshrl.u32 %v2034, 7
    %v2036 = vsub.s32 3, %v2035
    %v2037 = vrot.slane %v1970, %v2036
    %v2038 = vmul.f32 %v2037, %v1970
    %v2039 = vlaneseq
    %v2040 = vshrl.u32 %v2039, 7
    %v2041 = vsub.s32 4, %v2040
    %v2042 = vrot.slane %v1970, %v2041
    %v2043 = vmul.f32 %v2042, %v1970
    %v2044 = vlaneseq
    %v2045 = vshrl.u32 %v2044, 7
    %v2046 = vsub.s32 5, %v2045
    %v2047 = vrot.slane %v1970, %v2046
    %v2048 = vmul.f32 %v2047, %v1970
    %v2049 = vlaneseq
    %v2050 = vshrl.u32 %v2049, 7
    %v2051 = vsub.s32 6, %v2050
    %v2052 = vrot.slane %v1970, %v2051
    %v2053 = vmul.f32 %v2052, %v1970
    %v2055 = vrot.slane %v2028, 1
    %v2058 = vrot.slane %v2033, 3
    %v2061 = vrot.slane %v2038, 5
    %v2064 = vrot.slane %v2043, 7
    %v2067 = vrot.slane %v2048, 1
    %v2070 = vrot.slane %v2053, 3
    %v2072 = vsel %vm346, %v2055, %v2058
    %v2073 = vsel %vm348, %v2058, %v2061
    %v2074 = vsel %vm350, %v2061, %v2064
    %v2075 = vsel %vm346, %v2067, %v2070
    %v2076 = vlaneseq
    %v2077 = vshrl.u32 %v2076, 7
    %v2078 = vsub.s32 0, %v2077
    %v2079 = vrot.slane %v2013, %v2078
    %v2080 = vmul.f32 %v2079, %v2072
    %v2081 = vmul.f32 %v2079, %v2073
    %v2082 = vmul.f32 %v2079, %v2074
    %v2083 = vmul.f32 %v2079, %v2075
    %v2084 = vmul.f32 %v2079, %v2070
    %v2090 = vrot.slane %v2080, 1
    %v2091 = vrot.slane %v2081, 1
    %v2092 = vsel %vm367, %v2090, %v2091
    %v2093 = vrot.slane %v2082, 1
    %v2094 = vsel %vm367, %v2091, %v2093
    %v2095 = vrot.slane %v2083, 1
    %v2096 = vsel %vm367, %v2093, %v2095
    %v2097 = vrot.slane %v2084, 1
    %v2098 = vsel %vm367, %v2095, %v2097
    %v2105 = vadd.f32 %v2018, %v2090
    %v2106 = vadd.f32 %v2019, %v2092
    %v2107 = vadd.f32 %v2020, %v2094
    %v2108 = vadd.f32 %v2021, %v2096
    %v2109 = vadd.f32 %v2022, %v2098
    %v2110 = vadd.f32 %v2023, %v2097
    %v2111 = vsel %vm389, %v2006, %v2018
    %v2112 = vsel %vm367, %v2111, %v2105
    %2114 = vrot.lane.b32.xlu0 %v1970, 64
    %v2115 = vpop.permute.xlu0 %2114
    %v2117 = vmul.f32 %v1865, %v2115
    %v2118 = vlaneseq
    %v2119 = vshrl.u32 %v2118, 7
    %v2120 = vsub.s32 0, %v2119
    %v2121 = vrot.slane %v1865, %v2120
    %v2122 = vrot.slane %v1970, 1
    %2123 = vrot.lane.b32.xlu0 %v2122, 64
    %v2124 = vpop.permute.xlu0 %2123
    %v2126 = vmul.f32 %v2121, %v2124
    %v2127 = vlaneseq
    %v2128 = vshrl.u32 %v2127, 7
    %v2129 = vsub.s32 0, %v2128
    %v2130 = vrot.slane %v1970, %v2129
    %v2132 = vrot.slane %v1865, 1
    %2133 = vrot.lane.b32.xlu0 %v2132, 64
    %v2134 = vpop.permute.xlu0 %2133
    %v2136 = vmul.f32 %v2130, %v2134
    %2138 = vrot.lane.b32.xlu0 %v2136, 64
    %v2139 = vpop.permute.xlu0 %2138
    %v2141 = vadd.f32 %v2126, %v2139
    %v2147 = vrot.slane %v1970, 7
    %v2148 = vrot.slane %v1975, 7
    %v2149 = vsel %vm389, %v2147, %v2148
    %v2150 = vrot.slane %v1980, 7
    %v2151 = vsel %vm389, %v2148, %v2150
    %v2152 = vrot.slane %v1985, 7
    %v2153 = vsel %vm389, %v2150, %v2152
    %v2154 = vrot.slane %v1990, 7
    %v2155 = vsel %vm389, %v2152, %v2154
    %v2156 = vrot.slane %v1995, 7
    %v2157 = vsel %vm389, %v2154, %v2156
    %2158 = vrot.lane.b32.xlu0 %v2149, 64
    %v2159 = vpop.permute.xlu0 %2158
    %2160 = vrot.lane.b32.xlu0 %v2151, 64
    %v2161 = vpop.permute.xlu0 %2160
    %2162 = vrot.lane.b32.xlu0 %v2153, 64
    %v2163 = vpop.permute.xlu0 %2162
    %2164 = vrot.lane.b32.xlu0 %v2155, 64
    %v2165 = vpop.permute.xlu0 %2164
    %2166 = vrot.lane.b32.xlu0 %v2157, 64
    %v2167 = vpop.permute.xlu0 %2166
    %v2173 = vmul.f32 %v2121, %v2159
    %v2174 = vmul.f32 %v2121, %v2161
    %v2175 = vmul.f32 %v2121, %v2163
    %v2176 = vmul.f32 %v2121, %v2165
    %v2177 = vmul.f32 %v2121, %v2167
    %v2183 = vrot.slane %v1865, 7
    %v2184 = vrot.slane %v1859, 7
    %v2185 = vsel %vm389, %v2183, %v2184
    %v2186 = vrot.slane %v1860, 7
    %v2187 = vsel %vm389, %v2184, %v2186
    %v2188 = vrot.slane %v1861, 7
    %v2189 = vsel %vm389, %v2186, %v2188
    %v2190 = vrot.slane %v1862, 7
    %v2191 = vsel %vm389, %v2188, %v2190
    %v2192 = vrot.slane %v1863, 7
    %v2193 = vsel %vm389, %v2190, %v2192
    %2194 = vrot.lane.b32.xlu0 %v2185, 64
    %v2195 = vpop.permute.xlu0 %2194
    %2196 = vrot.lane.b32.xlu0 %v2187, 64
    %v2197 = vpop.permute.xlu0 %2196
    %2198 = vrot.lane.b32.xlu0 %v2189, 64
    %v2199 = vpop.permute.xlu0 %2198
    %2200 = vrot.lane.b32.xlu0 %v2191, 64
    %v2201 = vpop.permute.xlu0 %2200
    %2202 = vrot.lane.b32.xlu0 %v2193, 64
    %v2203 = vpop.permute.xlu0 %2202
    %v2209 = vmul.f32 %v2130, %v2195
    %v2210 = vmul.f32 %v2130, %v2197
    %v2211 = vmul.f32 %v2130, %v2199
    %v2212 = vmul.f32 %v2130, %v2201
    %v2213 = vmul.f32 %v2130, %v2203
    %2219 = vrot.lane.b32.xlu0 %v2209, 64
    %v2220 = vpop.permute.xlu0 %2219
    %2221 = vrot.lane.b32.xlu0 %v2210, 64
    %v2222 = vpop.permute.xlu0 %2221
    %2223 = vrot.lane.b32.xlu0 %v2211, 64
    %v2224 = vpop.permute.xlu0 %2223
    %2225 = vrot.lane.b32.xlu0 %v2212, 64
    %v2226 = vpop.permute.xlu0 %2225
    %2227 = vrot.lane.b32.xlu0 %v2213, 64
    %v2228 = vpop.permute.xlu0 %2227
    %v2234 = vadd.f32 %v2173, %v2220
    %v2235 = vadd.f32 %v2174, %v2222
    %v2236 = vadd.f32 %v2175, %v2224
    %v2237 = vadd.f32 %v2176, %v2226
    %v2238 = vadd.f32 %v2177, %v2228
    %v2239 = vlaneseq
    %v2240 = vshrl.u32 %v2239, 7
    %v2241 = vsub.s32 1, %v2240
    %v2242 = vrot.slane %v1865, %v2241
    %v2243 = vmul.f32 %v2242, %v2124
    %v2244 = vmul.f32 %v2027, %v2134
    %2246 = vrot.lane.b32.xlu0 %v2244, 64
    %v2247 = vpop.permute.xlu0 %2246
    %v2249 = vadd.f32 %v2243, %v2247
    %v2250 = vlaneseq
    %v2251 = vshrl.u32 %v2250, 7
    %v2252 = vsub.s32 2, %v2251
    %v2253 = vrot.slane %v1865, %v2252
    %v2254 = vmul.f32 %v2253, %v2124
    %v2255 = vmul.f32 %v2032, %v2134
    %2257 = vrot.lane.b32.xlu0 %v2255, 64
    %v2258 = vpop.permute.xlu0 %2257
    %v2260 = vadd.f32 %v2254, %v2258
    %v2261 = vlaneseq
    %v2262 = vshrl.u32 %v2261, 7
    %v2263 = vsub.s32 3, %v2262
    %v2264 = vrot.slane %v1865, %v2263
    %v2265 = vmul.f32 %v2264, %v2124
    %v2266 = vmul.f32 %v2037, %v2134
    %2268 = vrot.lane.b32.xlu0 %v2266, 64
    %v2269 = vpop.permute.xlu0 %2268
    %v2271 = vadd.f32 %v2265, %v2269
    %v2272 = vlaneseq
    %v2273 = vshrl.u32 %v2272, 7
    %v2274 = vsub.s32 4, %v2273
    %v2275 = vrot.slane %v1865, %v2274
    %v2276 = vmul.f32 %v2275, %v2124
    %v2277 = vmul.f32 %v2042, %v2134
    %2279 = vrot.lane.b32.xlu0 %v2277, 64
    %v2280 = vpop.permute.xlu0 %2279
    %v2282 = vadd.f32 %v2276, %v2280
    %v2283 = vlaneseq
    %v2284 = vshrl.u32 %v2283, 7
    %v2285 = vsub.s32 5, %v2284
    %v2286 = vrot.slane %v1865, %v2285
    %v2287 = vmul.f32 %v2286, %v2124
    %v2288 = vmul.f32 %v2047, %v2134
    %2290 = vrot.lane.b32.xlu0 %v2288, 64
    %v2291 = vpop.permute.xlu0 %2290
    %v2293 = vadd.f32 %v2287, %v2291
    %v2294 = vlaneseq
    %v2295 = vshrl.u32 %v2294, 7
    %v2296 = vsub.s32 6, %v2295
    %v2297 = vrot.slane %v1865, %v2296
    %v2298 = vmul.f32 %v2297, %v2124
    %v2299 = vmul.f32 %v2052, %v2134
    %2301 = vrot.lane.b32.xlu0 %v2299, 64
    %v2302 = vpop.permute.xlu0 %2301
    %v2304 = vadd.f32 %v2298, %v2302
    %v2306 = vrot.slane %v2260, 2
    %v2309 = vrot.slane %v2271, 4
    %v2312 = vrot.slane %v2282, 6
    %v2315 = vrot.slane %v2304, 2
    %v2317 = vsel %vm346, %v2249, %v2306
    %v2318 = vsel %vm348, %v2306, %v2309
    %v2319 = vsel %vm350, %v2309, %v2312
    %v2320 = vsel %vm346, %v2293, %v2315
    %v2321 = vadd.f32 %v2234, %v2317
    %v2322 = vadd.f32 %v2235, %v2318
    %v2323 = vadd.f32 %v2236, %v2319
    %v2324 = vadd.f32 %v2237, %v2320
    %v2325 = vadd.f32 %v2238, %v2315
    %v2327 = vrot.slane %v2141, 7
    %v2334 = vrot.slane %v2321, 1
    %v2335 = vrot.slane %v2322, 1
    %v2336 = vsel %vm367, %v2334, %v2335
    %v2337 = vrot.slane %v2323, 1
    %v2338 = vsel %vm367, %v2335, %v2337
    %v2339 = vrot.slane %v2324, 1
    %v2340 = vsel %vm367, %v2337, %v2339
    %v2341 = vrot.slane %v2325, 1
    %v2342 = vsel %vm367, %v2339, %v2341
    %v2349 = vsel %vm389, %v2117, %v2327
    %v2350 = vsel %vm367, %v2349, %v2334
    %2351 = vrot.lane.b32.xlu0 %v1970, 35
    %v2352 = vpop.permute.xlu0 %2351
    %v2354 = vmul.f32 %v124, %v2352
    %2355 = vrot.lane.b32.xlu0 %v2122, 35
    %v2356 = vpop.permute.xlu0 %2355
    %v2358 = vmul.f32 %v400, %v2356
    %v2359 = vmul.f32 %v2130, %v1407
    %2361 = vrot.lane.b32.xlu0 %v2359, 35
    %v2362 = vpop.permute.xlu0 %2361
    %v2364 = vadd.f32 %v2358, %v2362
    %2365 = vrot.lane.b32.xlu0 %v2149, 35
    %v2366 = vpop.permute.xlu0 %2365
    %2367 = vrot.lane.b32.xlu0 %v2151, 35
    %v2368 = vpop.permute.xlu0 %2367
    %2369 = vrot.lane.b32.xlu0 %v2153, 35
    %v2370 = vpop.permute.xlu0 %2369
    %2371 = vrot.lane.b32.xlu0 %v2155, 35
    %v2372 = vpop.permute.xlu0 %2371
    %2373 = vrot.lane.b32.xlu0 %v2157, 35
    %v2374 = vpop.permute.xlu0 %2373
    %v2380 = vmul.f32 %v400, %v2366
    %v2381 = vmul.f32 %v400, %v2368
    %v2382 = vmul.f32 %v400, %v2370
    %v2383 = vmul.f32 %v400, %v2372
    %v2384 = vmul.f32 %v400, %v2374
    %v2385 = vmul.f32 %v2130, %v1436
    %v2386 = vmul.f32 %v2130, %v1438
    %v2387 = vmul.f32 %v2130, %v1440
    %v2388 = vmul.f32 %v2130, %v1442
    %v2389 = vmul.f32 %v2130, %v1444
    %2395 = vrot.lane.b32.xlu0 %v2385, 35
    %v2396 = vpop.permute.xlu0 %2395
    %2397 = vrot.lane.b32.xlu0 %v2386, 35
    %v2398 = vpop.permute.xlu0 %2397
    %2399 = vrot.lane.b32.xlu0 %v2387, 35
    %v2400 = vpop.permute.xlu0 %2399
    %2401 = vrot.lane.b32.xlu0 %v2388, 35
    %v2402 = vpop.permute.xlu0 %2401
    %2403 = vrot.lane.b32.xlu0 %v2389, 35
    %v2404 = vpop.permute.xlu0 %2403
    %v2410 = vadd.f32 %v2380, %v2396
    %v2411 = vadd.f32 %v2381, %v2398
    %v2412 = vadd.f32 %v2382, %v2400
    %v2413 = vadd.f32 %v2383, %v2402
    %v2414 = vadd.f32 %v2384, %v2404
    %v2415 = vmul.f32 %v521, %v2356
    %v2416 = vmul.f32 %v2027, %v1407
    %2418 = vrot.lane.b32.xlu0 %v2416, 35
    %v2419 = vpop.permute.xlu0 %2418
    %v2421 = vadd.f32 %v2415, %v2419
    %v2422 = vmul.f32 %v532, %v2356
    %v2423 = vmul.f32 %v2032, %v1407
    %2425 = vrot.lane.b32.xlu0 %v2423, 35
    %v2426 = vpop.permute.xlu0 %2425
    %v2428 = vadd.f32 %v2422, %v2426
    %v2429 = vmul.f32 %v543, %v2356
    %v2430 = vmul.f32 %v2037, %v1407
    %2432 = vrot.lane.b32.xlu0 %v2430, 35
    %v2433 = vpop.permute.xlu0 %2432
    %v2435 = vadd.f32 %v2429, %v2433
    %v2436 = vmul.f32 %v554, %v2356
    %v2437 = vmul.f32 %v2042, %v1407
    %2439 = vrot.lane.b32.xlu0 %v2437, 35
    %v2440 = vpop.permute.xlu0 %2439
    %v2442 = vadd.f32 %v2436, %v2440
    %v2443 = vmul.f32 %v565, %v2356
    %v2444 = vmul.f32 %v2047, %v1407
    %2446 = vrot.lane.b32.xlu0 %v2444, 35
    %v2447 = vpop.permute.xlu0 %2446
    %v2449 = vadd.f32 %v2443, %v2447
    %v2450 = vmul.f32 %v576, %v2356
    %v2451 = vmul.f32 %v2052, %v1407
    %2453 = vrot.lane.b32.xlu0 %v2451, 35
    %v2454 = vpop.permute.xlu0 %2453
    %v2456 = vadd.f32 %v2450, %v2454
    %v2458 = vrot.slane %v2428, 2
    %v2461 = vrot.slane %v2435, 4
    %v2464 = vrot.slane %v2442, 6
    %v2467 = vrot.slane %v2456, 2
    %v2469 = vsel %vm346, %v2421, %v2458
    %v2470 = vsel %vm348, %v2458, %v2461
    %v2471 = vsel %vm350, %v2461, %v2464
    %v2472 = vsel %vm346, %v2449, %v2467
    %v2473 = vadd.f32 %v2410, %v2469
    %v2474 = vadd.f32 %v2411, %v2470
    %v2475 = vadd.f32 %v2412, %v2471
    %v2476 = vadd.f32 %v2413, %v2472
    %v2477 = vadd.f32 %v2414, %v2467
    %v2479 = vrot.slane %v2364, 7
    %v2486 = vrot.slane %v2473, 1
    %v2487 = vrot.slane %v2474, 1
    %v2488 = vsel %vm367, %v2486, %v2487
    %v2489 = vrot.slane %v2475, 1
    %v2490 = vsel %vm367, %v2487, %v2489
    %v2491 = vrot.slane %v2476, 1
    %v2492 = vsel %vm367, %v2489, %v2491
    %v2493 = vrot.slane %v2477, 1
    %v2494 = vsel %vm367, %v2491, %v2493
    %v2496 = vsel %vm389, %v2354, %v2479
    %v2497 = vsel %vm367, %v2496, %v2486
    %2499 = vrot.lane.b32.xlu0 %v2497, 29
    %v2500 = vpop.permute.xlu0 %2499
    %2501 = vrot.lane.b32.xlu0 %v2488, 29
    %v2502 = vpop.permute.xlu0 %2501
    %2503 = vrot.lane.b32.xlu0 %v2490, 29
    %v2504 = vpop.permute.xlu0 %2503
    %2505 = vrot.lane.b32.xlu0 %v2492, 29
    %v2506 = vpop.permute.xlu0 %2505
    %2507 = vrot.lane.b32.xlu0 %v2494, 29
    %v2508 = vpop.permute.xlu0 %2507
    %2509 = vrot.lane.b32.xlu0 %v2493, 29
    %v2510 = vpop.permute.xlu0 %2509
    %2517 = vrot.lane.b32.xlu0 %v1159, 35
    %v2518 = vpop.permute.xlu0 %2517
    %2519 = vrot.lane.b32.xlu0 %v1153, 35
    %v2520 = vpop.permute.xlu0 %2519
    %2521 = vrot.lane.b32.xlu0 %v1154, 35
    %v2522 = vpop.permute.xlu0 %2521
    %2523 = vrot.lane.b32.xlu0 %v1155, 35
    %v2524 = vpop.permute.xlu0 %2523
    %2525 = vrot.lane.b32.xlu0 %v1156, 35
    %v2526 = vpop.permute.xlu0 %2525
    %2527 = vrot.lane.b32.xlu0 %v1157, 35
    %v2528 = vpop.permute.xlu0 %2527
    %v2535 = vsel %vm1600, %v2350, %v2500
    %v2536 = vsel %vm1600, %v2336, %v2502
    %v2537 = vsel %vm1600, %v2338, %v2504
    %v2538 = vsel %vm1600, %v2340, %v2506
    %v2539 = vsel %vm1600, %v2342, %v2508
    %v2540 = vsel %vm1600, %v2341, %v2510
    %v2541 = vsel %vm1607, %v2535, %v2518
    %v2542 = vsel %vm1607, %v2536, %v2520
    %v2543 = vsel %vm1607, %v2537, %v2522
    %v2544 = vsel %vm1607, %v2538, %v2524
    %v2545 = vsel %vm1607, %v2539, %v2526
    %v2546 = vsel %vm1607, %v2540, %v2528
    %v2547 = vld [vmem:[#allocation2 + $0xd8] sm:$0xff]
    %v2548 = vld [vmem:[#allocation2 + $0xe0] sm:$0xff]
    %v2549 = vld [vmem:[#allocation2 + $0xe8] sm:$0xff]
    %v2550 = vld [vmem:[#allocation2 + $0xf0] sm:$0xff]
    %v2551 = vld [vmem:[#allocation2 + $0xf8] sm:$0xff]
    %v2552 = vld [vmem:[#allocation2 + $0x100] sm:$0xff]
    %v2553 = vld [vmem:[#allocation2 + $0x108] sm:$0xff]
    %v2554 = vld [vmem:[#allocation2 + $0x110] sm:$0xff]
    %v2555 = vld [vmem:[#allocation2 + $0x118] sm:$0x7]
    %v2556 = vld [vmem:[%s2 + $0x5] sm:$0x1]
    %v2557 = vlaneseq
    %v2558 = vshrl.u32 %v2557, 7
    %v2559 = vsub.s32 0, %v2558
    %v2560 = vrot.slane %v2556, %v2559
    %v2561 = vmul.f32 %v136, %v2560
    %v2562 = vmul.f32 %v137, %v2560
    %v2563 = vmul.f32 %v138, %v2560
    %v2564 = vmul.f32 %v139, %v2560
    %v2565 = vmul.f32 %v140, %v2560
    %v2566 = vmul.f32 %v141, %v2560
    %v2568 = vsel %vm1634, %v2541, 0
    %v2571 = vsel %vm1634, %v2542, 0
    %v2574 = vsel %vm1634, %v2543, 0
    %v2577 = vsel %vm1634, %v2544, 0
    %v2580 = vsel %vm1634, %v2545, 0
    %v2583 = vsel %vm1634, %v2546, 0
    %v2586 = vsel %vm173, %v2555, 0
    %2588 = vmatprep.subr.mxu0 0.0
    %2589 = vmatpush1.msra.mxu0 %v2547
    %2590 = vmatprep.subr.mxu0 0.0
    %2591 = vmatpush1.msra.mxu0 %v2548
    %2592 = vmatprep.subr.mxu0 0.0
    %2593 = vmatpush1.msra.mxu0 %v2549
    %2594 = vmatprep.subr.mxu0 0.0
    %2595 = vmatpush1.msra.mxu0 %v2550
    %2596 = vmatprep.subr.mxu0 0.0
    %2597 = vmatpush1.msra.mxu0 %v2551
    %2598 = vmatprep.subr.mxu0 0.0
    %2599 = vmatpush1.msra.mxu0 %v2552
    %2600 = vmatprep.subr.mxu0 0.0
    %2601 = vmatpush1.msra.mxu0 %v2553
    %2602 = vmatprep.subr.mxu0 0.0
    %2603 = vmatpush1.msra.mxu0 %v2554
    %2604 = vmatprep.subr.mxu0 0.0
    %2605 = vmatpush1.msra.mxu0 %v2586
    %2606 = vmatprep.subr.mxu0 0.0
    %2607 = vmatpush1.msra.mxu0 0.0
    %2608 = vmatprep.subr.mxu0 0.0
    %2609 = vmatpush1.msra.mxu0 0.0
    %2610 = vmatprep.subr.mxu0 0.0
    %2611 = vmatpush1.msra.mxu0 0.0
    %2612 = vmatprep.subr.mxu0 0.0
    %2613 = vmatpush1.msra.mxu0 0.0
    %2614 = vmatprep.subr.mxu0 0.0
    %2615 = vmatpush1.msra.mxu0 0.0
    %2616 = vmatprep.subr.mxu0 0.0
    %2617 = vmatpush1.msra.mxu0 0.0
    %2618 = vmatprep.subr.mxu0 0.0
    %2619 = vmatpush1.msra.mxu0 0.0
    %2620 = vmatprep.subr.mxu0 0.0
    %2621 = vmatpush1.msra.mxu0 0.0
    %2622 = vmatprep.subr.mxu0 0.0
    %2623 = vmatpush1.msra.mxu0 0.0
    %2624 = vmatprep.subr.mxu0 0.0
    %2625 = vmatpush1.msra.mxu0 0.0
    %2626 = vmatprep.subr.mxu0 0.0
    %2627 = vmatpush1.msra.mxu0 0.0
    %2628 = vmatprep.subr.mxu0 0.0
    %2629 = vmatpush1.msra.mxu0 0.0
    %2630 = vmatprep.subr.mxu0 0.0
    %2631 = vmatpush1.msra.mxu0 0.0
    %2632 = vmatprep.subr.mxu0 0.0
    %2633 = vmatpush1.msra.mxu0 0.0
    %2634 = vmatprep.subr.mxu0 0.0
    %2635 = vmatpush1.msra.mxu0 0.0
    %2636 = vmatprep.subr.mxu0 0.0
    %2637 = vmatpush1.msra.mxu0 0.0
    %2638 = vmatprep.subr.mxu0 0.0
    %2639 = vmatpush1.msra.mxu0 0.0
    %2640 = vmatprep.subr.mxu0 0.0
    %2641 = vmatpush1.msra.mxu0 0.0
    %2642 = vmatprep.subr.mxu0 0.0
    %2643 = vmatpush1.msra.mxu0 0.0
    %2644 = vmatprep.subr.mxu0 0.0
    %2645 = vmatpush1.msra.mxu0 0.0
    %2646 = vmatprep.subr.mxu0 0.0
    %2647 = vmatpush1.msra.mxu0 0.0
    %2648 = vmatprep.subr.mxu0 0.0
    %2649 = vmatpush1.msra.mxu0 0.0
    %2650 = vmatprep.subr.mxu0 0.0
    %2651 = vmatpush1.msra.mxu0 0.0
    %2652 = vmatprep.mubr.f32.mxu0 0.0
    %2653 = vmatmul.mubr.f32.gmra.mrb[0].mxu0 %v2568
    %v2654 = vpop.f32.mrb[0].mxu0
    %v2655 = vadd.f32 %v2561, %v2654
    %v2656 = vpop.f32.mrb[0].mxu0
    %2657 = vmatprep.mubr.f32.mxu0 0.0
    %2658 = vmatmul.mubr.f32.gmra.mrb[0].mxu0 %v2571
    %v2659 = vpop.f32.mrb[0].mxu0
    %v2660 = vadd.f32 %v2562, %v2659
    %v2661 = vpop.f32.mrb[0].mxu0
    %2662 = vmatprep.mubr.f32.mxu0 0.0
    %2663 = vmatmul.mubr.f32.gmra.mrb[0].mxu0 %v2574
    %v2664 = vpop.f32.mrb[0].mxu0
    %v2665 = vadd.f32 %v2563, %v2664
    %v2666 = vpop.f32.mrb[0].mxu0
    %2667 = vmatprep.mubr.f32.mxu0 0.0
    %2668 = vmatmul.mubr.f32.gmra.mrb[0].mxu0 %v2577
    %v2669 = vpop.f32.mrb[0].mxu0
    %v2670 = vadd.f32 %v2564, %v2669
    %v2671 = vpop.f32.mrb[0].mxu0
    %2672 = vmatprep.mubr.f32.mxu0 0.0
    %2673 = vmatmul.mubr.f32.gmra.mrb[0].mxu0 %v2580
    %v2674 = vpop.f32.mrb[0].mxu0
    %v2675 = vadd.f32 %v2565, %v2674
    %v2676 = vpop.f32.mrb[0].mxu0
    %2677 = vmatprep.mubr.f32.mxu0 0.0
    %2678 = vmatmul.mubr.f32.gmra.mrb[0].mxu0 %v2583
    %v2679 = vpop.f32.mrb[0].mxu0
    %v2680 = vadd.f32 %v2566, %v2679
    %v2681 = vpop.f32.mrb[0].mxu0
    %2682 = vdwg.mxu0
    %v2683 = vand.u32 2147483647, %v2655
    %v2684 = vsub.f32 0.0, %v2683
    %v2685 = vmul.f32 %v2684, 1.442695
    %v2686 = vpow.pop %v2685
    %v2687 = vmax.f32 %v2655, 0.0
    %v2688 = vadd.f32 %v2686, 1.0
    %v2689 = vlog2.pop %v2688
    %v2690 = vmul.f32 %v2689, 0.6931472
    %v2691 = vadd.f32 %v2687, %v2690
    %v2692 = vrcp.pop %v2688
    %v2693 = vmul.f32 1.0, %v2692
    %vm2694 = vcmp.ge.f32.partialorder %v2655, 0.0
    %v2695 = vmul.f32 %v2686, %v2693
    %v2696 = vsel %vm2694, %v2693, %v2695
    %v2697 = vsub.f32 1.0, %v2696
    %v2698 = vmul.f32 %v2696, %v2697
    %v2699 = vlaneseq
    %v2700 = vshrl.u32 %v2699, 7
    %v2701 = vsub.s32 0, %v2700
    %v2702 = vrot.slane %v2696, %v2701
    %v2703 = vmul.f32 %v2702, %v2655
    %v2704 = vmul.f32 %v2702, %v2660
    %v2705 = vmul.f32 %v2702, %v2665
    %v2706 = vmul.f32 %v2702, %v2670
    %v2707 = vmul.f32 %v2702, %v2675
    %v2708 = vmul.f32 %v2702, %v2680
    %v2709 = vlaneseq
    %v2710 = vshrl.u32 %v2709, 7
    %v2711 = vsub.s32 1, %v2710
    %v2712 = vrot.slane %v2655, %v2711
    %v2713 = vmul.f32 %v2712, %v2655
    %v2714 = vlaneseq
    %v2715 = vshrl.u32 %v2714, 7
    %v2716 = vsub.s32 2, %v2715
    %v2717 = vrot.slane %v2655, %v2716
    %v2718 = vmul.f32 %v2717, %v2655
    %v2719 = vlaneseq
    %v2720 = vshrl.u32 %v2719, 7
    %v2721 = vsub.s32 3, %v2720
    %v2722 = vrot.slane %v2655, %v2721
    %v2723 = vmul.f32 %v2722, %v2655
    %v2724 = vlaneseq
    %v2725 = vshrl.u32 %v2724, 7
    %v2726 = vsub.s32 4, %v2725
    %v2727 = vrot.slane %v2655, %v2726
    %v2728 = vmul.f32 %v2727, %v2655
    %v2729 = vlaneseq
    %v2730 = vshrl.u32 %v2729, 7
    %v2731 = vsub.s32 5, %v2730
    %v2732 = vrot.slane %v2655, %v2731
    %v2733 = vmul.f32 %v2732, %v2655
    %v2734 = vlaneseq
    %v2735 = vshrl.u32 %v2734, 7
    %v2736 = vsub.s32 6, %v2735
    %v2737 = vrot.slane %v2655, %v2736
    %v2738 = vmul.f32 %v2737, %v2655
    %v2740 = vrot.slane %v2713, 1
    %v2743 = vrot.slane %v2718, 3
    %v2746 = vrot.slane %v2723, 5
    %v2749 = vrot.slane %v2728, 7
    %v2752 = vrot.slane %v2733, 1
    %v2755 = vrot.slane %v2738, 3
    %v2757 = vsel %vm346, %v2740, %v2743
    %v2758 = vsel %vm348, %v2743, %v2746
    %v2759 = vsel %vm350, %v2746, %v2749
    %v2760 = vsel %vm346, %v2752, %v2755
    %v2761 = vlaneseq
    %v2762 = vshrl.u32 %v2761, 7
    %v2763 = vsub.s32 0, %v2762
    %v2764 = vrot.slane %v2698, %v2763
    %v2765 = vmul.f32 %v2764, %v2757
    %v2766 = vmul.f32 %v2764, %v2758
    %v2767 = vmul.f32 %v2764, %v2759
    %v2768 = vmul.f32 %v2764, %v2760
    %v2769 = vmul.f32 %v2764, %v2755
    %v2775 = vrot.slane %v2765, 1
    %v2776 = vrot.slane %v2766, 1
    %v2777 = vsel %vm367, %v2775, %v2776
    %v2778 = vrot.slane %v2767, 1
    %v2779 = vsel %vm367, %v2776, %v2778
    %v2780 = vrot.slane %v2768, 1
    %v2781 = vsel %vm367, %v2778, %v2780
    %v2782 = vrot.slane %v2769, 1
    %v2783 = vsel %vm367, %v2780, %v2782
    %v2790 = vadd.f32 %v2703, %v2775
    %v2791 = vadd.f32 %v2704, %v2777
    %v2792 = vadd.f32 %v2705, %v2779
    %v2793 = vadd.f32 %v2706, %v2781
    %v2794 = vadd.f32 %v2707, %v2783
    %v2795 = vadd.f32 %v2708, %v2782
    %v2796 = vsel %vm389, %v2691, %v2703
    %v2797 = vsel %vm367, %v2796, %v2790
    %v2798 = vld [vmem:[#allocation2 + $0x120] sm:$0xff]
    %v2799 = vld [vmem:[#allocation2 + $0x128] sm:$0xff]
    %v2800 = vld [vmem:[#allocation2 + $0x130] sm:$0xff]
    %v2801 = vld [vmem:[#allocation2 + $0x138] sm:$0xff]
    %v2802 = vld [vmem:[#allocation2 + $0x140] sm:$0xff]
    %v2803 = vld [vmem:[#allocation2 + $0x148] sm:$0xff]
    %v2804 = vld [vmem:[#allocation2 + $0x150] sm:$0xff]
    %v2805 = vld [vmem:[#allocation2 + $0x158] sm:$0xff]
    %v2806 = vld [vmem:[%s2 + $0x6] sm:$0x1]
    %v2807 = vlaneseq
    %v2808 = vshrl.u32 %v2807, 7
    %v2809 = vsub.s32 0, %v2808
    %v2810 = vrot.slane %v2806, %v2809
    %v2811 = vmul.f32 %v136, %v2810
    %v2812 = vmul.f32 %v137, %v2810
    %v2813 = vmul.f32 %v138, %v2810
    %v2814 = vmul.f32 %v139, %v2810
    %v2815 = vmul.f32 %v140, %v2810
    %v2816 = vmul.f32 %v141, %v2810
    %v2818 = vsel %vm931, %v2112, 0
    %v2821 = vsel %vm931, %v2106, 0
    %v2824 = vsel %vm931, %v2107, 0
    %v2827 = vsel %vm931, %v2108, 0
    %v2830 = vsel %vm931, %v2109, 0
    %v2833 = vsel %vm931, %v2110, 0
    %2835 = vmatprep.subr.mxu0 0.0
    %2836 = vmatpush1.msra.mxu0 %v2798
    %2837 = vmatprep.subr.mxu0 0.0
    %2838 = vmatpush1.msra.mxu0 %v2799
    %2839 = vmatprep.subr.mxu0 0.0
    %2840 = vmatpush1.msra.mxu0 %v2800
    %2841 = vmatprep.subr.mxu0 0.0
    %2842 = vmatpush1.msra.mxu0 %v2801
    %2843 = vmatprep.subr.mxu0 0.0
    %2844 = vmatpush1.msra.mxu0 %v2802
    %2845 = vmatprep.subr.mxu0 0.0
    %2846 = vmatpush1.msra.mxu0 %v2803
    %2847 = vmatprep.subr.mxu0 0.0
    %2848 = vmatpush1.msra.mxu0 %v2804
    %2849 = vmatprep.subr.mxu0 0.0
    %2850 = vmatpush1.msra.mxu0 %v2805
    %2851 = vmatprep.subr.mxu0 0.0
    %2852 = vmatpush1.msra.mxu0 0.0
    %2853 = vmatprep.subr.mxu0 0.0
    %2854 = vmatpush1.msra.mxu0 0.0
    %2855 = vmatprep.subr.mxu0 0.0
    %2856 = vmatpush1.msra.mxu0 0.0
    %2857 = vmatprep.subr.mxu0 0.0
    %2858 = vmatpush1.msra.mxu0 0.0
    %2859 = vmatprep.subr.mxu0 0.0
    %2860 = vmatpush1.msra.mxu0 0.0
    %2861 = vmatprep.subr.mxu0 0.0
    %2862 = vmatpush1.msra.mxu0 0.0
    %2863 = vmatprep.subr.mxu0 0.0
    %2864 = vmatpush1.msra.mxu0 0.0
    %2865 = vmatprep.subr.mxu0 0.0
    %2866 = vmatpush1.msra.mxu0 0.0
    %2867 = vmatprep.subr.mxu0 0.0
    %2868 = vmatpush1.msra.mxu0 0.0
    %2869 = vmatprep.subr.mxu0 0.0
    %2870 = vmatpush1.msra.mxu0 0.0
    %2871 = vmatprep.subr.mxu0 0.0
    %2872 = vmatpush1.msra.mxu0 0.0
    %2873 = vmatprep.subr.mxu0 0.0
    %2874 = vmatpush1.msra.mxu0 0.0
    %2875 = vmatprep.subr.mxu0 0.0
    %2876 = vmatpush1.msra.mxu0 0.0
    %2877 = vmatprep.subr.mxu0 0.0
    %2878 = vmatpush1.msra.mxu0 0.0
    %2879 = vmatprep.subr.mxu0 0.0
    %2880 = vmatpush1.msra.mxu0 0.0
    %2881 = vmatprep.subr.mxu0 0.0
    %2882 = vmatpush1.msra.mxu0 0.0
    %2883 = vmatprep.subr.mxu0 0.0
    %2884 = vmatpush1.msra.mxu0 0.0
    %2885 = vmatprep.subr.mxu0 0.0
    %2886 = vmatpush1.msra.mxu0 0.0
    %2887 = vmatprep.subr.mxu0 0.0
    %2888 = vmatpush1.msra.mxu0 0.0
    %2889 = vmatprep.subr.mxu0 0.0
    %2890 = vmatpush1.msra.mxu0 0.0
    %2891 = vmatprep.subr.mxu0 0.0
    %2892 = vmatpush1.msra.mxu0 0.0
    %2893 = vmatprep.subr.mxu0 0.0
    %2894 = vmatpush1.msra.mxu0 0.0
    %2895 = vmatprep.subr.mxu0 0.0
    %2896 = vmatpush1.msra.mxu0 0.0
    %2897 = vmatprep.subr.mxu0 0.0
    %2898 = vmatpush1.msra.mxu0 0.0
    %2899 = vmatprep.mubr.f32.mxu0 0.0
    %2900 = vmatmul.mubr.f32.gmra.mrb[0].mxu0 %v2818
    %v2901 = vpop.f32.mrb[0].mxu0
    %v2902 = vadd.f32 %v2811, %v2901
    %v2903 = vpop.f32.mrb[0].mxu0
    %2904 = vmatprep.mubr.f32.mxu0 0.0
    %2905 = vmatmul.mubr.f32.gmra.mrb[0].mxu0 %v2821
    %v2906 = vpop.f32.mrb[0].mxu0
    %v2907 = vadd.f32 %v2812, %v2906
    %v2908 = vpop.f32.mrb[0].mxu0
    %2909 = vmatprep.mubr.f32.mxu0 0.0
    %2910 = vmatmul.mubr.f32.gmra.mrb[0].mxu0 %v2824
    %v2911 = vpop.f32.mrb[0].mxu0
    %v2912 = vadd.f32 %v2813, %v2911
    %v2913 = vpop.f32.mrb[0].mxu0
    %2914 = vmatprep.mubr.f32.mxu0 0.0
    %2915 = vmatmul.mubr.f32.gmra.mrb[0].mxu0 %v2827
    %v2916 = vpop.f32.mrb[0].mxu0
    %v2917 = vadd.f32 %v2814, %v2916
    %v2918 = vpop.f32.mrb[0].mxu0
    %2919 = vmatprep.mubr.f32.mxu0 0.0
    %2920 = vmatmul.mubr.f32.gmra.mrb[0].mxu0 %v2830
    %v2921 = vpop.f32.mrb[0].mxu0
    %v2922 = vadd.f32 %v2815, %v2921
    %v2923 = vpop.f32.mrb[0].mxu0
    %2924 = vmatprep.mubr.f32.mxu0 0.0
    %2925 = vmatmul.mubr.f32.gmra.mrb[0].mxu0 %v2833
    %v2926 = vpop.f32.mrb[0].mxu0
    %v2927 = vadd.f32 %v2816, %v2926
    %v2928 = vpop.f32.mrb[0].mxu0
    %2929 = vdwg.mxu0
    %v2930 = vmul.f32 %v2797, %v2902
    %v2931 = vlaneseq
    %v2932 = vshrl.u32 %v2931, 7
    %v2933 = vsub.s32 0, %v2932
    %v2934 = vrot.slane %v2797, %v2933
    %v2935 = vmul.f32 %v2934, %v2902
    %v2936 = vlaneseq
    %v2937 = vshrl.u32 %v2936, 7
    %v2938 = vsub.s32 0, %v2937
    %v2939 = vrot.slane %v2902, %v2938
    %v2940 = vmul.f32 %v2939, %v2797
    %v2941 = vadd.f32 %v2935, %v2940
    %v2942 = vmul.f32 %v2934, %v2907
    %v2943 = vmul.f32 %v2934, %v2912
    %v2944 = vmul.f32 %v2934, %v2917
    %v2945 = vmul.f32 %v2934, %v2922
    %v2946 = vmul.f32 %v2934, %v2927
    %v2947 = vmul.f32 %v2939, %v2791
    %v2948 = vmul.f32 %v2939, %v2792
    %v2949 = vmul.f32 %v2939, %v2793
    %v2950 = vmul.f32 %v2939, %v2794
    %v2951 = vmul.f32 %v2939, %v2795
    %v2952 = vadd.f32 %v2942, %v2947
    %v2953 = vadd.f32 %v2943, %v2948
    %v2954 = vadd.f32 %v2944, %v2949
    %v2955 = vadd.f32 %v2945, %v2950
    %v2956 = vadd.f32 %v2946, %v2951
    %v2957 = vlaneseq
    %v2958 = vshrl.u32 %v2957, 7
    %v2959 = vsub.s32 1, %v2958
    %v2960 = vrot.slane %v2797, %v2959
    %v2961 = vmul.f32 %v2960, %v2902
    %v2962 = vlaneseq
    %v2963 = vshrl.u32 %v2962, 7
    %v2964 = vsub.s32 1, %v2963
    %v2965 = vrot.slane %v2902, %v2964
    %v2966 = vmul.f32 %v2965, %v2797
    %v2967 = vadd.f32 %v2961, %v2966
    %v2968 = vlaneseq
    %v2969 = vshrl.u32 %v2968, 7
    %v2970 = vsub.s32 2, %v2969
    %v2971 = vrot.slane %v2797, %v2970
    %v2972 = vmul.f32 %v2971, %v2902
    %v2973 = vlaneseq
    %v2974 = vshrl.u32 %v2973, 7
    %v2975 = vsub.s32 2, %v2974
    %v2976 = vrot.slane %v2902, %v2975
    %v2977 = vmul.f32 %v2976, %v2797
    %v2978 = vadd.f32 %v2972, %v2977
    %v2979 = vlaneseq
    %v2980 = vshrl.u32 %v2979, 7
    %v2981 = vsub.s32 3, %v2980
    %v2982 = vrot.slane %v2797, %v2981
    %v2983 = vmul.f32 %v2982, %v2902
    %v2984 = vlaneseq
    %v2985 = vshrl.u32 %v2984, 7
    %v2986 = vsub.s32 3, %v2985
    %v2987 = vrot.slane %v2902, %v2986
    %v2988 = vmul.f32 %v2987, %v2797
    %v2989 = vadd.f32 %v2983, %v2988
    %v2990 = vlaneseq
    %v2991 = vshrl.u32 %v2990, 7
    %v2992 = vsub.s32 4, %v2991
    %v2993 = vrot.slane %v2797, %v2992
    %v2994 = vmul.f32 %v2993, %v2902
    %v2995 = vlaneseq
    %v2996 = vshrl.u32 %v2995, 7
    %v2997 = vsub.s32 4, %v2996
    %v2998 = vrot.slane %v2902, %v2997
    %v2999 = vmul.f32 %v2998, %v2797
    %v3000 = vadd.f32 %v2994, %v2999
    %v3001 = vlaneseq
    %v3002 = vshrl.u32 %v3001, 7
    %v3003 = vsub.s32 5, %v3002
    %v3004 = vrot.slane %v2797, %v3003
    %v3005 = vmul.f32 %v3004, %v2902
    %v3006 = vlaneseq
    %v3007 = vshrl.u32 %v3006, 7
    %v3008 = vsub.s32 5, %v3007
    %v3009 = vrot.slane %v2902, %v3008
    %v3010 = vmul.f32 %v3009, %v2797
    %v3011 = vadd.f32 %v3005, %v3010
    %v3012 = vlaneseq
    %v3013 = vshrl.u32 %v3012, 7
    %v3014 = vsub.s32 6, %v3013
    %v3015 = vrot.slane %v2797, %v3014
    %v3016 = vmul.f32 %v3015, %v2902
    %v3017 = vlaneseq
    %v3018 = vshrl.u32 %v3017, 7
    %v3019 = vsub.s32 6, %v3018
    %v3020 = vrot.slane %v2902, %v3019
    %v3021 = vmul.f32 %v3020, %v2797
    %v3022 = vadd.f32 %v3016, %v3021
    %v3024 = vrot.slane %v2967, 1
    %v3027 = vrot.slane %v2978, 3
    %v3030 = vrot.slane %v2989, 5
    %v3033 = vrot.slane %v3000, 7
    %v3036 = vrot.slane %v3011, 1
    %v3039 = vrot.slane %v3022, 3
    %v3041 = vsel %vm346, %v3024, %v3027
    %v3042 = vsel %vm348, %v3027, %v3030
    %v3043 = vsel %vm350, %v3030, %v3033
    %v3044 = vsel %vm346, %v3036, %v3039
    %v3049 = vrot.slane %v3041, 1
    %v3050 = vrot.slane %v3042, 1
    %v3051 = vsel %vm367, %v3049, %v3050
    %v3052 = vrot.slane %v3043, 1
    %v3053 = vsel %vm367, %v3050, %v3052
    %v3054 = vrot.slane %v3044, 1
    %v3055 = vsel %vm367, %v3052, %v3054
    %v3056 = vrot.slane %v3039, 1
    %v3057 = vsel %vm367, %v3054, %v3056
    %v3064 = vadd.f32 %v2941, %v3049
    %v3065 = vadd.f32 %v2952, %v3051
    %v3066 = vadd.f32 %v2953, %v3053
    %v3067 = vadd.f32 %v2954, %v3055
    %v3068 = vadd.f32 %v2955, %v3057
    %v3069 = vadd.f32 %v2956, %v3056
    %v3070 = vsel %vm389, %v2930, %v2941
    %v3071 = vsel %vm367, %v3070, %v3064
    %3073 = vrot.lane.b32.xlu0 %v2902, 99
    %v3074 = vpop.permute.xlu0 %3073
    %v3076 = vmul.f32 %v124, %v3074
    %v3077 = vrot.slane %v2902, 1
    %3078 = vrot.lane.b32.xlu0 %v3077, 99
    %v3079 = vpop.permute.xlu0 %3078
    %v3081 = vmul.f32 %v400, %v3079
    %3082 = vrot.lane.b32.xlu0 %v411, 29
    %v3083 = vpop.permute.xlu0 %3082
    %v3085 = vmul.f32 %v2939, %v3083
    %3087 = vrot.lane.b32.xlu0 %v3085, 99
    %v3088 = vpop.permute.xlu0 %3087
    %v3090 = vadd.f32 %v3081, %v3088
    %v3096 = vrot.slane %v2902, 7
    %v3097 = vrot.slane %v2907, 7
    %v3098 = vsel %vm389, %v3096, %v3097
    %v3099 = vrot.slane %v2912, 7
    %v3100 = vsel %vm389, %v3097, %v3099
    %v3101 = vrot.slane %v2917, 7
    %v3102 = vsel %vm389, %v3099, %v3101
    %v3103 = vrot.slane %v2922, 7
    %v3104 = vsel %vm389, %v3101, %v3103
    %v3105 = vrot.slane %v2927, 7
    %v3106 = vsel %vm389, %v3103, %v3105
    %3107 = vrot.lane.b32.xlu0 %v3098, 99
    %v3108 = vpop.permute.xlu0 %3107
    %3109 = vrot.lane.b32.xlu0 %v3100, 99
    %v3110 = vpop.permute.xlu0 %3109
    %3111 = vrot.lane.b32.xlu0 %v3102, 99
    %v3112 = vpop.permute.xlu0 %3111
    %3113 = vrot.lane.b32.xlu0 %v3104, 99
    %v3114 = vpop.permute.xlu0 %3113
    %3115 = vrot.lane.b32.xlu0 %v3106, 99
    %v3116 = vpop.permute.xlu0 %3115
    %v3122 = vmul.f32 %v400, %v3108
    %v3123 = vmul.f32 %v400, %v3110
    %v3124 = vmul.f32 %v400, %v3112
    %v3125 = vmul.f32 %v400, %v3114
    %v3126 = vmul.f32 %v400, %v3116
    %3127 = vrot.lane.b32.xlu0 %v464, 29
    %v3128 = vpop.permute.xlu0 %3127
    %3129 = vrot.lane.b32.xlu0 %v466, 29
    %v3130 = vpop.permute.xlu0 %3129
    %3131 = vrot.lane.b32.xlu0 %v468, 29
    %v3132 = vpop.permute.xlu0 %3131
    %3133 = vrot.lane.b32.xlu0 %v470, 29
    %v3134 = vpop.permute.xlu0 %3133
    %3135 = vrot.lane.b32.xlu0 %v472, 29
    %v3136 = vpop.permute.xlu0 %3135
    %v3142 = vmul.f32 %v2939, %v3128
    %v3143 = vmul.f32 %v2939, %v3130
    %v3144 = vmul.f32 %v2939, %v3132
    %v3145 = vmul.f32 %v2939, %v3134
    %v3146 = vmul.f32 %v2939, %v3136
    %3152 = vrot.lane.b32.xlu0 %v3142, 99
    %v3153 = vpop.permute.xlu0 %3152
    %3154 = vrot.lane.b32.xlu0 %v3143, 99
    %v3155 = vpop.permute.xlu0 %3154
    %3156 = vrot.lane.b32.xlu0 %v3144, 99
    %v3157 = vpop.permute.xlu0 %3156
    %3158 = vrot.lane.b32.xlu0 %v3145, 99
    %v3159 = vpop.permute.xlu0 %3158
    %3160 = vrot.lane.b32.xlu0 %v3146, 99
    %v3161 = vpop.permute.xlu0 %3160
    %v3167 = vadd.f32 %v3122, %v3153
    %v3168 = vadd.f32 %v3123, %v3155
    %v3169 = vadd.f32 %v3124, %v3157
    %v3170 = vadd.f32 %v3125, %v3159
    %v3171 = vadd.f32 %v3126, %v3161
    %v3172 = vmul.f32 %v521, %v3079
    %v3173 = vmul.f32 %v2965, %v3083
    %3175 = vrot.lane.b32.xlu0 %v3173, 99
    %v3176 = vpop.permute.xlu0 %3175
    %v3178 = vadd.f32 %v3172, %v3176
    %v3179 = vmul.f32 %v532, %v3079
    %v3180 = vmul.f32 %v2976, %v3083
    %3182 = vrot.lane.b32.xlu0 %v3180, 99
    %v3183 = vpop.permute.xlu0 %3182
    %v3185 = vadd.f32 %v3179, %v3183
    %v3186 = vmul.f32 %v543, %v3079
    %v3187 = vmul.f32 %v2987, %v3083
    %3189 = vrot.lane.b32.xlu0 %v3187, 99
    %v3190 = vpop.permute.xlu0 %3189
    %v3192 = vadd.f32 %v3186, %v3190
    %v3193 = vmul.f32 %v554, %v3079
    %v3194 = vmul.f32 %v2998, %v3083
    %3196 = vrot.lane.b32.xlu0 %v3194, 99
    %v3197 = vpop.permute.xlu0 %3196
    %v3199 = vadd.f32 %v3193, %v3197
    %v3200 = vmul.f32 %v565, %v3079
    %v3201 = vmul.f32 %v3009, %v3083
    %3203 = vrot.lane.b32.xlu0 %v3201, 99
    %v3204 = vpop.permute.xlu0 %3203
    %v3206 = vadd.f32 %v3200, %v3204
    %v3207 = vmul.f32 %v576, %v3079
    %v3208 = vmul.f32 %v3020, %v3083
    %3210 = vrot.lane.b32.xlu0 %v3208, 99
    %v3211 = vpop.permute.xlu0 %3210
    %v3213 = vadd.f32 %v3207, %v3211
    %v3215 = vrot.slane %v3185, 2
    %v3218 = vrot.slane %v3192, 4
    %v3221 = vrot.slane %v3199, 6
    %v3224 = vrot.slane %v3213, 2
    %v3226 = vsel %vm346, %v3178, %v3215
    %v3227 = vsel %vm348, %v3215, %v3218
    %v3228 = vsel %vm350, %v3218, %v3221
    %v3229 = vsel %vm346, %v3206, %v3224
    %v3230 = vadd.f32 %v3167, %v3226
    %v3231 = vadd.f32 %v3168, %v3227
    %v3232 = vadd.f32 %v3169, %v3228
    %v3233 = vadd.f32 %v3170, %v3229
    %v3234 = vadd.f32 %v3171, %v3224
    %v3236 = vrot.slane %v3090, 7
    %v3243 = vrot.slane %v3230, 1
    %v3244 = vrot.slane %v3231, 1
    %v3245 = vsel %vm367, %v3243, %v3244
    %v3246 = vrot.slane %v3232, 1
    %v3247 = vsel %vm367, %v3244, %v3246
    %v3248 = vrot.slane %v3233, 1
    %v3249 = vsel %vm367, %v3246, %v3248
    %v3250 = vrot.slane %v3234, 1
    %v3251 = vsel %vm367, %v3248, %v3250
    %v3253 = vsel %vm389, %v3076, %v3236
    %v3254 = vsel %vm367, %v3253, %v3243
    %3256 = vrot.lane.b32.xlu0 %v3254, 29
    %v3257 = vpop.permute.xlu0 %3256
    %3258 = vrot.lane.b32.xlu0 %v3245, 29
    %v3259 = vpop.permute.xlu0 %3258
    %3260 = vrot.lane.b32.xlu0 %v3247, 29
    %v3261 = vpop.permute.xlu0 %3260
    %3262 = vrot.lane.b32.xlu0 %v3249, 29
    %v3263 = vpop.permute.xlu0 %3262
    %3264 = vrot.lane.b32.xlu0 %v3251, 29
    %v3265 = vpop.permute.xlu0 %3264
    %3266 = vrot.lane.b32.xlu0 %v3250, 29
    %v3267 = vpop.permute.xlu0 %3266
    %3274 = vrot.lane.b32.xlu0 %v2112, 35
    %v3275 = vpop.permute.xlu0 %3274
    %3276 = vrot.lane.b32.xlu0 %v2106, 35
    %v3277 = vpop.permute.xlu0 %3276
    %3278 = vrot.lane.b32.xlu0 %v2107, 35
    %v3279 = vpop.permute.xlu0 %3278
    %3280 = vrot.lane.b32.xlu0 %v2108, 35
    %v3281 = vpop.permute.xlu0 %3280
    %3282 = vrot.lane.b32.xlu0 %v2109, 35
    %v3283 = vpop.permute.xlu0 %3282
    %3284 = vrot.lane.b32.xlu0 %v2110, 35
    %v3285 = vpop.permute.xlu0 %3284
    %v3292 = vsel %vm1600, %v3071, %v3257
    %v3293 = vsel %vm1600, %v3065, %v3259
    %v3294 = vsel %vm1600, %v3066, %v3261
    %v3295 = vsel %vm1600, %v3067, %v3263
    %v3296 = vsel %vm1600, %v3068, %v3265
    %v3297 = vsel %vm1600, %v3069, %v3267
    %v3298 = vsel %vm1607, %v3292, %v3275
    %v3299 = vsel %vm1607, %v3293, %v3277
    %v3300 = vsel %vm1607, %v3294, %v3279
    %v3301 = vsel %vm1607, %v3295, %v3281
    %v3302 = vsel %vm1607, %v3296, %v3283
    %v3303 = vsel %vm1607, %v3297, %v3285
    %v3304 = vld [vmem:[#allocation2 + $0x160] sm:$0xff]
    %v3305 = vld [vmem:[#allocation2 + $0x168] sm:$0xff]
    %v3306 = vld [vmem:[#allocation2 + $0x170] sm:$0xff]
    %v3307 = vld [vmem:[#allocation2 + $0x178] sm:$0xff]
    %v3308 = vld [vmem:[#allocation2 + $0x180] sm:$0xff]
    %v3309 = vld [vmem:[#allocation2 + $0x188] sm:$0xff]
    %v3310 = vld [vmem:[#allocation2 + $0x190] sm:$0xff]
    %v3311 = vld [vmem:[#allocation2 + $0x198] sm:$0xff]
    %v3312 = vld [vmem:[#allocation2 + $0x1a0] sm:$0x7]
    %v3313 = vld [vmem:[%s2 + $0x7] sm:$0x1]
    %v3314 = vlaneseq
    %v3315 = vshrl.u32 %v3314, 7
    %v3316 = vsub.s32 0, %v3315
    %v3317 = vrot.slane %v3313, %v3316
    %v3318 = vmul.f32 %v136, %v3317
    %v3319 = vmul.f32 %v137, %v3317
    %v3320 = vmul.f32 %v138, %v3317
    %v3321 = vmul.f32 %v139, %v3317
    %v3322 = vmul.f32 %v140, %v3317
    %v3323 = vmul.f32 %v141, %v3317
    %v3325 = vsel %vm1634, %v3298, 0
    %v3328 = vsel %vm1634, %v3299, 0
    %v3331 = vsel %vm1634, %v3300, 0
    %v3334 = vsel %vm1634, %v3301, 0
    %v3337 = vsel %vm1634, %v3302, 0
    %v3340 = vsel %vm1634, %v3303, 0
    %v3343 = vsel %vm173, %v3312, 0
    %3345 = vmatprep.subr.mxu0 0.0
    %3346 = vmatpush1.msra.mxu0 %v3304
    %3347 = vmatprep.subr.mxu0 0.0
    %3348 = vmatpush1.msra.mxu0 %v3305
    %3349 = vmatprep.subr.mxu0 0.0
    %3350 = vmatpush1.msra.mxu0 %v3306
    %3351 = vmatprep.subr.mxu0 0.0
    %3352 = vmatpush1.msra.mxu0 %v3307
    %3353 = vmatprep.subr.mxu0 0.0
    %3354 = vmatpush1.msra.mxu0 %v3308
    %3355 = vmatprep.subr.mxu0 0.0
    %3356 = vmatpush1.msra.mxu0 %v3309
    %3357 = vmatprep.subr.mxu0 0.0
    %3358 = vmatpush1.msra.mxu0 %v3310
    %3359 = vmatprep.subr.mxu0 0.0
    %3360 = vmatpush1.msra.mxu0 %v3311
    %3361 = vmatprep.subr.mxu0 0.0
    %3362 = vmatpush1.msra.mxu0 %v3343
    %3363 = vmatprep.subr.mxu0 0.0
    %3364 = vmatpush1.msra.mxu0 0.0
    %3365 = vmatprep.subr.mxu0 0.0
    %3366 = vmatpush1.msra.mxu0 0.0
    %3367 = vmatprep.subr.mxu0 0.0
    %3368 = vmatpush1.msra.mxu0 0.0
    %3369 = vmatprep.subr.mxu0 0.0
    %3370 = vmatpush1.msra.mxu0 0.0
    %3371 = vmatprep.subr.mxu0 0.0
    %3372 = vmatpush1.msra.mxu0 0.0
    %3373 = vmatprep.subr.mxu0 0.0
    %3374 = vmatpush1.msra.mxu0 0.0
    %3375 = vmatprep.subr.mxu0 0.0
    %3376 = vmatpush1.msra.mxu0 0.0
    %3377 = vmatprep.subr.mxu0 0.0
    %3378 = vmatpush1.msra.mxu0 0.0
    %3379 = vmatprep.subr.mxu0 0.0
    %3380 = vmatpush1.msra.mxu0 0.0
    %3381 = vmatprep.subr.mxu0 0.0
    %3382 = vmatpush1.msra.mxu0 0.0
    %3383 = vmatprep.subr.mxu0 0.0
    %3384 = vmatpush1.msra.mxu0 0.0
    %3385 = vmatprep.subr.mxu0 0.0
    %3386 = vmatpush1.msra.mxu0 0.0
    %3387 = vmatprep.subr.mxu0 0.0
    %3388 = vmatpush1.msra.mxu0 0.0
    %3389 = vmatprep.subr.mxu0 0.0
    %3390 = vmatpush1.msra.mxu0 0.0
    %3391 = vmatprep.subr.mxu0 0.0
    %3392 = vmatpush1.msra.mxu0 0.0
    %3393 = vmatprep.subr.mxu0 0.0
    %3394 = vmatpush1.msra.mxu0 0.0
    %3395 = vmatprep.subr.mxu0 0.0
    %3396 = vmatpush1.msra.mxu0 0.0
    %3397 = vmatprep.subr.mxu0 0.0
    %3398 = vmatpush1.msra.mxu0 0.0
    %3399 = vmatprep.subr.mxu0 0.0
    %3400 = vmatpush1.msra.mxu0 0.0
    %3401 = vmatprep.subr.mxu0 0.0
    %3402 = vmatpush1.msra.mxu0 0.0
    %3403 = vmatprep.subr.mxu0 0.0
    %3404 = vmatpush1.msra.mxu0 0.0
    %3405 = vmatprep.subr.mxu0 0.0
    %3406 = vmatpush1.msra.mxu0 0.0
    %3407 = vmatprep.subr.mxu0 0.0
    %3408 = vmatpush1.msra.mxu0 0.0
    %3409 = vmatprep.mubr.f32.mxu0 0.0
    %3410 = vmatmul.mubr.f32.gmra.mrb[0].mxu0 %v3325
    %v3411 = vpop.f32.mrb[0].mxu0
    %v3412 = vadd.f32 %v3318, %v3411
    %v3413 = vpop.f32.mrb[0].mxu0
    %3414 = vmatprep.mubr.f32.mxu0 0.0
    %3415 = vmatmul.mubr.f32.gmra.mrb[0].mxu0 %v3328
    %v3416 = vpop.f32.mrb[0].mxu0
    %v3417 = vadd.f32 %v3319, %v3416
    %v3418 = vpop.f32.mrb[0].mxu0
    %3419 = vmatprep.mubr.f32.mxu0 0.0
    %3420 = vmatmul.mubr.f32.gmra.mrb[0].mxu0 %v3331
    %v3421 = vpop.f32.mrb[0].mxu0
    %v3422 = vadd.f32 %v3320, %v3421
    %v3423 = vpop.f32.mrb[0].mxu0
    %3424 = vmatprep.mubr.f32.mxu0 0.0
    %3425 = vmatmul.mubr.f32.gmra.mrb[0].mxu0 %v3334
    %v3426 = vpop.f32.mrb[0].mxu0
    %v3427 = vadd.f32 %v3321, %v3426
    %v3428 = vpop.f32.mrb[0].mxu0
    %3429 = vmatprep.mubr.f32.mxu0 0.0
    %3430 = vmatmul.mubr.f32.gmra.mrb[0].mxu0 %v3337
    %v3431 = vpop.f32.mrb[0].mxu0
    %v3432 = vadd.f32 %v3322, %v3431
    %v3433 = vpop.f32.mrb[0].mxu0
    %3434 = vmatprep.mubr.f32.mxu0 0.0
    %3435 = vmatmul.mubr.f32.gmra.mrb[0].mxu0 %v3340
    %v3436 = vpop.f32.mrb[0].mxu0
    %v3437 = vadd.f32 %v3323, %v3436
    %v3438 = vpop.f32.mrb[0].mxu0
    %3439 = vdwg.mxu0
    %v3440 = vand.u32 2147483647, %v3412
    %v3441 = vsub.f32 0.0, %v3440
    %v3442 = vmul.f32 %v3441, 1.442695
    %v3443 = vpow.pop %v3442
    %v3444 = vmax.f32 %v3412, 0.0
    %v3445 = vadd.f32 %v3443, 1.0
    %v3446 = vlog2.pop %v3445
    %v3447 = vmul.f32 %v3446, 0.6931472
    %v3448 = vadd.f32 %v3444, %v3447
    %v3449 = vrcp.pop %v3445
    %v3450 = vmul.f32 1.0, %v3449
    %vm3451 = vcmp.ge.f32.partialorder %v3412, 0.0
    %v3452 = vmul.f32 %v3443, %v3450
    %v3453 = vsel %vm3451, %v3450, %v3452
    %v3454 = vsub.f32 1.0, %v3453
    %v3455 = vmul.f32 %v3453, %v3454
    %v3456 = vlaneseq
    %v3457 = vshrl.u32 %v3456, 7
    %v3458 = vsub.s32 0, %v3457
    %v3459 = vrot.slane %v3453, %v3458
    %v3460 = vmul.f32 %v3459, %v3412
    %v3461 = vmul.f32 %v3459, %v3417
    %v3462 = vmul.f32 %v3459, %v3422
    %v3463 = vmul.f32 %v3459, %v3427
    %v3464 = vmul.f32 %v3459, %v3432
    %v3465 = vmul.f32 %v3459, %v3437
    %v3466 = vlaneseq
    %v3467 = vshrl.u32 %v3466, 7
    %v3468 = vsub.s32 1, %v3467
    %v3469 = vrot.slane %v3412, %v3468
    %v3470 = vmul.f32 %v3469, %v3412
    %v3471 = vlaneseq
    %v3472 = vshrl.u32 %v3471, 7
    %v3473 = vsub.s32 2, %v3472
    %v3474 = vrot.slane %v3412, %v3473
    %v3475 = vmul.f32 %v3474, %v3412
    %v3476 = vlaneseq
    %v3477 = vshrl.u32 %v3476, 7
    %v3478 = vsub.s32 3, %v3477
    %v3479 = vrot.slane %v3412, %v3478
    %v3480 = vmul.f32 %v3479, %v3412
    %v3481 = vlaneseq
    %v3482 = vshrl.u32 %v3481, 7
    %v3483 = vsub.s32 4, %v3482
    %v3484 = vrot.slane %v3412, %v3483
    %v3485 = vmul.f32 %v3484, %v3412
    %v3486 = vlaneseq
    %v3487 = vshrl.u32 %v3486, 7
    %v3488 = vsub.s32 5, %v3487
    %v3489 = vrot.slane %v3412, %v3488
    %v3490 = vmul.f32 %v3489, %v3412
    %v3491 = vlaneseq
    %v3492 = vshrl.u32 %v3491, 7
    %v3493 = vsub.s32 6, %v3492
    %v3494 = vrot.slane %v3412, %v3493
    %v3495 = vmul.f32 %v3494, %v3412
    %v3497 = vrot.slane %v3470, 1
    %v3500 = vrot.slane %v3475, 3
    %v3503 = vrot.slane %v3480, 5
    %v3506 = vrot.slane %v3485, 7
    %v3509 = vrot.slane %v3490, 1
    %v3512 = vrot.slane %v3495, 3
    %v3514 = vsel %vm346, %v3497, %v3500
    %v3515 = vsel %vm348, %v3500, %v3503
    %v3516 = vsel %vm350, %v3503, %v3506
    %v3517 = vsel %vm346, %v3509, %v3512
    %v3518 = vlaneseq
    %v3519 = vshrl.u32 %v3518, 7
    %v3520 = vsub.s32 0, %v3519
    %v3521 = vrot.slane %v3455, %v3520
    %v3522 = vmul.f32 %v3521, %v3514
    %v3523 = vmul.f32 %v3521, %v3515
    %v3524 = vmul.f32 %v3521, %v3516
    %v3525 = vmul.f32 %v3521, %v3517
    %v3526 = vmul.f32 %v3521, %v3512
    %v3532 = vrot.slane %v3522, 1
    %v3533 = vrot.slane %v3523, 1
    %v3534 = vsel %vm367, %v3532, %v3533
    %v3535 = vrot.slane %v3524, 1
    %v3536 = vsel %vm367, %v3533, %v3535
    %v3537 = vrot.slane %v3525, 1
    %v3538 = vsel %vm367, %v3535, %v3537
    %v3539 = vrot.slane %v3526, 1
    %v3540 = vsel %vm367, %v3537, %v3539
    %v3547 = vadd.f32 %v3460, %v3532
    %v3548 = vadd.f32 %v3461, %v3534
    %v3549 = vadd.f32 %v3462, %v3536
    %v3550 = vadd.f32 %v3463, %v3538
    %v3551 = vadd.f32 %v3464, %v3540
    %v3552 = vadd.f32 %v3465, %v3539
    %v3553 = vsel %vm389, %v3448, %v3460
    %v3554 = vsel %vm367, %v3553, %v3547
    %3555 = vrot.lane.b32.xlu0 %v2902, 93
    %v3556 = vpop.permute.xlu0 %3555
    %3557 = vrot.lane.b32.xlu0 %v2907, 93
    %v3558 = vpop.permute.xlu0 %3557
    %3559 = vrot.lane.b32.xlu0 %v2912, 93
    %v3560 = vpop.permute.xlu0 %3559
    %3561 = vrot.lane.b32.xlu0 %v2917, 93
    %v3562 = vpop.permute.xlu0 %3561
    %3563 = vrot.lane.b32.xlu0 %v2922, 93
    %v3564 = vpop.permute.xlu0 %3563
    %3565 = vrot.lane.b32.xlu0 %v2927, 93
    %v3566 = vpop.permute.xlu0 %3565
    %v3573 = vsub.f32 %v3554, %v3556
    %v3574 = vsub.f32 %v3548, %v3558
    %v3575 = vsub.f32 %v3549, %v3560
    %v3576 = vsub.f32 %v3550, %v3562
    %v3577 = vsub.f32 %v3551, %v3564
    %v3578 = vsub.f32 %v3552, %v3566
    %3580 = vset.pattern.permute.xlu0 0
    %3581 = vperm.xlu0 %3580, %v3573
    %v3582 = vpop.permute.xlu0 %3581
    %3585 = vset.pattern.permute.xlu0 0
    %3586 = vperm.xlu0 %3585, %v3574
    %v3587 = vpop.permute.xlu0 %3586
    %3590 = vset.pattern.permute.xlu0 0
    %3591 = vperm.xlu0 %3590, %v3575
    %v3592 = vpop.permute.xlu0 %3591
    %3595 = vset.pattern.permute.xlu0 0
    %3596 = vperm.xlu0 %3595, %v3576
    %v3597 = vpop.permute.xlu0 %3596
    %3600 = vset.pattern.permute.xlu0 0
    %3601 = vperm.xlu0 %3600, %v3577
    %v3602 = vpop.permute.xlu0 %3601
    %3605 = vset.pattern.permute.xlu0 0
    %3606 = vperm.xlu0 %3605, %v3578
    %v3607 = vpop.permute.xlu0 %3606
    %3609 = vst [vmem:[%s3] sm:$0xff] %v3582
    %3610 = vst [vmem:[%s3 + $0x8] sm:$0xff] %v3587
    %3611 = vst [vmem:[%s3 + $0x10] sm:$0xff] %v3592
    %3612 = vst [vmem:[%s3 + $0x18] sm:$0xff] %v3597
    %3613 = vst [vmem:[%s3 + $0x20] sm:$0xff] %v3602
    %3614 = vst [vmem:[%s3 + $0x28] sm:$0x7] %v3607
    // Predicated region
    $region18: #{lnn_forward.1} parent=1 // pred_check
      _
    $region19: #{lnn_forward.1} parent=1 // pred_check_branch
      %3616 = sbr.rel (0) target = $region21
    $region20: #{lnn_forward.1} parent=1 // pred_region
      _
    $region21: #{lnn_forward.1} parent=1 // pred_fallthru
      _
    // Predicated region
    $region22: #{lnn_forward.1} parent=1 // pred_check
      _
    $region23: #{lnn_forward.1} parent=1 // pred_check_branch
      %3618 = sbr.rel (0) target = $region25
    $region24: #{lnn_forward.1} parent=1 // pred_region
      _
    $region25: #{lnn_forward.1} parent=1 // pred_fallthru
      _
    %3619 = vsyncpa [#allocation3], 1

</llo_original>
